<compile_context>
chip_gen: v6e
topology: v6e:2x2x1
jax: 0.10.0
libtpu: 0.0.40
codegen_flags: <defaults>
</compile_context>

<pallas_src>
import jax
import jax.numpy as jnp
import numpy as np
from jax.experimental import pallas as pl
from jax.experimental.pallas import tpu as pltpu


# ----------------------------------------------------------------------------
# Kernel
# ----------------------------------------------------------------------------
def make_attrnn_kernel(bb, a, heads, ed, H, nact, out_w, compute_dtype):
    """bb = batches per grid step, a = agents per batch."""
    R = bb * a                  # rows per grid step
    he = heads * ed
    pad = out_w - (2 * nact + 2 * H)

    def kernel(x_ref, h_in_ref, hmask_ref, bbias_ref,
               w1_ref, b1_ref,
               wih_ref, bih_ref, whh_ref, bhh_ref,
               wqkv_ref,
               w2_ref, b2_ref,
               wi_h_ref, wi_f_ref, bi_ref,
               wl1_ref, bl1_ref, wl2_ref, bl2_ref,
               out_ref):
        f32 = jnp.float32
        cdt = compute_dtype

        x_c = x_ref[...].astype(cdt)        # (R, E) MXU operand (bf16 fast path)
        h_in = h_in_ref[...]                # (R, H) state carry stays f32

        # ---- fc1 + ReLU (f32 accumulation) ----
        x1 = jnp.maximum(
            jnp.dot(x_c, w1_ref[...], preferred_element_type=f32) + b1_ref[...], 0.0)

        # ---- GRUCell: 2 merged gate matmuls, (r,z,n) packed on the lane axis ----
        gi = jnp.dot(x1.astype(cdt), wih_ref[...],
                     preferred_element_type=f32) + bih_ref[...]          # (R, 3H)
        gh = jnp.dot(h_in.astype(cdt), whh_ref[...],
                     preferred_element_type=f32) + bhh_ref[...]          # (R, 3H)
        r = jax.nn.sigmoid(gi[:, 0:H] + gh[:, 0:H])
        z = jax.nn.sigmoid(gi[:, H:2 * H] + gh[:, H:2 * H])
        n = jnp.tanh(gi[:, 2 * H:3 * H] + r * gh[:, 2 * H:3 * H])
        h_new = (1.0 - z) * n + z * h_in                                 # (R, H) f32

        # ---- SelfAttention: one merged QKV matmul + stacked-heads scores/PV ----
        # NOTE: the stacked-heads formulation does heads^2 redundant score FLOPs
        # and heads-x extra exp; fine at heads=2, loop per-head blocks if heads>=4.
        qkv = jnp.dot(x_c, wqkv_ref[...], preferred_element_type=f32)    # (R, 3*he)
        qp = qkv[:, 0:he]
        kp = qkv[:, he:2 * he]
        vp = qkv[:, 2 * he:3 * he]

        hmask = hmask_ref[...]                                  # (GR, he) 0/1, precomputed
        q_stack = (jnp.concatenate([qp] * heads, axis=0) * hmask).astype(cdt)   # (GR, he)
        s = jnp.einsum('ic,jc->ij', q_stack, kp.astype(cdt),
                       preferred_element_type=f32)              # (GR, R)
        s = s + bbias_ref[...]                                  # cross-batch mask (0 / -1e30)

        # softmax stats in f32
        s = s - jnp.max(s, axis=-1, keepdims=True)
        p = jnp.exp(s)
        p = p * pl.reciprocal(jnp.sum(p, axis=-1, keepdims=True), approx=True)
        o_stack = jnp.dot(p.astype(cdt), vp.astype(cdt),
                          preferred_element_type=f32)            # (GR, he)

        # pick head hd's column block from row block hd (sublane slices, VPU adds)
        att = o_stack[0:R, :] * hmask[0:R, :]
        for hd in range(1, heads):
            att = att + o_stack[hd * R:(hd + 1) * R, :] * hmask[hd * R:(hd + 1) * R, :]

        # ---- fc2 + ReLU on row-stacked [att ; values] (one matmul) ----
        feat = jnp.concatenate([att, vp], axis=0).astype(cdt)    # (2R, he)
        feat2 = jnp.maximum(
            jnp.dot(feat, w2_ref[...], preferred_element_type=f32) + b2_ref[...], 0.0)

        # ---- fc_inter / fc_last shared for both branches; h-part computed once ----
        hw = jnp.dot(h_new.astype(cdt), wi_h_ref[...],
                     preferred_element_type=f32) + bi_ref[...]
        hw2 = jnp.concatenate([hw, hw], axis=0)                  # (2R, H)
        inter2 = jnp.maximum(
            hw2 + jnp.dot(feat2.astype(cdt), wi_f_ref[...], preferred_element_type=f32), 0.0)
        t2 = jnp.maximum(
            jnp.dot(inter2.astype(cdt), wl1_ref[...],
                    preferred_element_type=f32) + bl1_ref[...], 0.0)
        out2 = jnp.dot(t2.astype(cdt), wl2_ref[...],
                       preferred_element_type=f32) + bl2_ref[...]        # (2R, nact)

        # ---- single full-width (unmasked) store: [q | inter | h | q_v | 0-pad] ----
        pieces = [out2[0:R, :], inter2[0:R, :], h_new, out2[R:2 * R, :]]
        if pad:
            pieces.append(jnp.zeros((R, pad), f32))
        out_ref[...] = jnp.concatenate(pieces, axis=-1)

    return kernel


# ----------------------------------------------------------------------------
# Wrapper
# ----------------------------------------------------------------------------
def _pick_batch_block(B, A, target_rows):
    """Largest divisor bb of B with (bb*A)%8==0 and bb*A <= target_rows,
    preferring >= 2 grid steps (v7x megacore).  Falls back gracefully."""
    divisors = [d for d in range(1, B + 1) if B % d == 0]
    valid = [d for d in divisors if (d * A) % 8 == 0] or [B]
    multi = [d for d in valid if B // d >= 2]
    pool = multi if multi else valid
    fits = [d for d in pool if d * A <= target_rows]
    return max(fits) if fits else min(pool)


def prepare_params(params, *, heads, embed_dim, compute_dtype=jnp.bfloat16):
    """One-time weight prep: QKV merge, q/k scale folding, wi split, bf16 cast."""
    H = params['w1'].shape[-1]
    scale = 1.0 / (float(embed_dim) ** 0.5)     # == (ed**-0.25) applied to both q and k
    wdt = compute_dtype
    f32 = jnp.float32
    return dict(
        w1=params['w1'].astype(wdt),   b1=params['b1'].astype(f32),
        wih=params['wih'].astype(wdt), bih=params['bih'].astype(f32),
        whh=params['whh'].astype(wdt), bhh=params['bhh'].astype(f32),
        wqkv=jnp.concatenate([params['wq'] * scale, params['wk'], params['wv']],
                             axis=-1).astype(wdt),
        w2=params['w2'].astype(wdt),   b2=params['b2'].astype(f32),
        wi_h=params['wi'][:H, :].astype(wdt),
        wi_f=params['wi'][H:, :].astype(wdt),
        bi=params['bi'].astype(f32),
        wl1=params['wl1'].astype(wdt), bl1=params['bl1'].astype(f32),
        wl2=params['wl2'].astype(wdt), bl2=params['bl2'].astype(f32),
        n_actions=params['wl2'].shape[-1],
    )


def attrnn_forward(inputs, hidden, prepped, *, heads, embed_dim,
                   target_rows=256, compute_dtype=jnp.bfloat16):
    """inputs: (B, A, E); hidden: (B*A, H). Returns q, inter, h, q_v shaped (B, A, -1)."""
    B, A, E = inputs.shape
    H = hidden.shape[-1]
    nact = prepped['wl2'].shape[-1]
    ed = embed_dim
    he = heads * ed

    bb = _pick_batch_block(B, A, target_rows)
    grid = (B // bb,)
    R = bb * A
    GR = heads * R
    out_raw = 2 * (nact + H)
    OUT_W = ((out_raw + 127) // 128) * 128       # pad to a full 128-lane store

    x_flat = inputs.reshape(B * A, E).astype(jnp.float32)
    h_flat = hidden.reshape(B * A, H).astype(jnp.float32)

    # Grid-invariant masks, built host-side once (resident VMEM inputs).
    rows = np.arange(GR)
    head_mask = ((rows[:, None] // R) == (np.arange(he)[None, :] // ed)).astype(np.float32)
    same_batch = ((rows[:, None] % R) // A) == (np.arange(R)[None, :] // A)
    batch_bias = np.where(same_batch, 0.0, -1e30).astype(np.float32)
    head_mask = jnp.asarray(head_mask)
    batch_bias = jnp.asarray(batch_bias)

    ordered = [
        x_flat, h_flat, head_mask, batch_bias,
        prepped['w1'], prepped['b1'],
        prepped['wih'], prepped['bih'], prepped['whh'], prepped['bhh'],
        prepped['wqkv'],
        prepped['w2'], prepped['b2'],
        prepped['wi_h'], prepped['wi_f'], prepped['bi'],
        prepped['wl1'], prepped['bl1'], prepped['wl2'], prepped['bl2'],
    ]

    def row_block(arr):
        return pl.BlockSpec((R, arr.shape[-1]), lambda i: (i, 0))

    def resident(arr):                 # constant index_map -> fetched once, stays in VMEM
        return pl.BlockSpec(arr.shape, lambda i: (0, 0))

    in_specs = [row_block(x_flat), row_block(h_flat)] + [resident(a) for a in ordered[2:]]

    kernel = make_attrnn_kernel(bb, A, heads, ed, H, nact, OUT_W, compute_dtype)
    slab = pl.pallas_call(
        kernel,
        out_shape=jax.ShapeDtypeStruct((B * A, OUT_W), jnp.float32),
        grid_spec=pltpu.PrefetchScalarGridSpec(
            num_scalar_prefetch=0,
            grid=grid,
            in_specs=in_specs,
            out_specs=pl.BlockSpec((R, OUT_W), lambda i: (i, 0)),
        ),
        compiler_params=pltpu.CompilerParams(dimension_semantics=("parallel",)),
    )(*ordered)

    q = slab[:, 0:nact]
    inter = slab[:, nact:nact + H]
    h_new = slab[:, nact + H:nact + 2 * H]
    q_v = slab[:, nact + 2 * H:2 * nact + 2 * H]
    return (q.reshape(B, A, -1), inter.reshape(B, A, -1),
            h_new.reshape(B, A, -1), q_v.reshape(B, A, -1))


# ----------------------------------------------------------------------------
# Parameters + pure-JAX reference (correctness check)
# ----------------------------------------------------------------------------
def init_params(key, E, H, heads, ed, n_actions):
    """Deterministic synthetic parameters (PyTorch-style uniform fan-in init)."""
    ks = jax.random.split(key, 16)

    def lin(k, fan_in, shape):
        bound = 1.0 / np.sqrt(fan_in)
        return jax.random.uniform(k, shape, jnp.float32, -bound, bound)

    he = heads * ed
    return dict(
        w1=lin(ks[0], E, (E, H)),            b1=lin(ks[1], E, (1, H)),
        wih=lin(ks[2], H, (H, 3 * H)),       bih=lin(ks[3], H, (1, 3 * H)),
        whh=lin(ks[4], H, (H, 3 * H)),       bhh=lin(ks[5], H, (1, 3 * H)),
        wq=lin(ks[6], E, (E, he)),
        wk=lin(ks[7], E, (E, he)),
        wv=lin(ks[8], E, (E, he)),
        w2=lin(ks[9], he, (he, H)),          b2=lin(ks[10], he, (1, H)),
        wi=lin(ks[11], 2 * H, (2 * H, H)),   bi=lin(ks[12], 2 * H, (1, H)),
        wl1=lin(ks[13], H, (H, H)),          bl1=lin(ks[14], H, (1, H)),
        wl2=lin(ks[15], H, (H, n_actions)),  bl2=jnp.zeros((1, n_actions), jnp.float32),
    )


def reference_forward(inputs, hidden, params, *, heads, embed_dim):
    """Pure-JAX f32 mirror of the PyTorch forward (for correctness checking)."""
    B, A, E = inputs.shape
    H = hidden.shape[-1]
    x = inputs.reshape(B * A, E)
    x1 = jax.nn.relu(x @ params['w1'] + params['b1'])
    gi = x1 @ params['wih'] + params['bih']
    gh = hidden @ params['whh'] + params['bhh']
    i_r, i_z, i_n = gi[:, :H], gi[:, H:2 * H], gi[:, 2 * H:]
    h_r, h_z, h_n = gh[:, :H], gh[:, H:2 * H], gh[:, 2 * H:]
    r = jax.nn.sigmoid(i_r + h_r)
    z = jax.nn.sigmoid(i_z + h_z)
    n = jnp.tanh(i_n + r * h_n)
    h_new = (1.0 - z) * n + z * hidden

    ed = embed_dim
    qp = (x @ params['wq']).reshape(B, A, heads, ed).transpose(0, 2, 1, 3)
    kp = (x @ params['wk']).reshape(B, A, heads, ed).transpose(0, 2, 1, 3)
    vp_flat = x @ params['wv']
    vp = vp_flat.reshape(B, A, heads, ed).transpose(0, 2, 1, 3)
    scale = ed ** 0.25
    dot = jnp.einsum('bhqe,bhke->bhqk', qp / scale, kp / scale)
    p = jax.nn.softmax(dot, axis=-1)
    att = jnp.einsum('bhqk,bhke->bhqe', p, vp).transpose(0, 2, 1, 3).reshape(B * A, heads * ed)

    att2 = jax.nn.relu(att @ params['w2'] + params['b2'])
    attv2 = jax.nn.relu(vp_flat @ params['w2'] + params['b2'])

    def head(feat):
        qc = jnp.concatenate([h_new, feat], axis=-1)
        inter = jax.nn.relu(qc @ params['wi'] + params['bi'])
        t = jax.nn.relu(inter @ params['wl1'] + params['bl1'])
        return inter, t @ params['wl2'] + params['bl2']

    inter, q = head(att2)
    _, q_v = head(attv2)
    return (q.reshape(B, A, -1), inter.reshape(B, A, -1),
            h_new.reshape(B, A, -1), q_v.reshape(B, A, -1))


# ----------------------------------------------------------------------------
# Main
# ----------------------------------------------------------------------------
if __name__ == "__main__":
    # Small shapes consistent with the module (B chosen so the grid has >=2 steps
    # and R=128 rows per step):
    B, A, E = 32, 8, 32         # batch, n_agents, obs feature dim (input_shape)
    H = 32                      # rnn_hidden_dim
    HEADS, ED = 2, 16           # att_heads, att_embed_dim (HEADS*ED == fc2 in-dim)
    NACT = 8                    # n_actions

    key = jax.random.PRNGKey(0)
    k_in, k_h, k_p = jax.random.split(key, 3)
    inputs = jax.random.normal(k_in, (B, A, E), jnp.float32)
    hidden = jax.random.normal(k_h, (B * A, H), jnp.float32) * 0.1
    params = init_params(k_p, E, H, HEADS, ED, NACT)

    fwd = jax.jit(attrnn_forward,
                  static_argnames=("heads", "embed_dim", "target_rows", "compute_dtype"))

    qr, ir, hr, qvr = reference_forward(inputs, hidden, params, heads=HEADS, embed_dim=ED)

    def check(outs, tol):
        q, inter, h, q_v = outs
        assert np.allclose(np.asarray(q), np.asarray(qr), **tol)
        assert np.allclose(np.asarray(inter), np.asarray(ir), **tol)
        assert np.allclose(np.asarray(h), np.asarray(hr), **tol)
        assert np.allclose(np.asarray(q_v), np.asarray(qvr), **tol)

    # f32 matmul path: tight check (only the approx EUP reciprocal differs).
    pp32 = prepare_params(params, heads=HEADS, embed_dim=ED, compute_dtype=jnp.float32)
    outs32 = fwd(inputs, hidden, pp32, heads=HEADS, embed_dim=ED,
                 target_rows=256, compute_dtype=jnp.float32)
    jax.block_until_ready(outs32)
    check(outs32, dict(atol=5e-3, rtol=5e-3))

    # bf16 matmul path (production / fast config): looser check.
    ppbf = prepare_params(params, heads=HEADS, embed_dim=ED, compute_dtype=jnp.bfloat16)
    outsbf = fwd(inputs, hidden, ppbf, heads=HEADS, embed_dim=ED,
                 target_rows=256, compute_dtype=jnp.bfloat16)
    jax.block_until_ready(outsbf)
    check(outsbf, dict(atol=8e-2, rtol=8e-2))

    print("KERNEL_OK")
</pallas_src>

<mosaic_0001>
module attributes {stable_mosaic.version = 11 : i64} {
  func.func @kernel(%arg0: i32, %arg1: memref<128x32xf32, #tpu.memory_space<vmem>>, %arg2: memref<128x32xf32, #tpu.memory_space<vmem>>, %arg3: memref<256x32xf32, #tpu.memory_space<vmem>>, %arg4: memref<256x128xf32, #tpu.memory_space<vmem>>, %arg5: memref<32x32xf32, #tpu.memory_space<vmem>>, %arg6: memref<1x32xf32, #tpu.memory_space<vmem>>, %arg7: memref<32x96xf32, #tpu.memory_space<vmem>>, %arg8: memref<1x96xf32, #tpu.memory_space<vmem>>, %arg9: memref<32x96xf32, #tpu.memory_space<vmem>>, %arg10: memref<1x96xf32, #tpu.memory_space<vmem>>, %arg11: memref<32x96xf32, #tpu.memory_space<vmem>>, %arg12: memref<32x32xf32, #tpu.memory_space<vmem>>, %arg13: memref<1x32xf32, #tpu.memory_space<vmem>>, %arg14: memref<32x32xf32, #tpu.memory_space<vmem>>, %arg15: memref<32x32xf32, #tpu.memory_space<vmem>>, %arg16: memref<1x32xf32, #tpu.memory_space<vmem>>, %arg17: memref<32x32xf32, #tpu.memory_space<vmem>>, %arg18: memref<1x32xf32, #tpu.memory_space<vmem>>, %arg19: memref<32x8xf32, #tpu.memory_space<vmem>>, %arg20: memref<1x8xf32, #tpu.memory_space<vmem>>, %arg21: memref<128x128xf32, #tpu.memory_space<vmem>>) attributes {dimension_semantics = [#tpu.dimension_semantics<parallel>], iteration_bounds = array<i64: 2>, scalar_prefetch = 0 : i64, scratch_operands = 0 : i64, tpu.core_type = #tpu.core_type<tc>, window_params = [{transform_indices = @transform_0, window_bounds = array<i64: 128, 32>}, {transform_indices = @transform_1, window_bounds = array<i64: 128, 32>}, {pipeline_mode = #tpu.pipeline_mode<synchronous>, transform_indices = @transform_2, window_bounds = array<i64: 256, 32>}, {pipeline_mode = #tpu.pipeline_mode<synchronous>, transform_indices = @transform_3, window_bounds = array<i64: 256, 128>}, {pipeline_mode = #tpu.pipeline_mode<synchronous>, transform_indices = @transform_4, window_bounds = array<i64: 32, 32>}, {pipeline_mode = #tpu.pipeline_mode<synchronous>, transform_indices = @transform_5, window_bounds = array<i64: 1, 32>}, {pipeline_mode = #tpu.pipeline_mode<synchronous>, transform_indices = @transform_6, window_bounds = array<i64: 32, 96>}, {pipeline_mode = #tpu.pipeline_mode<synchronous>, transform_indices = @transform_7, window_bounds = array<i64: 1, 96>}, {pipeline_mode = #tpu.pipeline_mode<synchronous>, transform_indices = @transform_8, window_bounds = array<i64: 32, 96>}, {pipeline_mode = #tpu.pipeline_mode<synchronous>, transform_indices = @transform_9, window_bounds = array<i64: 1, 96>}, {pipeline_mode = #tpu.pipeline_mode<synchronous>, transform_indices = @transform_10, window_bounds = array<i64: 32, 96>}, {pipeline_mode = #tpu.pipeline_mode<synchronous>, transform_indices = @transform_11, window_bounds = array<i64: 32, 32>}, {pipeline_mode = #tpu.pipeline_mode<synchronous>, transform_indices = @transform_12, window_bounds = array<i64: 1, 32>}, {pipeline_mode = #tpu.pipeline_mode<synchronous>, transform_indices = @transform_13, window_bounds = array<i64: 32, 32>}, {pipeline_mode = #tpu.pipeline_mode<synchronous>, transform_indices = @transform_14, window_bounds = array<i64: 32, 32>}, {pipeline_mode = #tpu.pipeline_mode<synchronous>, transform_indices = @transform_15, window_bounds = array<i64: 1, 32>}, {pipeline_mode = #tpu.pipeline_mode<synchronous>, transform_indices = @transform_16, window_bounds = array<i64: 32, 32>}, {pipeline_mode = #tpu.pipeline_mode<synchronous>, transform_indices = @transform_17, window_bounds = array<i64: 1, 32>}, {pipeline_mode = #tpu.pipeline_mode<synchronous>, transform_indices = @transform_18, window_bounds = array<i64: 32, 8>}, {pipeline_mode = #tpu.pipeline_mode<synchronous>, transform_indices = @transform_19, window_bounds = array<i64: 1, 8>}, {transform_indices = @transform_20, window_bounds = array<i64: 128, 128>}]} {
    %c0 = arith.constant 0 : index
    %c0_0 = arith.constant 0 : index
    %0 = vector.load %arg1[%c0, %c0_0] : memref<128x32xf32, #tpu.memory_space<vmem>>, vector<128x32xf32>
    %c0_1 = arith.constant 0 : index
    %c0_2 = arith.constant 0 : index
    %1 = vector.load %arg2[%c0_1, %c0_2] : memref<128x32xf32, #tpu.memory_space<vmem>>, vector<128x32xf32>
    %c0_3 = arith.constant 0 : index
    %c0_4 = arith.constant 0 : index
    %2 = vector.load %arg5[%c0_3, %c0_4] : memref<32x32xf32, #tpu.memory_space<vmem>>, vector<32x32xf32>
    %cst = arith.constant dense<0.000000e+00> : vector<128x32xf32>
    %3 = tpu.matmul %0, %2, %cst {dimension_numbers = #tpu.dot_dimension_numbers<[1], [0], [0], [1], [0, 0, 1, 1], [], []>} : vector<128x32xf32>, vector<32x32xf32>, vector<128x32xf32> -> vector<128x32xf32>
    %c0_5 = arith.constant 0 : index
    %c0_6 = arith.constant 0 : index
    %4 = vector.load %arg6[%c0_5, %c0_6] : memref<1x32xf32, #tpu.memory_space<vmem>>, vector<1x32xf32>
    %5 = vector.broadcast %4 : vector<1x32xf32> to vector<128x32xf32>
    %6 = arith.addf %3, %5 : vector<128x32xf32>
    %cst_7 = arith.constant 0.000000e+00 : f32
    %7 = vector.broadcast %cst_7 : f32 to vector<128x32xf32>
    %8 = arith.maximumf %6, %7 : vector<128x32xf32>
    %c0_8 = arith.constant 0 : index
    %c0_9 = arith.constant 0 : index
    %9 = vector.load %arg7[%c0_8, %c0_9] : memref<32x96xf32, #tpu.memory_space<vmem>>, vector<32x96xf32>
    %cst_10 = arith.constant dense<0.000000e+00> : vector<128x96xf32>
    %10 = tpu.matmul %8, %9, %cst_10 {dimension_numbers = #tpu.dot_dimension_numbers<[1], [0], [0], [1], [0, 0, 1, 1], [], []>} : vector<128x32xf32>, vector<32x96xf32>, vector<128x96xf32> -> vector<128x96xf32>
    %c0_11 = arith.constant 0 : index
    %c0_12 = arith.constant 0 : index
    %11 = vector.load %arg8[%c0_11, %c0_12] : memref<1x96xf32, #tpu.memory_space<vmem>>, vector<1x96xf32>
    %12 = vector.broadcast %11 : vector<1x96xf32> to vector<128x96xf32>
    %13 = arith.addf %10, %12 : vector<128x96xf32>
    %c0_13 = arith.constant 0 : index
    %c0_14 = arith.constant 0 : index
    %14 = vector.load %arg9[%c0_13, %c0_14] : memref<32x96xf32, #tpu.memory_space<vmem>>, vector<32x96xf32>
    %cst_15 = arith.constant dense<0.000000e+00> : vector<128x96xf32>
    %15 = tpu.matmul %1, %14, %cst_15 {dimension_numbers = #tpu.dot_dimension_numbers<[1], [0], [0], [1], [0, 0, 1, 1], [], []>} : vector<128x32xf32>, vector<32x96xf32>, vector<128x96xf32> -> vector<128x96xf32>
    %c0_16 = arith.constant 0 : index
    %c0_17 = arith.constant 0 : index
    %16 = vector.load %arg10[%c0_16, %c0_17] : memref<1x96xf32, #tpu.memory_space<vmem>>, vector<1x96xf32>
    %17 = vector.broadcast %16 : vector<1x96xf32> to vector<128x96xf32>
    %18 = arith.addf %15, %17 : vector<128x96xf32>
    %19 = vector.extract_strided_slice %13 {offsets = [0, 0], sizes = [128, 32], strides = [1, 1]} : vector<128x96xf32> to vector<128x32xf32>
    %20 = vector.extract_strided_slice %18 {offsets = [0, 0], sizes = [128, 32], strides = [1, 1]} : vector<128x96xf32> to vector<128x32xf32>
    %21 = arith.addf %19, %20 : vector<128x32xf32>
    %22 = arith.negf %21 : vector<128x32xf32>
    %23 = math.exp %22 : vector<128x32xf32>
    %cst_18 = arith.constant 1.000000e+00 : f32
    %24 = vector.broadcast %cst_18 : f32 to vector<128x32xf32>
    %25 = arith.addf %24, %23 : vector<128x32xf32>
    %26 = arith.divf %24, %25 : vector<128x32xf32>
    %27 = vector.extract_strided_slice %13 {offsets = [0, 32], sizes = [128, 32], strides = [1, 1]} : vector<128x96xf32> to vector<128x32xf32>
    %28 = vector.extract_strided_slice %18 {offsets = [0, 32], sizes = [128, 32], strides = [1, 1]} : vector<128x96xf32> to vector<128x32xf32>
    %29 = arith.addf %27, %28 : vector<128x32xf32>
    %30 = arith.negf %29 : vector<128x32xf32>
    %31 = math.exp %30 : vector<128x32xf32>
    %cst_19 = arith.constant 1.000000e+00 : f32
    %32 = vector.broadcast %cst_19 : f32 to vector<128x32xf32>
    %33 = arith.addf %32, %31 : vector<128x32xf32>
    %34 = arith.divf %32, %33 : vector<128x32xf32>
    %35 = vector.extract_strided_slice %13 {offsets = [0, 64], sizes = [128, 32], strides = [1, 1]} : vector<128x96xf32> to vector<128x32xf32>
    %36 = vector.extract_strided_slice %18 {offsets = [0, 64], sizes = [128, 32], strides = [1, 1]} : vector<128x96xf32> to vector<128x32xf32>
    %37 = arith.mulf %26, %36 : vector<128x32xf32>
    %38 = arith.addf %35, %37 : vector<128x32xf32>
    %39 = math.tanh %38 : vector<128x32xf32>
    %cst_20 = arith.constant 1.000000e+00 : f32
    %40 = vector.broadcast %cst_20 : f32 to vector<128x32xf32>
    %41 = arith.subf %40, %34 : vector<128x32xf32>
    %42 = arith.mulf %41, %39 : vector<128x32xf32>
    %43 = arith.mulf %34, %1 : vector<128x32xf32>
    %44 = arith.addf %42, %43 : vector<128x32xf32>
    %c0_21 = arith.constant 0 : index
    %c0_22 = arith.constant 0 : index
    %45 = vector.load %arg11[%c0_21, %c0_22] : memref<32x96xf32, #tpu.memory_space<vmem>>, vector<32x96xf32>
    %cst_23 = arith.constant dense<0.000000e+00> : vector<128x96xf32>
    %46 = tpu.matmul %0, %45, %cst_23 {dimension_numbers = #tpu.dot_dimension_numbers<[1], [0], [0], [1], [0, 0, 1, 1], [], []>} : vector<128x32xf32>, vector<32x96xf32>, vector<128x96xf32> -> vector<128x96xf32>
    %47 = vector.extract_strided_slice %46 {offsets = [0, 0], sizes = [128, 32], strides = [1, 1]} : vector<128x96xf32> to vector<128x32xf32>
    %48 = vector.extract_strided_slice %46 {offsets = [0, 32], sizes = [128, 32], strides = [1, 1]} : vector<128x96xf32> to vector<128x32xf32>
    %49 = vector.extract_strided_slice %46 {offsets = [0, 64], sizes = [128, 32], strides = [1, 1]} : vector<128x96xf32> to vector<128x32xf32>
    %c0_24 = arith.constant 0 : index
    %c0_25 = arith.constant 0 : index
    %50 = vector.load %arg3[%c0_24, %c0_25] : memref<256x32xf32, #tpu.memory_space<vmem>>, vector<256x32xf32>
    %51 = tpu.concatenate %47, %47 in 0 : vector<128x32xf32>, vector<128x32xf32> -> vector<256x32xf32>
    %52 = arith.mulf %51, %50 : vector<256x32xf32>
    "tpu.trace_start"() <{level = 10 : i32, message = "ic,jc->ij"}> : () -> ()
    %cst_26 = arith.constant dense<0.000000e+00> : vector<256x128xf32>
    %53 = tpu.matmul %52, %48, %cst_26 {dimension_numbers = #tpu.dot_dimension_numbers<[1], [1], [0], [0], [0, 0, 1, 0], [], []>} : vector<256x32xf32>, vector<128x32xf32>, vector<256x128xf32> -> vector<256x128xf32>
    "tpu.trace_stop"() : () -> ()
    %c0_27 = arith.constant 0 : index
    %c0_28 = arith.constant 0 : index
    %54 = vector.load %arg4[%c0_27, %c0_28] : memref<256x128xf32, #tpu.memory_space<vmem>>, vector<256x128xf32>
    %55 = arith.addf %53, %54 : vector<256x128xf32>
    %cst_29 = arith.constant dense<0xFF800000> : vector<256xf32>
    %56 = vector.multi_reduction <maximumf>, %55, %cst_29 [1] : vector<256x128xf32> to vector<256xf32>
    %57 = vector.shape_cast %56 : vector<256xf32> to vector<256x1xf32>
    %58 = vector.broadcast %57 : vector<256x1xf32> to vector<256x128xf32>
    %59 = arith.subf %55, %58 : vector<256x128xf32>
    %60 = math.exp %59 : vector<256x128xf32>
    %cst_30 = arith.constant dense<0.000000e+00> : vector<256xf32>
    %61 = vector.multi_reduction <add>, %60, %cst_30 [1] : vector<256x128xf32> to vector<256xf32>
    %62 = vector.shape_cast %61 : vector<256xf32> to vector<256x1xf32>
    %63 = tpu.reciprocal %62 {approx = true} : vector<256x1xf32> -> vector<256x1xf32>
    %64 = vector.broadcast %63 : vector<256x1xf32> to vector<256x128xf32>
    %65 = arith.mulf %60, %64 : vector<256x128xf32>
    %cst_31 = arith.constant dense<0.000000e+00> : vector<256x32xf32>
    %66 = tpu.matmul %65, %49, %cst_31 {dimension_numbers = #tpu.dot_dimension_numbers<[1], [0], [0], [1], [0, 0, 1, 1], [], []>} : vector<256x128xf32>, vector<128x32xf32>, vector<256x32xf32> -> vector<256x32xf32>
    %67 = vector.extract_strided_slice %66 {offsets = [0, 0], sizes = [128, 32], strides = [1, 1]} : vector<256x32xf32> to vector<128x32xf32>
    %68 = vector.extract_strided_slice %50 {offsets = [0, 0], sizes = [128, 32], strides = [1, 1]} : vector<256x32xf32> to vector<128x32xf32>
    %69 = arith.mulf %67, %68 : vector<128x32xf32>
    %70 = vector.extract_strided_slice %66 {offsets = [128, 0], sizes = [128, 32], strides = [1, 1]} : vector<256x32xf32> to vector<128x32xf32>
    %71 = vector.extract_strided_slice %50 {offsets = [128, 0], sizes = [128, 32], strides = [1, 1]} : vector<256x32xf32> to vector<128x32xf32>
    %72 = arith.mulf %70, %71 : vector<128x32xf32>
    %73 = arith.addf %69, %72 : vector<128x32xf32>
    %74 = tpu.concatenate %73, %49 in 0 : vector<128x32xf32>, vector<128x32xf32> -> vector<256x32xf32>
    %c0_32 = arith.constant 0 : index
    %c0_33 = arith.constant 0 : index
    %75 = vector.load %arg12[%c0_32, %c0_33] : memref<32x32xf32, #tpu.memory_space<vmem>>, vector<32x32xf32>
    %cst_34 = arith.constant dense<0.000000e+00> : vector<256x32xf32>
    %76 = tpu.matmul %74, %75, %cst_34 {dimension_numbers = #tpu.dot_dimension_numbers<[1], [0], [0], [1], [0, 0, 1, 1], [], []>} : vector<256x32xf32>, vector<32x32xf32>, vector<256x32xf32> -> vector<256x32xf32>
    %c0_35 = arith.constant 0 : index
    %c0_36 = arith.constant 0 : index
    %77 = vector.load %arg13[%c0_35, %c0_36] : memref<1x32xf32, #tpu.memory_space<vmem>>, vector<1x32xf32>
    %78 = vector.broadcast %77 : vector<1x32xf32> to vector<256x32xf32>
    %79 = arith.addf %76, %78 : vector<256x32xf32>
    %cst_37 = arith.constant 0.000000e+00 : f32
    %80 = vector.broadcast %cst_37 : f32 to vector<256x32xf32>
    %81 = arith.maximumf %79, %80 : vector<256x32xf32>
    %c0_38 = arith.constant 0 : index
    %c0_39 = arith.constant 0 : index
    %82 = vector.load %arg14[%c0_38, %c0_39] : memref<32x32xf32, #tpu.memory_space<vmem>>, vector<32x32xf32>
    %cst_40 = arith.constant dense<0.000000e+00> : vector<128x32xf32>
    %83 = tpu.matmul %44, %82, %cst_40 {dimension_numbers = #tpu.dot_dimension_numbers<[1], [0], [0], [1], [0, 0, 1, 1], [], []>} : vector<128x32xf32>, vector<32x32xf32>, vector<128x32xf32> -> vector<128x32xf32>
    %c0_41 = arith.constant 0 : index
    %c0_42 = arith.constant 0 : index
    %84 = vector.load %arg16[%c0_41, %c0_42] : memref<1x32xf32, #tpu.memory_space<vmem>>, vector<1x32xf32>
    %85 = vector.broadcast %84 : vector<1x32xf32> to vector<128x32xf32>
    %86 = arith.addf %83, %85 : vector<128x32xf32>
    %87 = tpu.concatenate %86, %86 in 0 : vector<128x32xf32>, vector<128x32xf32> -> vector<256x32xf32>
    %c0_43 = arith.constant 0 : index
    %c0_44 = arith.constant 0 : index
    %88 = vector.load %arg15[%c0_43, %c0_44] : memref<32x32xf32, #tpu.memory_space<vmem>>, vector<32x32xf32>
    %cst_45 = arith.constant dense<0.000000e+00> : vector<256x32xf32>
    %89 = tpu.matmul %81, %88, %cst_45 {dimension_numbers = #tpu.dot_dimension_numbers<[1], [0], [0], [1], [0, 0, 1, 1], [], []>} : vector<256x32xf32>, vector<32x32xf32>, vector<256x32xf32> -> vector<256x32xf32>
    %90 = arith.addf %87, %89 : vector<256x32xf32>
    %cst_46 = arith.constant 0.000000e+00 : f32
    %91 = vector.broadcast %cst_46 : f32 to vector<256x32xf32>
    %92 = arith.maximumf %90, %91 : vector<256x32xf32>
    %c0_47 = arith.constant 0 : index
    %c0_48 = arith.constant 0 : index
    %93 = vector.load %arg17[%c0_47, %c0_48] : memref<32x32xf32, #tpu.memory_space<vmem>>, vector<32x32xf32>
    %cst_49 = arith.constant dense<0.000000e+00> : vector<256x32xf32>
    %94 = tpu.matmul %92, %93, %cst_49 {dimension_numbers = #tpu.dot_dimension_numbers<[1], [0], [0], [1], [0, 0, 1, 1], [], []>} : vector<256x32xf32>, vector<32x32xf32>, vector<256x32xf32> -> vector<256x32xf32>
    %c0_50 = arith.constant 0 : index
    %c0_51 = arith.constant 0 : index
    %95 = vector.load %arg18[%c0_50, %c0_51] : memref<1x32xf32, #tpu.memory_space<vmem>>, vector<1x32xf32>
    %96 = vector.broadcast %95 : vector<1x32xf32> to vector<256x32xf32>
    %97 = arith.addf %94, %96 : vector<256x32xf32>
    %cst_52 = arith.constant 0.000000e+00 : f32
    %98 = vector.broadcast %cst_52 : f32 to vector<256x32xf32>
    %99 = arith.maximumf %97, %98 : vector<256x32xf32>
    %c0_53 = arith.constant 0 : index
    %c0_54 = arith.constant 0 : index
    %100 = vector.load %arg19[%c0_53, %c0_54] : memref<32x8xf32, #tpu.memory_space<vmem>>, vector<32x8xf32>
    %cst_55 = arith.constant dense<0.000000e+00> : vector<256x8xf32>
    %101 = tpu.matmul %99, %100, %cst_55 {dimension_numbers = #tpu.dot_dimension_numbers<[1], [0], [0], [1], [0, 0, 1, 1], [], []>} : vector<256x32xf32>, vector<32x8xf32>, vector<256x8xf32> -> vector<256x8xf32>
    %c0_56 = arith.constant 0 : index
    %c0_57 = arith.constant 0 : index
    %102 = vector.load %arg20[%c0_56, %c0_57] : memref<1x8xf32, #tpu.memory_space<vmem>>, vector<1x8xf32>
    %103 = vector.broadcast %102 : vector<1x8xf32> to vector<256x8xf32>
    %104 = arith.addf %101, %103 : vector<256x8xf32>
    %105 = vector.extract_strided_slice %104 {offsets = [0, 0], sizes = [128, 8], strides = [1, 1]} : vector<256x8xf32> to vector<128x8xf32>
    %106 = vector.extract_strided_slice %92 {offsets = [0, 0], sizes = [128, 32], strides = [1, 1]} : vector<256x32xf32> to vector<128x32xf32>
    %107 = vector.extract_strided_slice %104 {offsets = [128, 0], sizes = [128, 8], strides = [1, 1]} : vector<256x8xf32> to vector<128x8xf32>
    %cst_58 = arith.constant 0.000000e+00 : f32
    %108 = vector.broadcast %cst_58 : f32 to vector<128x48xf32>
    %109 = tpu.concatenate %105, %106, %44, %107, %108 in 1 : vector<128x8xf32>, vector<128x32xf32>, vector<128x32xf32>, vector<128x8xf32>, vector<128x48xf32> -> vector<128x128xf32>
    %c0_59 = arith.constant 0 : index
    %c0_60 = arith.constant 0 : index
    %110 = vector.load %arg21[%c0_59, %c0_60] : memref<128x128xf32, #tpu.memory_space<vmem>>, vector<128x128xf32>
    tpu.vector_store %arg21[%c0_59, %c0_60], %109 {strides = array<i32>} : memref<128x128xf32, #tpu.memory_space<vmem>>, vector<128x128xf32>,
    return
  }
  func.func @transform_0(%arg0: i32) -> (i32, i32) {
    %c0_i32 = arith.constant 0 : i32
    %c0_i32_0 = arith.constant 0 : i32
    return %arg0, %c0_i32 : i32, i32
  }
  func.func @transform_1(%arg0: i32) -> (i32, i32) {
    %c0_i32 = arith.constant 0 : i32
    %c0_i32_0 = arith.constant 0 : i32
    return %arg0, %c0_i32 : i32, i32
  }
  func.func @transform_2(%arg0: i32) -> (i32, i32) {
    %c0_i32 = arith.constant 0 : i32
    %c0_i32_0 = arith.constant 0 : i32
    %c0_i32_1 = arith.constant 0 : i32
    return %c0_i32, %c0_i32_0 : i32, i32
  }
  func.func @transform_3(%arg0: i32) -> (i32, i32) {
    %c0_i32 = arith.constant 0 : i32
    %c0_i32_0 = arith.constant 0 : i32
    %c0_i32_1 = arith.constant 0 : i32
    return %c0_i32, %c0_i32_0 : i32, i32
  }
  func.func @transform_4(%arg0: i32) -> (i32, i32) {
    %c0_i32 = arith.constant 0 : i32
    %c0_i32_0 = arith.constant 0 : i32
    %c0_i32_1 = arith.constant 0 : i32
    return %c0_i32, %c0_i32_0 : i32, i32
  }
  func.func @transform_5(%arg0: i32) -> (i32, i32) {
    %c0_i32 = arith.constant 0 : i32
    %c0_i32_0 = arith.constant 0 : i32
    %c0_i32_1 = arith.constant 0 : i32
    return %c0_i32, %c0_i32_0 : i32, i32
  }
  func.func @transform_6(%arg0: i32) -> (i32, i32) {
    %c0_i32 = arith.constant 0 : i32
    %c0_i32_0 = arith.constant 0 : i32
    %c0_i32_1 = arith.constant 0 : i32
    return %c0_i32, %c0_i32_0 : i32, i32
  }
  func.func @transform_7(%arg0: i32) -> (i32, i32) {
    %c0_i32 = arith.constant 0 : i32
    %c0_i32_0 = arith.constant 0 : i32
    %c0_i32_1 = arith.constant 0 : i32
    return %c0_i32, %c0_i32_0 : i32, i32
  }
  func.func @transform_8(%arg0: i32) -> (i32, i32) {
    %c0_i32 = arith.constant 0 : i32
    %c0_i32_0 = arith.constant 0 : i32
    %c0_i32_1 = arith.constant 0 : i32
    return %c0_i32, %c0_i32_0 : i32, i32
  }
  func.func @transform_9(%arg0: i32) -> (i32, i32) {
    %c0_i32 = arith.constant 0 : i32
    %c0_i32_0 = arith.constant 0 : i32
    %c0_i32_1 = arith.constant 0 : i32
    return %c0_i32, %c0_i32_0 : i32, i32
  }
  func.func @transform_10(%arg0: i32) -> (i32, i32) {
    %c0_i32 = arith.constant 0 : i32
    %c0_i32_0 = arith.constant 0 : i32
    %c0_i32_1 = arith.constant 0 : i32
    return %c0_i32, %c0_i32_0 : i32, i32
  }
  func.func @transform_11(%arg0: i32) -> (i32, i32) {
    %c0_i32 = arith.constant 0 : i32
    %c0_i32_0 = arith.constant 0 : i32
    %c0_i32_1 = arith.constant 0 : i32
    return %c0_i32, %c0_i32_0 : i32, i32
  }
  func.func @transform_12(%arg0: i32) -> (i32, i32) {
    %c0_i32 = arith.constant 0 : i32
    %c0_i32_0 = arith.constant 0 : i32
    %c0_i32_1 = arith.constant 0 : i32
    return %c0_i32, %c0_i32_0 : i32, i32
  }
  func.func @transform_13(%arg0: i32) -> (i32, i32) {
    %c0_i32 = arith.constant 0 : i32
    %c0_i32_0 = arith.constant 0 : i32
    %c0_i32_1 = arith.constant 0 : i32
    return %c0_i32, %c0_i32_0 : i32, i32
  }
  func.func @transform_14(%arg0: i32) -> (i32, i32) {
    %c0_i32 = arith.constant 0 : i32
    %c0_i32_0 = arith.constant 0 : i32
    %c0_i32_1 = arith.constant 0 : i32
    return %c0_i32, %c0_i32_0 : i32, i32
  }
  func.func @transform_15(%arg0: i32) -> (i32, i32) {
    %c0_i32 = arith.constant 0 : i32
    %c0_i32_0 = arith.constant 0 : i32
    %c0_i32_1 = arith.constant 0 : i32
    return %c0_i32, %c0_i32_0 : i32, i32
  }
  func.func @transform_16(%arg0: i32) -> (i32, i32) {
    %c0_i32 = arith.constant 0 : i32
    %c0_i32_0 = arith.constant 0 : i32
    %c0_i32_1 = arith.constant 0 : i32
    return %c0_i32, %c0_i32_0 : i32, i32
  }
  func.func @transform_17(%arg0: i32) -> (i32, i32) {
    %c0_i32 = arith.constant 0 : i32
    %c0_i32_0 = arith.constant 0 : i32
    %c0_i32_1 = arith.constant 0 : i32
    return %c0_i32, %c0_i32_0 : i32, i32
  }
  func.func @transform_18(%arg0: i32) -> (i32, i32) {
    %c0_i32 = arith.constant 0 : i32
    %c0_i32_0 = arith.constant 0 : i32
    %c0_i32_1 = arith.constant 0 : i32
    return %c0_i32, %c0_i32_0 : i32, i32
  }
  func.func @transform_19(%arg0: i32) -> (i32, i32) {
    %c0_i32 = arith.constant 0 : i32
    %c0_i32_0 = arith.constant 0 : i32
    %c0_i32_1 = arith.constant 0 : i32
    return %c0_i32, %c0_i32_0 : i32, i32
  }
  func.func @transform_20(%arg0: i32) -> (i32, i32) {
    %c0_i32 = arith.constant 0 : i32
    %c0_i32_0 = arith.constant 0 : i32
    return %arg0, %c0_i32 : i32, i32
  }
}

</mosaic_0001>

<llo_original>
// kernel: attrnn_forward.1
$region0: #{attrnn_forward.1}
  #allocation0 [shape = 'u32[]', space=smem, size = 0x4, offset = 0x4, fixed_abs, tag = 'smem constant byte address 0x4 - core index']
  #allocation1 [shape = 'u32[144,128]{1,0:T(1,128)}', space=vmem, size = 0x12000, scoped, tag = 'internal scratch']
  %s0 = inlined_call_operand.vmem [shape: f32[256,32], index: 0, kind: input, shape index: {}]
  %s1 = inlined_call_operand.vmem [shape: f32[256,32], index: 1, kind: input, shape index: {}]
  %s2 = inlined_call_operand.hbm [shape: f32[256,32], index: 2, kind: input, shape index: {}]
  %s3 = inlined_call_operand.hbm [shape: f32[256,128], index: 3, kind: input, shape index: {}]
  %s4 = inlined_call_operand.vmem [shape: f32[32,32], index: 4, kind: input, shape index: {}]
  %s5 = inlined_call_operand.vmem [shape: f32[1,32], index: 5, kind: input, shape index: {}]
  %s6 = inlined_call_operand.vmem [shape: f32[32,96], index: 6, kind: input, shape index: {}]
  %s7 = inlined_call_operand.vmem [shape: f32[1,96], index: 7, kind: input, shape index: {}]
  %s8 = inlined_call_operand.vmem [shape: f32[32,96], index: 8, kind: input, shape index: {}]
  %s9 = inlined_call_operand.vmem [shape: f32[1,96], index: 9, kind: input, shape index: {}]
  %s10 = inlined_call_operand.vmem [shape: f32[32,96], index: 10, kind: input, shape index: {}]
  %s11 = inlined_call_operand.hbm [shape: f32[32,32], index: 11, kind: input, shape index: {}]
  %s12 = inlined_call_operand.vmem [shape: f32[1,32], index: 12, kind: input, shape index: {}]
  %s13 = inlined_call_operand.hbm [shape: f32[32,32], index: 13, kind: input, shape index: {}]
  %s14 = inlined_call_operand.hbm [shape: f32[32,32], index: 14, kind: input, shape index: {}]
  %s15 = inlined_call_operand.vmem [shape: f32[1,32], index: 15, kind: input, shape index: {}]
  %s16 = inlined_call_operand.hbm [shape: f32[32,32], index: 16, kind: input, shape index: {}]
  %s17 = inlined_call_operand.hbm [shape: f32[1,32], index: 17, kind: input, shape index: {}]
  %s18 = inlined_call_operand.vmem [shape: f32[32,8], index: 18, kind: input, shape index: {}]
  %s19 = inlined_call_operand.hbm [shape: f32[1,8], index: 19, kind: input, shape index: {}]
  %s20 = inlined_call_operand.vmem [shape: f32[256,128], index: 20, kind: output, shape index: {}]
  %s21 = sld [smem:[#allocation0]]
  $region145: #{attrnn_forward.1} parent=0
    _
  %s23 = ssub.s32 1, %s21
  %s24 = scalar_select 0, %s23, %s21
  $region1: #{attrnn_forward.1} parent=0
    #allocation2 [shape = 'u8[131072]{0}', space=vmem, size = 0x20000, scoped, tag = 'input window, operand 2, single buffered']
    #allocation3 [shape = 's32[2]{0}', space=sflag, size = 0x8, scoped, tag = 'scoped memory for attrnn_forward.1']
    #allocation4 [shape = 'u8[131072]{0}', space=vmem, size = 0x20000, scoped, tag = 'input window, operand 3, single buffered']
    #allocation5 [shape = 's32[1]{0}', space=sflag, size = 0x4, scoped, tag = 'scoped memory for attrnn_forward.1']
    #allocation6 [shape = 'u8[16384]{0}', space=vmem, size = 0x4000, scoped, tag = 'input window, operand 11, single buffered']
    #allocation7 [shape = 'u8[16384]{0}', space=vmem, size = 0x4000, scoped, tag = 'input window, operand 13, single buffered']
    #allocation8 [shape = 's32[1]{0}', space=sflag, size = 0x4, scoped, tag = 'scoped memory for attrnn_forward.1']
    #allocation9 [shape = 'u8[16384]{0}', space=vmem, size = 0x4000, scoped, tag = 'input window, operand 14, single buffered']
    #allocation10 [shape = 'u8[16384]{0}', space=vmem, size = 0x4000, scoped, tag = 'input window, operand 16, single buffered']
    #allocation11 [shape = 's32[1]{0}', space=sflag, size = 0x4, scoped, tag = 'scoped memory for attrnn_forward.1']
    #allocation12 [shape = 'u8[512]{0}', space=vmem, size = 0x400, scoped, tag = 'input window, operand 17, single buffered']
    #allocation13 [shape = 'u8[512]{0}', space=vmem, size = 0x400, scoped, tag = 'input window, operand 19, single buffered']
    #allocation14 [shape = 's32[1]{0}', space=sflag, size = 0x4, scoped, tag = 'scoped memory for attrnn_forward.1']
    %25 = vsyncpa [#allocation3], 0
    %26 = vsyncpa [#allocation5], 0
    %27 = vsyncpa [#allocation8], 0
    %28 = vsyncpa [#allocation11], 0
    %29 = vsyncpa [#allocation14], 0
    loop: start=0, step=1, limit=4
    $region2: #{attrnn_forward.1} parent=1 // loop_pre_header
      _
    $region3: #{attrnn_forward.1} parent=1 // loop_header
      %s31 = sphi 0, %s35
      %p32 = scmp.ge.s32.totalorder %s31, 4
      %s41 = sphi 0, %s43
      %s44 = sphi 0, %s41
      %s45 = sphi 0, %s44
      %s61 = sphi 0, %s45
      %s67 = sphi 0, %s69
      %s70 = sphi 0, %s67
      %s71 = sphi 0, %s70
      %s87 = sphi 0, %s71
      %s91 = sphi 0, %s91
      %s93 = sphi 0, %s91
      %s94 = sphi 0, %s93
      %s108 = sphi 0, %s94
      %s112 = sphi 0, %s112
      %s114 = sphi 0, %s112
      %s115 = sphi 0, %s114
      %s129 = sphi 0, %s115
      %s133 = sphi 0, %s133
      %s135 = sphi 0, %s133
      %s136 = sphi 0, %s135
      %s150 = sphi 0, %s136
      %s154 = sphi 0, %s154
      %s156 = sphi 0, %s154
      %s157 = sphi 0, %s156
      %s171 = sphi 0, %s157
      %s175 = sphi 0, %s175
      %s177 = sphi 0, %s175
      %s178 = sphi 0, %s177
      %s192 = sphi 0, %s178
      %s196 = sphi 0, %s196
      %s198 = sphi 0, %s196
      %s199 = sphi 0, %s198
      %s213 = sphi 0, %s199
      %s217 = sphi 0, %s217
      %s219 = sphi 0, %s217
      %s220 = sphi 0, %s219
      %s234 = sphi 0, %s220
      %s238 = sphi 0, %s238
      %s240 = sphi 0, %s238
      %s241 = sphi 0, %s240
      %s255 = sphi 0, %s241
      %s259 = sphi 0, %s259
      %s261 = sphi 0, %s259
      %s262 = sphi 0, %s261
      %s276 = sphi 0, %s262
      %s280 = sphi 0, %s280
      %s282 = sphi 0, %s280
      %s283 = sphi 0, %s282
      %s297 = sphi 0, %s283
      %s301 = sphi 0, %s301
      %s303 = sphi 0, %s301
      %s304 = sphi 0, %s303
      %s318 = sphi 0, %s304
      %s322 = sphi 0, %s322
      %s324 = sphi 0, %s322
      %s325 = sphi 0, %s324
      %s339 = sphi 0, %s325
      %s343 = sphi 0, %s343
      %s345 = sphi 0, %s343
      %s346 = sphi 0, %s345
      %s360 = sphi 0, %s346
      %s364 = sphi 0, %s364
      %s366 = sphi 0, %s364
      %s367 = sphi 0, %s366
      %s381 = sphi 0, %s367
      %s385 = sphi 0, %s385
      %s387 = sphi 0, %s385
      %s388 = sphi 0, %s387
      %s402 = sphi 0, %s388
      %s406 = sphi 0, %s406
      %s408 = sphi 0, %s406
      %s409 = sphi 0, %s408
      %s423 = sphi 0, %s409
      %s427 = sphi 0, %s427
      %s429 = sphi 0, %s427
      %s430 = sphi 0, %s429
      %s444 = sphi 0, %s430
      %s448 = sphi 0, %s448
      %s450 = sphi 0, %s448
      %s451 = sphi 0, %s450
      %s465 = sphi 0, %s451
      %s471 = sphi 0, %s473
      %s474 = sphi 0, %s471
      %s475 = sphi 0, %s474
      %s491 = sphi 0, %s475
    $region4: #{attrnn_forward.1} parent=1 // loop_header_branch
      %34 = sbr.rel (%p32) target = $region8
    $region5: #{attrnn_forward.1} parent=1 // loop_body
      %s36 = ssub.s32 %s31, 1
      %s37 = ssub.s32 %s31, 2
      %s38 = sadd.s32 %s31, 1
      %s39 = ssub.s32 %s31, %s38
      %p40 = scmp.eq.s32.totalorder %s39, 0
      %s42 = sadd.s32 %s41, 1
      %s43 = scalar_select %p40, %s41, %s42
      %p46 = pneg %p40
      %p47 = scmp.eq.s32.totalorder %s31, 1
      %p48 = por %p46, %p47
      %p49 = scmp.ne.s32.totalorder %s41, %s44
      %p50 = scmp.eq.s32.totalorder %s31, 0
      %p51 = por %p49, %p50
      %p52 = scmp.ne.s32.totalorder %s41, %s44
      %p53 = scmp.eq.s32.totalorder %s36, 1
      %p54 = por %p52, %p53
      %p55 = scmp.ne.s32.totalorder %s44, %s45
      %p56 = scmp.eq.s32.totalorder %s36, 0
      %p57 = por %p55, %p56
      %p58 = scmp.ne.s32.totalorder %s44, %s45
      %p59 = scmp.eq.s32.totalorder %s37, 1
      %p60 = por %p58, %p59
      %p62 = scmp.ne.s32.totalorder %s45, %s61
      %p63 = scmp.eq.s32.totalorder %s37, 0
      %p64 = por %p62, %p63
      %s65 = ssub.s32 %s31, %s38
      %p66 = scmp.eq.s32.totalorder %s65, 0
      %s68 = sadd.s32 %s67, 1
      %s69 = scalar_select %p66, %s67, %s68
      %p72 = pneg %p66
      %p73 = scmp.eq.s32.totalorder %s31, 1
      %p74 = por %p72, %p73
      %p75 = scmp.ne.s32.totalorder %s67, %s70
      %p76 = scmp.eq.s32.totalorder %s31, 0
      %p77 = por %p75, %p76
      %p78 = scmp.ne.s32.totalorder %s67, %s70
      %p79 = scmp.eq.s32.totalorder %s36, 1
      %p80 = por %p78, %p79
      %p81 = scmp.ne.s32.totalorder %s70, %s71
      %p82 = scmp.eq.s32.totalorder %s36, 0
      %p83 = por %p81, %p82
      %p84 = scmp.ne.s32.totalorder %s70, %s71
      %p85 = scmp.eq.s32.totalorder %s37, 1
      %p86 = por %p84, %p85
      %p88 = scmp.ne.s32.totalorder %s71, %s87
      %p89 = scmp.eq.s32.totalorder %s37, 0
      %p90 = por %p88, %p89
      %s92 = sadd.s32 %s91, 1
      %p95 = scmp.eq.s32.totalorder %s31, 1
      %p96 = scmp.ne.s32.totalorder %s91, %s93
      %p97 = scmp.eq.s32.totalorder %s31, 0
      %p98 = por %p96, %p97
      %p99 = scmp.ne.s32.totalorder %s91, %s93
      %p100 = scmp.eq.s32.totalorder %s36, 1
      %p101 = por %p99, %p100
      %p102 = scmp.ne.s32.totalorder %s93, %s94
      %p103 = scmp.eq.s32.totalorder %s36, 0
      %p104 = por %p102, %p103
      %p105 = scmp.ne.s32.totalorder %s93, %s94
      %p106 = scmp.eq.s32.totalorder %s37, 1
      %p107 = por %p105, %p106
      %p109 = scmp.ne.s32.totalorder %s94, %s108
      %p110 = scmp.eq.s32.totalorder %s37, 0
      %p111 = por %p109, %p110
      %s113 = sadd.s32 %s112, 1
      %p116 = scmp.eq.s32.totalorder %s31, 1
      %p117 = scmp.ne.s32.totalorder %s112, %s114
      %p118 = scmp.eq.s32.totalorder %s31, 0
      %p119 = por %p117, %p118
      %p120 = scmp.ne.s32.totalorder %s112, %s114
      %p121 = scmp.eq.s32.totalorder %s36, 1
      %p122 = por %p120, %p121
      %p123 = scmp.ne.s32.totalorder %s114, %s115
      %p124 = scmp.eq.s32.totalorder %s36, 0
      %p125 = por %p123, %p124
      %p126 = scmp.ne.s32.totalorder %s114, %s115
      %p127 = scmp.eq.s32.totalorder %s37, 1
      %p128 = por %p126, %p127
      %p130 = scmp.ne.s32.totalorder %s115, %s129
      %p131 = scmp.eq.s32.totalorder %s37, 0
      %p132 = por %p130, %p131
      %s134 = sadd.s32 %s133, 1
      %p137 = scmp.eq.s32.totalorder %s31, 1
      %p138 = scmp.ne.s32.totalorder %s133, %s135
      %p139 = scmp.eq.s32.totalorder %s31, 0
      %p140 = por %p138, %p139
      %p141 = scmp.ne.s32.totalorder %s133, %s135
      %p142 = scmp.eq.s32.totalorder %s36, 1
      %p143 = por %p141, %p142
      %p144 = scmp.ne.s32.totalorder %s135, %s136
      %p145 = scmp.eq.s32.totalorder %s36, 0
      %p146 = por %p144, %p145
      %p147 = scmp.ne.s32.totalorder %s135, %s136
      %p148 = scmp.eq.s32.totalorder %s37, 1
      %p149 = por %p147, %p148
      %p151 = scmp.ne.s32.totalorder %s136, %s150
      %p152 = scmp.eq.s32.totalorder %s37, 0
      %p153 = por %p151, %p152
      %s155 = sadd.s32 %s154, 1
      %p158 = scmp.eq.s32.totalorder %s31, 1
      %p159 = scmp.ne.s32.totalorder %s154, %s156
      %p160 = scmp.eq.s32.totalorder %s31, 0
      %p161 = por %p159, %p160
      %p162 = scmp.ne.s32.totalorder %s154, %s156
      %p163 = scmp.eq.s32.totalorder %s36, 1
      %p164 = por %p162, %p163
      %p165 = scmp.ne.s32.totalorder %s156, %s157
      %p166 = scmp.eq.s32.totalorder %s36, 0
      %p167 = por %p165, %p166
      %p168 = scmp.ne.s32.totalorder %s156, %s157
      %p169 = scmp.eq.s32.totalorder %s37, 1
      %p170 = por %p168, %p169
      %p172 = scmp.ne.s32.totalorder %s157, %s171
      %p173 = scmp.eq.s32.totalorder %s37, 0
      %p174 = por %p172, %p173
      %s176 = sadd.s32 %s175, 1
      %p179 = scmp.eq.s32.totalorder %s31, 1
      %p180 = scmp.ne.s32.totalorder %s175, %s177
      %p181 = scmp.eq.s32.totalorder %s31, 0
      %p182 = por %p180, %p181
      %p183 = scmp.ne.s32.totalorder %s175, %s177
      %p184 = scmp.eq.s32.totalorder %s36, 1
      %p185 = por %p183, %p184
      %p186 = scmp.ne.s32.totalorder %s177, %s178
      %p187 = scmp.eq.s32.totalorder %s36, 0
      %p188 = por %p186, %p187
      %p189 = scmp.ne.s32.totalorder %s177, %s178
      %p190 = scmp.eq.s32.totalorder %s37, 1
      %p191 = por %p189, %p190
      %p193 = scmp.ne.s32.totalorder %s178, %s192
      %p194 = scmp.eq.s32.totalorder %s37, 0
      %p195 = por %p193, %p194
      %s197 = sadd.s32 %s196, 1
      %p200 = scmp.eq.s32.totalorder %s31, 1
      %p201 = scmp.ne.s32.totalorder %s196, %s198
      %p202 = scmp.eq.s32.totalorder %s31, 0
      %p203 = por %p201, %p202
      %p204 = scmp.ne.s32.totalorder %s196, %s198
      %p205 = scmp.eq.s32.totalorder %s36, 1
      %p206 = por %p204, %p205
      %p207 = scmp.ne.s32.totalorder %s198, %s199
      %p208 = scmp.eq.s32.totalorder %s36, 0
      %p209 = por %p207, %p208
      %p210 = scmp.ne.s32.totalorder %s198, %s199
      %p211 = scmp.eq.s32.totalorder %s37, 1
      %p212 = por %p210, %p211
      %p214 = scmp.ne.s32.totalorder %s199, %s213
      %p215 = scmp.eq.s32.totalorder %s37, 0
      %p216 = por %p214, %p215
      %s218 = sadd.s32 %s217, 1
      %p221 = scmp.eq.s32.totalorder %s31, 1
      %p222 = scmp.ne.s32.totalorder %s217, %s219
      %p223 = scmp.eq.s32.totalorder %s31, 0
      %p224 = por %p222, %p223
      %p225 = scmp.ne.s32.totalorder %s217, %s219
      %p226 = scmp.eq.s32.totalorder %s36, 1
      %p227 = por %p225, %p226
      %p228 = scmp.ne.s32.totalorder %s219, %s220
      %p229 = scmp.eq.s32.totalorder %s36, 0
      %p230 = por %p228, %p229
      %p231 = scmp.ne.s32.totalorder %s219, %s220
      %p232 = scmp.eq.s32.totalorder %s37, 1
      %p233 = por %p231, %p232
      %p235 = scmp.ne.s32.totalorder %s220, %s234
      %p236 = scmp.eq.s32.totalorder %s37, 0
      %p237 = por %p235, %p236
      %s239 = sadd.s32 %s238, 1
      %p242 = scmp.eq.s32.totalorder %s31, 1
      %p243 = scmp.ne.s32.totalorder %s238, %s240
      %p244 = scmp.eq.s32.totalorder %s31, 0
      %p245 = por %p243, %p244
      %p246 = scmp.ne.s32.totalorder %s238, %s240
      %p247 = scmp.eq.s32.totalorder %s36, 1
      %p248 = por %p246, %p247
      %p249 = scmp.ne.s32.totalorder %s240, %s241
      %p250 = scmp.eq.s32.totalorder %s36, 0
      %p251 = por %p249, %p250
      %p252 = scmp.ne.s32.totalorder %s240, %s241
      %p253 = scmp.eq.s32.totalorder %s37, 1
      %p254 = por %p252, %p253
      %p256 = scmp.ne.s32.totalorder %s241, %s255
      %p257 = scmp.eq.s32.totalorder %s37, 0
      %p258 = por %p256, %p257
      %s260 = sadd.s32 %s259, 1
      %p263 = scmp.eq.s32.totalorder %s31, 1
      %p264 = scmp.ne.s32.totalorder %s259, %s261
      %p265 = scmp.eq.s32.totalorder %s31, 0
      %p266 = por %p264, %p265
      %p267 = scmp.ne.s32.totalorder %s259, %s261
      %p268 = scmp.eq.s32.totalorder %s36, 1
      %p269 = por %p267, %p268
      %p270 = scmp.ne.s32.totalorder %s261, %s262
      %p271 = scmp.eq.s32.totalorder %s36, 0
      %p272 = por %p270, %p271
      %p273 = scmp.ne.s32.totalorder %s261, %s262
      %p274 = scmp.eq.s32.totalorder %s37, 1
      %p275 = por %p273, %p274
      %p277 = scmp.ne.s32.totalorder %s262, %s276
      %p278 = scmp.eq.s32.totalorder %s37, 0
      %p279 = por %p277, %p278
      %s281 = sadd.s32 %s280, 1
      %p284 = scmp.eq.s32.totalorder %s31, 1
      %p285 = scmp.ne.s32.totalorder %s280, %s282
      %p286 = scmp.eq.s32.totalorder %s31, 0
      %p287 = por %p285, %p286
      %p288 = scmp.ne.s32.totalorder %s280, %s282
      %p289 = scmp.eq.s32.totalorder %s36, 1
      %p290 = por %p288, %p289
      %p291 = scmp.ne.s32.totalorder %s282, %s283
      %p292 = scmp.eq.s32.totalorder %s36, 0
      %p293 = por %p291, %p292
      %p294 = scmp.ne.s32.totalorder %s282, %s283
      %p295 = scmp.eq.s32.totalorder %s37, 1
      %p296 = por %p294, %p295
      %p298 = scmp.ne.s32.totalorder %s283, %s297
      %p299 = scmp.eq.s32.totalorder %s37, 0
      %p300 = por %p298, %p299
      %s302 = sadd.s32 %s301, 1
      %p305 = scmp.eq.s32.totalorder %s31, 1
      %p306 = scmp.ne.s32.totalorder %s301, %s303
      %p307 = scmp.eq.s32.totalorder %s31, 0
      %p308 = por %p306, %p307
      %p309 = scmp.ne.s32.totalorder %s301, %s303
      %p310 = scmp.eq.s32.totalorder %s36, 1
      %p311 = por %p309, %p310
      %p312 = scmp.ne.s32.totalorder %s303, %s304
      %p313 = scmp.eq.s32.totalorder %s36, 0
      %p314 = por %p312, %p313
      %p315 = scmp.ne.s32.totalorder %s303, %s304
      %p316 = scmp.eq.s32.totalorder %s37, 1
      %p317 = por %p315, %p316
      %p319 = scmp.ne.s32.totalorder %s304, %s318
      %p320 = scmp.eq.s32.totalorder %s37, 0
      %p321 = por %p319, %p320
      %s323 = sadd.s32 %s322, 1
      %p326 = scmp.eq.s32.totalorder %s31, 1
      %p327 = scmp.ne.s32.totalorder %s322, %s324
      %p328 = scmp.eq.s32.totalorder %s31, 0
      %p329 = por %p327, %p328
      %p330 = scmp.ne.s32.totalorder %s322, %s324
      %p331 = scmp.eq.s32.totalorder %s36, 1
      %p332 = por %p330, %p331
      %p333 = scmp.ne.s32.totalorder %s324, %s325
      %p334 = scmp.eq.s32.totalorder %s36, 0
      %p335 = por %p333, %p334
      %p336 = scmp.ne.s32.totalorder %s324, %s325
      %p337 = scmp.eq.s32.totalorder %s37, 1
      %p338 = por %p336, %p337
      %p340 = scmp.ne.s32.totalorder %s325, %s339
      %p341 = scmp.eq.s32.totalorder %s37, 0
      %p342 = por %p340, %p341
      %s344 = sadd.s32 %s343, 1
      %p347 = scmp.eq.s32.totalorder %s31, 1
      %p348 = scmp.ne.s32.totalorder %s343, %s345
      %p349 = scmp.eq.s32.totalorder %s31, 0
      %p350 = por %p348, %p349
      %p351 = scmp.ne.s32.totalorder %s343, %s345
      %p352 = scmp.eq.s32.totalorder %s36, 1
      %p353 = por %p351, %p352
      %p354 = scmp.ne.s32.totalorder %s345, %s346
      %p355 = scmp.eq.s32.totalorder %s36, 0
      %p356 = por %p354, %p355
      %p357 = scmp.ne.s32.totalorder %s345, %s346
      %p358 = scmp.eq.s32.totalorder %s37, 1
      %p359 = por %p357, %p358
      %p361 = scmp.ne.s32.totalorder %s346, %s360
      %p362 = scmp.eq.s32.totalorder %s37, 0
      %p363 = por %p361, %p362
      %s365 = sadd.s32 %s364, 1
      %p368 = scmp.eq.s32.totalorder %s31, 1
      %p369 = scmp.ne.s32.totalorder %s364, %s366
      %p370 = scmp.eq.s32.totalorder %s31, 0
      %p371 = por %p369, %p370
      %p372 = scmp.ne.s32.totalorder %s364, %s366
      %p373 = scmp.eq.s32.totalorder %s36, 1
      %p374 = por %p372, %p373
      %p375 = scmp.ne.s32.totalorder %s366, %s367
      %p376 = scmp.eq.s32.totalorder %s36, 0
      %p377 = por %p375, %p376
      %p378 = scmp.ne.s32.totalorder %s366, %s367
      %p379 = scmp.eq.s32.totalorder %s37, 1
      %p380 = por %p378, %p379
      %p382 = scmp.ne.s32.totalorder %s367, %s381
      %p383 = scmp.eq.s32.totalorder %s37, 0
      %p384 = por %p382, %p383
      %s386 = sadd.s32 %s385, 1
      %p389 = scmp.eq.s32.totalorder %s31, 1
      %p390 = scmp.ne.s32.totalorder %s385, %s387
      %p391 = scmp.eq.s32.totalorder %s31, 0
      %p392 = por %p390, %p391
      %p393 = scmp.ne.s32.totalorder %s385, %s387
      %p394 = scmp.eq.s32.totalorder %s36, 1
      %p395 = por %p393, %p394
      %p396 = scmp.ne.s32.totalorder %s387, %s388
      %p397 = scmp.eq.s32.totalorder %s36, 0
      %p398 = por %p396, %p397
      %p399 = scmp.ne.s32.totalorder %s387, %s388
      %p400 = scmp.eq.s32.totalorder %s37, 1
      %p401 = por %p399, %p400
      %p403 = scmp.ne.s32.totalorder %s388, %s402
      %p404 = scmp.eq.s32.totalorder %s37, 0
      %p405 = por %p403, %p404
      %s407 = sadd.s32 %s406, 1
      %p410 = scmp.eq.s32.totalorder %s31, 1
      %p411 = scmp.ne.s32.totalorder %s406, %s408
      %p412 = scmp.eq.s32.totalorder %s31, 0
      %p413 = por %p411, %p412
      %p414 = scmp.ne.s32.totalorder %s406, %s408
      %p415 = scmp.eq.s32.totalorder %s36, 1
      %p416 = por %p414, %p415
      %p417 = scmp.ne.s32.totalorder %s408, %s409
      %p418 = scmp.eq.s32.totalorder %s36, 0
      %p419 = por %p417, %p418
      %p420 = scmp.ne.s32.totalorder %s408, %s409
      %p421 = scmp.eq.s32.totalorder %s37, 1
      %p422 = por %p420, %p421
      %p424 = scmp.ne.s32.totalorder %s409, %s423
      %p425 = scmp.eq.s32.totalorder %s37, 0
      %p426 = por %p424, %p425
      %s428 = sadd.s32 %s427, 1
      %p431 = scmp.eq.s32.totalorder %s31, 1
      %p432 = scmp.ne.s32.totalorder %s427, %s429
      %p433 = scmp.eq.s32.totalorder %s31, 0
      %p434 = por %p432, %p433
      %p435 = scmp.ne.s32.totalorder %s427, %s429
      %p436 = scmp.eq.s32.totalorder %s36, 1
      %p437 = por %p435, %p436
      %p438 = scmp.ne.s32.totalorder %s429, %s430
      %p439 = scmp.eq.s32.totalorder %s36, 0
      %p440 = por %p438, %p439
      %p441 = scmp.ne.s32.totalorder %s429, %s430
      %p442 = scmp.eq.s32.totalorder %s37, 1
      %p443 = por %p441, %p442
      %p445 = scmp.ne.s32.totalorder %s430, %s444
      %p446 = scmp.eq.s32.totalorder %s37, 0
      %p447 = por %p445, %p446
      %s449 = sadd.s32 %s448, 1
      %p452 = scmp.eq.s32.totalorder %s31, 1
      %p453 = scmp.ne.s32.totalorder %s448, %s450
      %p454 = scmp.eq.s32.totalorder %s31, 0
      %p455 = por %p453, %p454
      %p456 = scmp.ne.s32.totalorder %s448, %s450
      %p457 = scmp.eq.s32.totalorder %s36, 1
      %p458 = por %p456, %p457
      %p459 = scmp.ne.s32.totalorder %s450, %s451
      %p460 = scmp.eq.s32.totalorder %s36, 0
      %p461 = por %p459, %p460
      %p462 = scmp.ne.s32.totalorder %s450, %s451
      %p463 = scmp.eq.s32.totalorder %s37, 1
      %p464 = por %p462, %p463
      %p466 = scmp.ne.s32.totalorder %s451, %s465
      %p467 = scmp.eq.s32.totalorder %s37, 0
      %p468 = por %p466, %p467
      %s469 = ssub.s32 %s31, %s38
      %p470 = scmp.eq.s32.totalorder %s469, 0
      %s472 = sadd.s32 %s471, 1
      %s473 = scalar_select %p470, %s471, %s472
      %p476 = pneg %p470
      %p477 = scmp.eq.s32.totalorder %s31, 1
      %p478 = por %p476, %p477
      %p479 = scmp.ne.s32.totalorder %s471, %s474
      %p480 = scmp.eq.s32.totalorder %s31, 0
      %p481 = por %p479, %p480
      %p482 = scmp.ne.s32.totalorder %s471, %s474
      %p483 = scmp.eq.s32.totalorder %s36, 1
      %p484 = por %p482, %p483
      %p485 = scmp.ne.s32.totalorder %s474, %s475
      %p486 = scmp.eq.s32.totalorder %s36, 0
      %p487 = por %p485, %p486
      %p488 = scmp.ne.s32.totalorder %s474, %s475
      %p489 = scmp.eq.s32.totalorder %s37, 1
      %p490 = por %p488, %p489
      %p492 = scmp.ne.s32.totalorder %s475, %s491
      %p493 = scmp.eq.s32.totalorder %s37, 0
      %p494 = por %p492, %p493
      %p495 = scmp.le.s32.totalorder 1, %s31
      %p496 = scmp.lt.s32.totalorder %s31, 3
      %p497 = pnand %p495, %p496
      %p498 = pneg %p497
      // Predicated region
      $region9: #{attrnn_forward.1} parent=5 // pred_check
        _
      $region10: #{attrnn_forward.1} parent=5 // pred_check_branch
        %500 = sbr.rel (%p497) target = $region12
      $region11: #{attrnn_forward.1} parent=5 // pred_region
        %s501 = ssub.s32 %s31, 1
        // Predicated region
        $region13: #{attrnn_forward.1} parent=11 // pred_check
          %p502 = pneg %p104
        $region14: #{attrnn_forward.1} parent=11 // pred_check_branch
          %504 = sbr.rel (%p502) target = $region16
        $region15: #{attrnn_forward.1} parent=11 // pred_region
          %s506 = ssub.s32 4096, 4096
          %507 = vsyncadd [#allocation3], %s506
          %s508 = sshll.u32 [#allocation2], 4
          %s509 = int_to_ptr.vmem [resolvable:$true] %s508
          %514 = dma.hbm_to_vmem [thread:$0]  %s2, 4096, %s509, [#allocation3], 128, 128, 8
        $region16: #{attrnn_forward.1} parent=11 // pred_fallthru
          _
        // Predicated region
        $region17: #{attrnn_forward.1} parent=11 // pred_check
          %p515 = pneg %p125
        $region18: #{attrnn_forward.1} parent=11 // pred_check_branch
          %517 = sbr.rel (%p515) target = $region20
        $region19: #{attrnn_forward.1} parent=11 // pred_region
          %s519 = ssub.s32 4096, 4096
          %520 = vsyncadd [#allocation5], %s519
          %s521 = sshll.u32 [#allocation4], 4
          %s522 = int_to_ptr.vmem [resolvable:$true] %s521
          %527 = dma.hbm_to_vmem [thread:$0]  %s3, 4096, %s522, [#allocation5], 128, 128, 8
        $region20: #{attrnn_forward.1} parent=11 // pred_fallthru
          _
        // Predicated region
        $region21: #{attrnn_forward.1} parent=11 // pred_check
          %p528 = pneg %p146
        $region22: #{attrnn_forward.1} parent=11 // pred_check_branch
          %530 = sbr.rel (%p528) target = $region24
        $region23: #{attrnn_forward.1} parent=11 // pred_region
          _
        $region24: #{attrnn_forward.1} parent=11 // pred_fallthru
          _
        // Predicated region
        $region25: #{attrnn_forward.1} parent=11 // pred_check
          %p531 = pneg %p167
        $region26: #{attrnn_forward.1} parent=11 // pred_check_branch
          %533 = sbr.rel (%p531) target = $region28
        $region27: #{attrnn_forward.1} parent=11 // pred_region
          _
        $region28: #{attrnn_forward.1} parent=11 // pred_fallthru
          _
        // Predicated region
        $region29: #{attrnn_forward.1} parent=11 // pred_check
          %p534 = pneg %p188
        $region30: #{attrnn_forward.1} parent=11 // pred_check_branch
          %536 = sbr.rel (%p534) target = $region32
        $region31: #{attrnn_forward.1} parent=11 // pred_region
          _
        $region32: #{attrnn_forward.1} parent=11 // pred_fallthru
          _
        // Predicated region
        $region33: #{attrnn_forward.1} parent=11 // pred_check
          %p537 = pneg %p209
        $region34: #{attrnn_forward.1} parent=11 // pred_check_branch
          %539 = sbr.rel (%p537) target = $region36
        $region35: #{attrnn_forward.1} parent=11 // pred_region
          _
        $region36: #{attrnn_forward.1} parent=11 // pred_fallthru
          _
        // Predicated region
        $region37: #{attrnn_forward.1} parent=11 // pred_check
          %p540 = pneg %p230
        $region38: #{attrnn_forward.1} parent=11 // pred_check_branch
          %542 = sbr.rel (%p540) target = $region40
        $region39: #{attrnn_forward.1} parent=11 // pred_region
          _
        $region40: #{attrnn_forward.1} parent=11 // pred_fallthru
          _
        // Predicated region
        $region41: #{attrnn_forward.1} parent=11 // pred_check
          %p543 = pneg %p251
        $region42: #{attrnn_forward.1} parent=11 // pred_check_branch
          %545 = sbr.rel (%p543) target = $region44
        $region43: #{attrnn_forward.1} parent=11 // pred_region
          _
        $region44: #{attrnn_forward.1} parent=11 // pred_fallthru
          _
        // Predicated region
        $region45: #{attrnn_forward.1} parent=11 // pred_check
          %p546 = pneg %p272
        $region46: #{attrnn_forward.1} parent=11 // pred_check_branch
          %548 = sbr.rel (%p546) target = $region48
        $region47: #{attrnn_forward.1} parent=11 // pred_region
          _
        $region48: #{attrnn_forward.1} parent=11 // pred_fallthru
          _
        // Predicated region
        $region49: #{attrnn_forward.1} parent=11 // pred_check
          %p549 = pneg %p293
        $region50: #{attrnn_forward.1} parent=11 // pred_check_branch
          %551 = sbr.rel (%p549) target = $region52
        $region51: #{attrnn_forward.1} parent=11 // pred_region
          %s553 = ssub.s32 512, 512
          %554 = vsyncadd [#allocation5], %s553
          %s555 = sshll.u32 [#allocation6], 4
          %s556 = int_to_ptr.vmem [resolvable:$true] %s555
          %561 = dma.hbm_to_vmem [thread:$0]  %s11, 512, %s556, [#allocation5], 128, 128, 8
        $region52: #{attrnn_forward.1} parent=11 // pred_fallthru
          _
        // Predicated region
        $region53: #{attrnn_forward.1} parent=11 // pred_check
          %p562 = pneg %p314
        $region54: #{attrnn_forward.1} parent=11 // pred_check_branch
          %564 = sbr.rel (%p562) target = $region56
        $region55: #{attrnn_forward.1} parent=11 // pred_region
          _
        $region56: #{attrnn_forward.1} parent=11 // pred_fallthru
          _
        // Predicated region
        $region57: #{attrnn_forward.1} parent=11 // pred_check
          %p565 = pneg %p335
        $region58: #{attrnn_forward.1} parent=11 // pred_check_branch
          %567 = sbr.rel (%p565) target = $region60
        $region59: #{attrnn_forward.1} parent=11 // pred_region
          %s569 = ssub.s32 512, 512
          %570 = vsyncadd [#allocation8], %s569
          %s571 = sshll.u32 [#allocation7], 4
          %s572 = int_to_ptr.vmem [resolvable:$true] %s571
          %577 = dma.hbm_to_vmem [thread:$0]  %s13, 512, %s572, [#allocation8], 128, 128, 8
        $region60: #{attrnn_forward.1} parent=11 // pred_fallthru
          _
        // Predicated region
        $region61: #{attrnn_forward.1} parent=11 // pred_check
          %p578 = pneg %p356
        $region62: #{attrnn_forward.1} parent=11 // pred_check_branch
          %580 = sbr.rel (%p578) target = $region64
        $region63: #{attrnn_forward.1} parent=11 // pred_region
          %s582 = ssub.s32 512, 512
          %583 = vsyncadd [#allocation8], %s582
          %s584 = sshll.u32 [#allocation9], 4
          %s585 = int_to_ptr.vmem [resolvable:$true] %s584
          %590 = dma.hbm_to_vmem [thread:$0]  %s14, 512, %s585, [#allocation8], 128, 128, 8
        $region64: #{attrnn_forward.1} parent=11 // pred_fallthru
          _
        // Predicated region
        $region65: #{attrnn_forward.1} parent=11 // pred_check
          %p591 = pneg %p377
        $region66: #{attrnn_forward.1} parent=11 // pred_check_branch
          %593 = sbr.rel (%p591) target = $region68
        $region67: #{attrnn_forward.1} parent=11 // pred_region
          _
        $region68: #{attrnn_forward.1} parent=11 // pred_fallthru
          _
        // Predicated region
        $region69: #{attrnn_forward.1} parent=11 // pred_check
          %p594 = pneg %p398
        $region70: #{attrnn_forward.1} parent=11 // pred_check_branch
          %596 = sbr.rel (%p594) target = $region72
        $region71: #{attrnn_forward.1} parent=11 // pred_region
          %s598 = ssub.s32 512, 512
          %599 = vsyncadd [#allocation11], %s598
          %s600 = sshll.u32 [#allocation10], 4
          %s601 = int_to_ptr.vmem [resolvable:$true] %s600
          %606 = dma.hbm_to_vmem [thread:$0]  %s16, 512, %s601, [#allocation11], 128, 128, 8
        $region72: #{attrnn_forward.1} parent=11 // pred_fallthru
          _
        // Predicated region
        $region73: #{attrnn_forward.1} parent=11 // pred_check
          %p607 = pneg %p419
        $region74: #{attrnn_forward.1} parent=11 // pred_check_branch
          %609 = sbr.rel (%p607) target = $region76
        $region75: #{attrnn_forward.1} parent=11 // pred_region
          %s611 = ssub.s32 16, 16
          %612 = vsyncadd [#allocation11], %s611
          %s614 = sshll.u32 [#allocation12], 4
          %s615 = int_to_ptr.vmem [resolvable:$true] %s614
          %617 = dma.hbm_to_vmem [thread:$0]  %s17, 16, %s615, [#allocation11]
        $region76: #{attrnn_forward.1} parent=11 // pred_fallthru
          _
        // Predicated region
        $region77: #{attrnn_forward.1} parent=11 // pred_check
          %p618 = pneg %p440
        $region78: #{attrnn_forward.1} parent=11 // pred_check_branch
          %620 = sbr.rel (%p618) target = $region80
        $region79: #{attrnn_forward.1} parent=11 // pred_region
          _
        $region80: #{attrnn_forward.1} parent=11 // pred_fallthru
          _
        // Predicated region
        $region81: #{attrnn_forward.1} parent=11 // pred_check
          %p621 = pneg %p461
        $region82: #{attrnn_forward.1} parent=11 // pred_check_branch
          %623 = sbr.rel (%p621) target = $region84
        $region83: #{attrnn_forward.1} parent=11 // pred_region
          %s625 = ssub.s32 16, 16
          %626 = vsyncadd [#allocation14], %s625
          %s628 = sshll.u32 [#allocation13], 4
          %s629 = int_to_ptr.vmem [resolvable:$true] %s628
          %631 = dma.hbm_to_vmem [thread:$0]  %s19, 16, %s629, [#allocation14]
        $region84: #{attrnn_forward.1} parent=11 // pred_fallthru
          _
      $region12: #{attrnn_forward.1} parent=5 // pred_fallthru
        _
      %p632 = scmp.lt.s32.totalorder %s31, 2
      // Predicated region
      $region85: #{attrnn_forward.1} parent=5 // pred_check
        %p633 = pneg %p632
      $region86: #{attrnn_forward.1} parent=5 // pred_check_branch
        %635 = sbr.rel (%p633) target = $region88
      $region87: #{attrnn_forward.1} parent=5 // pred_region
        // Predicated region
        $region89: #{attrnn_forward.1} parent=87 // pred_check
          %p636 = pneg %p51
        $region90: #{attrnn_forward.1} parent=87 // pred_check_branch
          %638 = sbr.rel (%p636) target = $region92
        $region91: #{attrnn_forward.1} parent=87 // pred_region
          %s639 = smul.u32 16, %s31
          %p640 = scmp.lt.s32.totalorder %s639, 31
          %s641 = scalar_select %p640, %s639, 31
          %s642 = smul.addr %s641, 8
          %s643 = scalar_lea.vmem %s0, %s642
          %s644 = smul.u32 16, %s31
        $region92: #{attrnn_forward.1} parent=87 // pred_fallthru
          _
        // Predicated region
        $region93: #{attrnn_forward.1} parent=87 // pred_check
          %p645 = pneg %p77
        $region94: #{attrnn_forward.1} parent=87 // pred_check_branch
          %647 = sbr.rel (%p645) target = $region96
        $region95: #{attrnn_forward.1} parent=87 // pred_region
          %s648 = smul.u32 16, %s31
          %p649 = scmp.lt.s32.totalorder %s648, 31
          %s650 = scalar_select %p649, %s648, 31
          %s651 = smul.addr %s650, 8
          %s652 = scalar_lea.vmem %s1, %s651
          %s653 = smul.u32 16, %s31
        $region96: #{attrnn_forward.1} parent=87 // pred_fallthru
          _
      $region88: #{attrnn_forward.1} parent=5 // pred_fallthru
        _
      %p654 = scmp.le.s32.totalorder 1, %s31
      %p655 = scmp.lt.s32.totalorder %s31, 3
      %p656 = pnand %p654, %p655
      %p657 = pneg %p656
      // Predicated region
      $region97: #{attrnn_forward.1} parent=5 // pred_check
        _
      $region98: #{attrnn_forward.1} parent=5 // pred_check_branch
        %659 = sbr.rel (%p656) target = $region100
      $region99: #{attrnn_forward.1} parent=5 // pred_region
        %s660 = ssub.s32 %s31, 1
        // Predicated region
        $region101: #{attrnn_forward.1} parent=99 // pred_check
          %p661 = pneg %p104
        $region102: #{attrnn_forward.1} parent=99 // pred_check_branch
          %663 = sbr.rel (%p661) target = $region104
        $region103: #{attrnn_forward.1} parent=99 // pred_region
          %664 = dma.done [#allocation3], 4096
        $region104: #{attrnn_forward.1} parent=99 // pred_fallthru
          _
        // Predicated region
        $region105: #{attrnn_forward.1} parent=99 // pred_check
          %p665 = pneg %p125
        $region106: #{attrnn_forward.1} parent=99 // pred_check_branch
          %667 = sbr.rel (%p665) target = $region108
        $region107: #{attrnn_forward.1} parent=99 // pred_region
          %668 = dma.done [#allocation5], 4096
        $region108: #{attrnn_forward.1} parent=99 // pred_fallthru
          _
        // Predicated region
        $region109: #{attrnn_forward.1} parent=99 // pred_check
          %p669 = pneg %p293
        $region110: #{attrnn_forward.1} parent=99 // pred_check_branch
          %671 = sbr.rel (%p669) target = $region112
        $region111: #{attrnn_forward.1} parent=99 // pred_region
          %672 = dma.done [#allocation5], 512
        $region112: #{attrnn_forward.1} parent=99 // pred_fallthru
          _
        // Predicated region
        $region113: #{attrnn_forward.1} parent=99 // pred_check
          %p673 = pneg %p335
        $region114: #{attrnn_forward.1} parent=99 // pred_check_branch
          %675 = sbr.rel (%p673) target = $region116
        $region115: #{attrnn_forward.1} parent=99 // pred_region
          %676 = dma.done [#allocation8], 512
        $region116: #{attrnn_forward.1} parent=99 // pred_fallthru
          _
        // Predicated region
        $region117: #{attrnn_forward.1} parent=99 // pred_check
          %p677 = pneg %p356
        $region118: #{attrnn_forward.1} parent=99 // pred_check_branch
          %679 = sbr.rel (%p677) target = $region120
        $region119: #{attrnn_forward.1} parent=99 // pred_region
          %680 = dma.done [#allocation8], 512
        $region120: #{attrnn_forward.1} parent=99 // pred_fallthru
          _
        // Predicated region
        $region121: #{attrnn_forward.1} parent=99 // pred_check
          %p681 = pneg %p398
        $region122: #{attrnn_forward.1} parent=99 // pred_check_branch
          %683 = sbr.rel (%p681) target = $region124
        $region123: #{attrnn_forward.1} parent=99 // pred_region
          %684 = dma.done [#allocation11], 512
        $region124: #{attrnn_forward.1} parent=99 // pred_fallthru
          _
        // Predicated region
        $region125: #{attrnn_forward.1} parent=99 // pred_check
          %p685 = pneg %p419
        $region126: #{attrnn_forward.1} parent=99 // pred_check_branch
          %687 = sbr.rel (%p685) target = $region128
        $region127: #{attrnn_forward.1} parent=99 // pred_region
          %688 = dma.done [#allocation11], 16
        $region128: #{attrnn_forward.1} parent=99 // pred_fallthru
          _
        // Predicated region
        $region129: #{attrnn_forward.1} parent=99 // pred_check
          %p689 = pneg %p461
        $region130: #{attrnn_forward.1} parent=99 // pred_check_branch
          %691 = sbr.rel (%p689) target = $region132
        $region131: #{attrnn_forward.1} parent=99 // pred_region
          %692 = dma.done [#allocation14], 16
        $region132: #{attrnn_forward.1} parent=99 // pred_fallthru
          _
        %s693 = smul.u32 16, %s36
        %p694 = scmp.lt.s32.totalorder %s693, 31
        %s695 = scalar_select %p694, %s693, 31
        %s696 = smul.addr %s695, 8
        %s697 = scalar_lea.vmem %s0, %s696
        %p698 = pneg %p57
        %p699 = pneg %p54
        %s700 = smul.u32 16, %s36
        %p701 = scmp.lt.s32.totalorder %s700, 31
        %s702 = scalar_select %p701, %s700, 31
        %s703 = smul.addr %s702, 8
        %s704 = scalar_lea.vmem %s1, %s703
        %p705 = pneg %p83
        %p706 = pneg %p80
        %p707 = pneg %p104
        %p708 = pneg %p101
        %p709 = pneg %p125
        %p710 = pneg %p122
        %p711 = pneg %p146
        %p712 = pneg %p143
        %p713 = pneg %p167
        %p714 = pneg %p164
        %p715 = pneg %p188
        %p716 = pneg %p185
        %p717 = pneg %p209
        %p718 = pneg %p206
        %p719 = pneg %p230
        %p720 = pneg %p227
        %p721 = pneg %p251
        %p722 = pneg %p248
        %p723 = pneg %p272
        %p724 = pneg %p269
        %p725 = pneg %p293
        %p726 = pneg %p290
        %p727 = pneg %p314
        %p728 = pneg %p311
        %p729 = pneg %p335
        %p730 = pneg %p332
        %p731 = pneg %p356
        %p732 = pneg %p353
        %p733 = pneg %p377
        %p734 = pneg %p374
        %p735 = pneg %p398
        %p736 = pneg %p395
        %p737 = pneg %p419
        %p738 = pneg %p416
        %p739 = pneg %p440
        %p740 = pneg %p437
        %p741 = pneg %p461
        %p742 = pneg %p458
        %p743 = pneg %p487
        %p744 = pneg %p484
        %s745 = smul.u32 16, %s36
        %p746 = scmp.lt.s32.totalorder %s745, 31
        %s747 = scalar_select %p746, %s745, 31
        %s748 = smul.addr %s747, 8
        %s749 = scalar_lea.vmem %s20, %s748
        %s750 = smul.u32 16, %s36
        %p751 = scmp.lt.s32.totalorder %s750, 31
        %s752 = scalar_select %p751, %s750, 31
        %s753 = smul.addr %s752, 8
        %s754 = scalar_lea.vmem %s0, %s753
        %s755 = smul.u32 16, %s36
        %s756 = smul.u32 16, %s36
        %p757 = scmp.lt.s32.totalorder %s756, 31
        %s758 = scalar_select %p757, %s756, 31
        %s759 = smul.addr %s758, 8
        %s760 = scalar_lea.vmem %s1, %s759
        %s761 = smul.u32 16, %s36
        %s762 = smul.u32 16, %s36
        %p763 = scmp.lt.s32.totalorder %s762, 31
        %s764 = scalar_select %p763, %s762, 31
        %s765 = smul.addr %s764, 8
        %s766 = scalar_lea.vmem %s20, %s765
        %s767 = smul.u32 16, %s36
        %v768 = vld [vmem:[%s754] sm:$0xff]
        %v769 = vld [vmem:[%s754 + $0x8] sm:$0xff]
        %v770 = vld [vmem:[%s754 + $0x10] sm:$0xff]
        %v771 = vld [vmem:[%s754 + $0x18] sm:$0xff]
        %v772 = vld [vmem:[%s754 + $0x20] sm:$0xff]
        %v773 = vld [vmem:[%s754 + $0x28] sm:$0xff]
        %v774 = vld [vmem:[%s754 + $0x30] sm:$0xff]
        %v775 = vld [vmem:[%s754 + $0x38] sm:$0xff]
        %v776 = vld [vmem:[%s754 + $0x40] sm:$0xff]
        %v777 = vld [vmem:[%s754 + $0x48] sm:$0xff]
        %v778 = vld [vmem:[%s754 + $0x50] sm:$0xff]
        %v779 = vld [vmem:[%s754 + $0x58] sm:$0xff]
        %v780 = vld [vmem:[%s754 + $0x60] sm:$0xff]
        %v781 = vld [vmem:[%s754 + $0x68] sm:$0xff]
        %v782 = vld [vmem:[%s754 + $0x70] sm:$0xff]
        %v783 = vld [vmem:[%s754 + $0x78] sm:$0xff]
        %v784 = vld [vmem:[%s760] sm:$0xff]
        %v785 = vld [vmem:[%s760 + $0x8] sm:$0xff]
        %v786 = vld [vmem:[%s760 + $0x10] sm:$0xff]
        %v787 = vld [vmem:[%s760 + $0x18] sm:$0xff]
        %v788 = vld [vmem:[%s760 + $0x20] sm:$0xff]
        %v789 = vld [vmem:[%s760 + $0x28] sm:$0xff]
        %v790 = vld [vmem:[%s760 + $0x30] sm:$0xff]
        %v791 = vld [vmem:[%s760 + $0x38] sm:$0xff]
        %v792 = vld [vmem:[%s760 + $0x40] sm:$0xff]
        %v793 = vld [vmem:[%s760 + $0x48] sm:$0xff]
        %v794 = vld [vmem:[%s760 + $0x50] sm:$0xff]
        %v795 = vld [vmem:[%s760 + $0x58] sm:$0xff]
        %v796 = vld [vmem:[%s760 + $0x60] sm:$0xff]
        %v797 = vld [vmem:[%s760 + $0x68] sm:$0xff]
        %v798 = vld [vmem:[%s760 + $0x70] sm:$0xff]
        %v799 = vld [vmem:[%s760 + $0x78] sm:$0xff]
        %v800 = vld [vmem:[%s4] sm:$0xff]
        %v801 = vld [vmem:[%s4 + $0x8] sm:$0xff]
        %v802 = vld [vmem:[%s4 + $0x10] sm:$0xff]
        %v803 = vld [vmem:[%s4 + $0x18] sm:$0xff]
        %v804 = vld [vmem:[%s5] sm:$0x1]
        %v806 = vlaneseq
        %v807 = vshrl.u32 %v806, 7
        %v808 = vsub.s32 0, %v807
        %v809 = vrot.slane %v804, %v808
        %vm811 = vcmask 261120
        %v813 = vsel %vm811, %v768, 0
        %v816 = vsel %vm811, %v769, 0
        %v819 = vsel %vm811, %v770, 0
        %v822 = vsel %vm811, %v771, 0
        %v825 = vsel %vm811, %v772, 0
        %v828 = vsel %vm811, %v773, 0
        %v831 = vsel %vm811, %v774, 0
        %v834 = vsel %vm811, %v775, 0
        %v837 = vsel %vm811, %v776, 0
        %v840 = vsel %vm811, %v777, 0
        %v843 = vsel %vm811, %v778, 0
        %v846 = vsel %vm811, %v779, 0
        %v849 = vsel %vm811, %v780, 0
        %v852 = vsel %vm811, %v781, 0
        %v855 = vsel %vm811, %v782, 0
        %v858 = vsel %vm811, %v783, 0
        %860 = vmatprep.subr.mxu0 0.0
        %861 = vmatpush1.msra.mxu0 0.0
        %862 = vmatprep.subr.mxu0 0.0
        %863 = vmatpush1.msra.mxu0 0.0
        %864 = vmatprep.subr.mxu0 0.0
        %865 = vmatpush1.msra.mxu0 0.0
        %866 = vmatprep.subr.mxu0 0.0
        %867 = vmatpush1.msra.mxu0 0.0
        %868 = vmatprep.subr.mxu0 0.0
        %869 = vmatpush1.msra.mxu0 0.0
        %870 = vmatprep.subr.mxu0 0.0
        %871 = vmatpush1.msra.mxu0 0.0
        %872 = vmatprep.subr.mxu0 0.0
        %873 = vmatpush1.msra.mxu0 0.0
        %874 = vmatprep.subr.mxu0 0.0
        %875 = vmatpush1.msra.mxu0 0.0
        %876 = vmatprep.subr.mxu0 0.0
        %877 = vmatpush1.msra.mxu0 0.0
        %878 = vmatprep.subr.mxu0 0.0
        %879 = vmatpush1.msra.mxu0 0.0
        %880 = vmatprep.subr.mxu0 0.0
        %881 = vmatpush1.msra.mxu0 0.0
        %882 = vmatprep.subr.mxu0 0.0
        %883 = vmatpush1.msra.mxu0 0.0
        %884 = vmatprep.subr.mxu0 0.0
        %885 = vmatpush1.msra.mxu0 %v803
        %886 = vmatprep.subr.mxu0 0.0
        %887 = vmatpush1.msra.mxu0 %v802
        %888 = vmatprep.subr.mxu0 0.0
        %889 = vmatpush1.msra.mxu0 %v801
        %890 = vmatprep.subr.mxu0 0.0
        %891 = vmatpush1.msra.mxu0 %v800
        %892 = vmatprep.subr.mxu0 0.0
        %893 = vmatpush2.msra.mxu0 0.0
        %894 = vmatprep.subr.mxu0 0.0
        %895 = vmatpush2.msra.mxu0 0.0
        %896 = vmatprep.subr.mxu0 0.0
        %897 = vmatpush2.msra.mxu0 0.0
        %898 = vmatprep.subr.mxu0 0.0
        %899 = vmatpush2.msra.mxu0 0.0
        %900 = vmatprep.subr.mxu0 0.0
        %901 = vmatpush2.msra.mxu0 0.0
        %902 = vmatprep.subr.mxu0 0.0
        %903 = vmatpush2.msra.mxu0 0.0
        %904 = vmatprep.subr.mxu0 0.0
        %905 = vmatpush2.msra.mxu0 0.0
        %906 = vmatprep.subr.mxu0 0.0
        %907 = vmatpush2.msra.mxu0 0.0
        %908 = vmatprep.subr.mxu0 0.0
        %909 = vmatpush2.msra.mxu0 0.0
        %910 = vmatprep.subr.mxu0 0.0
        %911 = vmatpush2.msra.mxu0 0.0
        %912 = vmatprep.subr.mxu0 0.0
        %913 = vmatpush2.msra.mxu0 0.0
        %914 = vmatprep.subr.mxu0 0.0
        %915 = vmatpush2.msra.mxu0 0.0
        %916 = vmatprep.subr.mxu0 0.0
        %917 = vmatpush2.msra.mxu0 0.0
        %918 = vmatprep.subr.mxu0 0.0
        %919 = vmatpush2.msra.mxu0 0.0
        %920 = vmatprep.subr.mxu0 0.0
        %921 = vmatpush2.msra.mxu0 0.0
        %922 = vmatprep.subr.mxu0 0.0
        %923 = vmatpush2.msra.mxu0 0.0
        %924 = vmatprep.mubr.f32.mxu0 0.0
        %925 = vmatmul.mubr.f32.gmra.mxu0 %v813
        %v926 = vpop.f32.mrf.mxu0
        %v927 = vadd.f32 %v809, %v926
        %v928 = vpop.f32.mrf.mxu0
        %929 = vmatprep.mubr.f32.mxu0 0.0
        %930 = vmatmul.mubr.f32.gmra.mxu0 %v816
        %v931 = vpop.f32.mrf.mxu0
        %v932 = vadd.f32 %v809, %v931
        %v933 = vpop.f32.mrf.mxu0
        %934 = vmatprep.mubr.f32.mxu0 0.0
        %935 = vmatmul.mubr.f32.gmra.mxu0 %v819
        %v936 = vpop.f32.mrf.mxu0
        %v937 = vadd.f32 %v809, %v936
        %v938 = vpop.f32.mrf.mxu0
        %939 = vmatprep.mubr.f32.mxu0 0.0
        %940 = vmatmul.mubr.f32.gmra.mxu0 %v822
        %v941 = vpop.f32.mrf.mxu0
        %v942 = vadd.f32 %v809, %v941
        %v943 = vpop.f32.mrf.mxu0
        %944 = vmatprep.mubr.f32.mxu0 0.0
        %945 = vmatmul.mubr.f32.gmra.mxu0 %v825
        %v946 = vpop.f32.mrf.mxu0
        %v947 = vadd.f32 %v809, %v946
        %v948 = vpop.f32.mrf.mxu0
        %949 = vmatprep.mubr.f32.mxu0 0.0
        %950 = vmatmul.mubr.f32.gmra.mxu0 %v828
        %v951 = vpop.f32.mrf.mxu0
        %v952 = vadd.f32 %v809, %v951
        %v953 = vpop.f32.mrf.mxu0
        %954 = vmatprep.mubr.f32.mxu0 0.0
        %955 = vmatmul.mubr.f32.gmra.mxu0 %v831
        %v956 = vpop.f32.mrf.mxu0
        %v957 = vadd.f32 %v809, %v956
        %v958 = vpop.f32.mrf.mxu0
        %959 = vmatprep.mubr.f32.mxu0 0.0
        %960 = vmatmul.mubr.f32.gmra.mxu0 %v834
        %v961 = vpop.f32.mrf.mxu0
        %v962 = vadd.f32 %v809, %v961
        %v963 = vpop.f32.mrf.mxu0
        %964 = vmatprep.mubr.f32.mxu0 0.0
        %965 = vmatmul.mubr.f32.gmra.mxu0 %v837
        %v966 = vpop.f32.mrf.mxu0
        %v967 = vadd.f32 %v809, %v966
        %v968 = vpop.f32.mrf.mxu0
        %969 = vmatprep.mubr.f32.mxu0 0.0
        %970 = vmatmul.mubr.f32.gmra.mxu0 %v840
        %v971 = vpop.f32.mrf.mxu0
        %v972 = vadd.f32 %v809, %v971
        %v973 = vpop.f32.mrf.mxu0
        %974 = vmatprep.mubr.f32.mxu0 0.0
        %975 = vmatmul.mubr.f32.gmra.mxu0 %v843
        %v976 = vpop.f32.mrf.mxu0
        %v977 = vadd.f32 %v809, %v976
        %v978 = vpop.f32.mrf.mxu0
        %979 = vmatprep.mubr.f32.mxu0 0.0
        %980 = vmatmul.mubr.f32.gmra.mxu0 %v846
        %v981 = vpop.f32.mrf.mxu0
        %v982 = vadd.f32 %v809, %v981
        %v983 = vpop.f32.mrf.mxu0
        %984 = vmatprep.mubr.f32.mxu0 0.0
        %985 = vmatmul.mubr.f32.gmra.mxu0 %v849
        %v986 = vpop.f32.mrf.mxu0
        %v987 = vadd.f32 %v809, %v986
        %v988 = vpop.f32.mrf.mxu0
        %989 = vmatprep.mubr.f32.mxu0 0.0
        %990 = vmatmul.mubr.f32.gmra.mxu0 %v852
        %v991 = vpop.f32.mrf.mxu0
        %v992 = vadd.f32 %v809, %v991
        %v993 = vpop.f32.mrf.mxu0
        %994 = vmatprep.mubr.f32.mxu0 0.0
        %995 = vmatmul.mubr.f32.gmra.mxu0 %v855
        %v996 = vpop.f32.mrf.mxu0
        %v997 = vadd.f32 %v809, %v996
        %v998 = vpop.f32.mrf.mxu0
        %999 = vmatprep.mubr.f32.mxu0 0.0
        %1000 = vmatmul.mubr.f32.gmra.mxu0 %v858
        %v1001 = vpop.f32.mrf.mxu0
        %v1002 = vadd.f32 %v809, %v1001
        %v1003 = vpop.f32.mrf.mxu0
        %1004 = vdwg.mxu0
        %v1005 = vmax.f32 %v927, 0.0
        %v1006 = vmax.f32 %v932, 0.0
        %v1007 = vmax.f32 %v937, 0.0
        %v1008 = vmax.f32 %v942, 0.0
        %v1009 = vmax.f32 %v947, 0.0
        %v1010 = vmax.f32 %v952, 0.0
        %v1011 = vmax.f32 %v957, 0.0
        %v1012 = vmax.f32 %v962, 0.0
        %v1013 = vmax.f32 %v967, 0.0
        %v1014 = vmax.f32 %v972, 0.0
        %v1015 = vmax.f32 %v977, 0.0
        %v1016 = vmax.f32 %v982, 0.0
        %v1017 = vmax.f32 %v987, 0.0
        %v1018 = vmax.f32 %v992, 0.0
        %v1019 = vmax.f32 %v997, 0.0
        %v1020 = vmax.f32 %v1002, 0.0
        %v1021 = vld [vmem:[%s6] sm:$0xff]
        %v1022 = vld [vmem:[%s6 + $0x8] sm:$0xff]
        %v1023 = vld [vmem:[%s6 + $0x10] sm:$0xff]
        %v1024 = vld [vmem:[%s6 + $0x18] sm:$0xff]
        %v1025 = vld [vmem:[%s7] sm:$0x1]
        %v1027 = vlaneseq
        %v1028 = vshrl.u32 %v1027, 7
        %v1029 = vsub.s32 0, %v1028
        %v1030 = vrot.slane %v1025, %v1029
        %v1033 = vsel %vm811, %v1005, 0
        %v1036 = vsel %vm811, %v1006, 0
        %v1039 = vsel %vm811, %v1007, 0
        %v1042 = vsel %vm811, %v1008, 0
        %v1045 = vsel %vm811, %v1009, 0
        %v1048 = vsel %vm811, %v1010, 0
        %v1051 = vsel %vm811, %v1011, 0
        %v1054 = vsel %vm811, %v1012, 0
        %v1057 = vsel %vm811, %v1013, 0
        %v1060 = vsel %vm811, %v1014, 0
        %v1063 = vsel %vm811, %v1015, 0
        %v1066 = vsel %vm811, %v1016, 0
        %v1069 = vsel %vm811, %v1017, 0
        %v1072 = vsel %vm811, %v1018, 0
        %v1075 = vsel %vm811, %v1019, 0
        %v1078 = vsel %vm811, %v1020, 0
        %1080 = vmatprep.subr.mxu0 0.0
        %1081 = vmatpush1.msra.mxu0 0.0
        %1082 = vmatprep.subr.mxu0 0.0
        %1083 = vmatpush1.msra.mxu0 0.0
        %1084 = vmatprep.subr.mxu0 0.0
        %1085 = vmatpush1.msra.mxu0 0.0
        %1086 = vmatprep.subr.mxu0 0.0
        %1087 = vmatpush1.msra.mxu0 0.0
        %1088 = vmatprep.subr.mxu0 0.0
        %1089 = vmatpush1.msra.mxu0 0.0
        %1090 = vmatprep.subr.mxu0 0.0
        %1091 = vmatpush1.msra.mxu0 0.0
        %1092 = vmatprep.subr.mxu0 0.0
        %1093 = vmatpush1.msra.mxu0 0.0
        %1094 = vmatprep.subr.mxu0 0.0
        %1095 = vmatpush1.msra.mxu0 0.0
        %1096 = vmatprep.subr.mxu0 0.0
        %1097 = vmatpush1.msra.mxu0 0.0
        %1098 = vmatprep.subr.mxu0 0.0
        %1099 = vmatpush1.msra.mxu0 0.0
        %1100 = vmatprep.subr.mxu0 0.0
        %1101 = vmatpush1.msra.mxu0 0.0
        %1102 = vmatprep.subr.mxu0 0.0
        %1103 = vmatpush1.msra.mxu0 0.0
        %1104 = vmatprep.subr.mxu0 0.0
        %1105 = vmatpush1.msra.mxu0 %v1024
        %1106 = vmatprep.subr.mxu0 0.0
        %1107 = vmatpush1.msra.mxu0 %v1023
        %1108 = vmatprep.subr.mxu0 0.0
        %1109 = vmatpush1.msra.mxu0 %v1022
        %1110 = vmatprep.subr.mxu0 0.0
        %1111 = vmatpush1.msra.mxu0 %v1021
        %1112 = vmatprep.subr.mxu0 0.0
        %1113 = vmatpush2.msra.mxu0 0.0
        %1114 = vmatprep.subr.mxu0 0.0
        %1115 = vmatpush2.msra.mxu0 0.0
        %1116 = vmatprep.subr.mxu0 0.0
        %1117 = vmatpush2.msra.mxu0 0.0
        %1118 = vmatprep.subr.mxu0 0.0
        %1119 = vmatpush2.msra.mxu0 0.0
        %1120 = vmatprep.subr.mxu0 0.0
        %1121 = vmatpush2.msra.mxu0 0.0
        %1122 = vmatprep.subr.mxu0 0.0
        %1123 = vmatpush2.msra.mxu0 0.0
        %1124 = vmatprep.subr.mxu0 0.0
        %1125 = vmatpush2.msra.mxu0 0.0
        %1126 = vmatprep.subr.mxu0 0.0
        %1127 = vmatpush2.msra.mxu0 0.0
        %1128 = vmatprep.subr.mxu0 0.0
        %1129 = vmatpush2.msra.mxu0 0.0
        %1130 = vmatprep.subr.mxu0 0.0
        %1131 = vmatpush2.msra.mxu0 0.0
        %1132 = vmatprep.subr.mxu0 0.0
        %1133 = vmatpush2.msra.mxu0 0.0
        %1134 = vmatprep.subr.mxu0 0.0
        %1135 = vmatpush2.msra.mxu0 0.0
        %1136 = vmatprep.subr.mxu0 0.0
        %1137 = vmatpush2.msra.mxu0 0.0
        %1138 = vmatprep.subr.mxu0 0.0
        %1139 = vmatpush2.msra.mxu0 0.0
        %1140 = vmatprep.subr.mxu0 0.0
        %1141 = vmatpush2.msra.mxu0 0.0
        %1142 = vmatprep.subr.mxu0 0.0
        %1143 = vmatpush2.msra.mxu0 0.0
        %1144 = vmatprep.mubr.f32.mxu0 0.0
        %1145 = vmatmul.mubr.f32.gmra.mxu0 %v1033
        %v1146 = vpop.f32.mrf.mxu0
        %v1147 = vadd.f32 %v1030, %v1146
        %v1148 = vpop.f32.mrf.mxu0
        %1149 = vmatprep.mubr.f32.mxu0 0.0
        %1150 = vmatmul.mubr.f32.gmra.mxu0 %v1036
        %v1151 = vpop.f32.mrf.mxu0
        %v1152 = vadd.f32 %v1030, %v1151
        %v1153 = vpop.f32.mrf.mxu0
        %1154 = vmatprep.mubr.f32.mxu0 0.0
        %1155 = vmatmul.mubr.f32.gmra.mxu0 %v1039
        %v1156 = vpop.f32.mrf.mxu0
        %v1157 = vadd.f32 %v1030, %v1156
        %v1158 = vpop.f32.mrf.mxu0
        %1159 = vmatprep.mubr.f32.mxu0 0.0
        %1160 = vmatmul.mubr.f32.gmra.mxu0 %v1042
        %v1161 = vpop.f32.mrf.mxu0
        %v1162 = vadd.f32 %v1030, %v1161
        %v1163 = vpop.f32.mrf.mxu0
        %1164 = vmatprep.mubr.f32.mxu0 0.0
        %1165 = vmatmul.mubr.f32.gmra.mxu0 %v1045
        %v1166 = vpop.f32.mrf.mxu0
        %v1167 = vadd.f32 %v1030, %v1166
        %v1168 = vpop.f32.mrf.mxu0
        %1169 = vmatprep.mubr.f32.mxu0 0.0
        %1170 = vmatmul.mubr.f32.gmra.mxu0 %v1048
        %v1171 = vpop.f32.mrf.mxu0
        %v1172 = vadd.f32 %v1030, %v1171
        %v1173 = vpop.f32.mrf.mxu0
        %1174 = vmatprep.mubr.f32.mxu0 0.0
        %1175 = vmatmul.mubr.f32.gmra.mxu0 %v1051
        %v1176 = vpop.f32.mrf.mxu0
        %v1177 = vadd.f32 %v1030, %v1176
        %v1178 = vpop.f32.mrf.mxu0
        %1179 = vmatprep.mubr.f32.mxu0 0.0
        %1180 = vmatmul.mubr.f32.gmra.mxu0 %v1054
        %v1181 = vpop.f32.mrf.mxu0
        %v1182 = vadd.f32 %v1030, %v1181
        %v1183 = vpop.f32.mrf.mxu0
        %1184 = vmatprep.mubr.f32.mxu0 0.0
        %1185 = vmatmul.mubr.f32.gmra.mxu0 %v1057
        %v1186 = vpop.f32.mrf.mxu0
        %v1187 = vadd.f32 %v1030, %v1186
        %v1188 = vpop.f32.mrf.mxu0
        %1189 = vmatprep.mubr.f32.mxu0 0.0
        %1190 = vmatmul.mubr.f32.gmra.mxu0 %v1060
        %v1191 = vpop.f32.mrf.mxu0
        %v1192 = vadd.f32 %v1030, %v1191
        %v1193 = vpop.f32.mrf.mxu0
        %1194 = vmatprep.mubr.f32.mxu0 0.0
        %1195 = vmatmul.mubr.f32.gmra.mxu0 %v1063
        %v1196 = vpop.f32.mrf.mxu0
        %v1197 = vadd.f32 %v1030, %v1196
        %v1198 = vpop.f32.mrf.mxu0
        %1199 = vmatprep.mubr.f32.mxu0 0.0
        %1200 = vmatmul.mubr.f32.gmra.mxu0 %v1066
        %v1201 = vpop.f32.mrf.mxu0
        %v1202 = vadd.f32 %v1030, %v1201
        %v1203 = vpop.f32.mrf.mxu0
        %1204 = vmatprep.mubr.f32.mxu0 0.0
        %1205 = vmatmul.mubr.f32.gmra.mxu0 %v1069
        %v1206 = vpop.f32.mrf.mxu0
        %v1207 = vadd.f32 %v1030, %v1206
        %v1208 = vpop.f32.mrf.mxu0
        %1209 = vmatprep.mubr.f32.mxu0 0.0
        %1210 = vmatmul.mubr.f32.gmra.mxu0 %v1072
        %v1211 = vpop.f32.mrf.mxu0
        %v1212 = vadd.f32 %v1030, %v1211
        %v1213 = vpop.f32.mrf.mxu0
        %1214 = vmatprep.mubr.f32.mxu0 0.0
        %1215 = vmatmul.mubr.f32.gmra.mxu0 %v1075
        %v1216 = vpop.f32.mrf.mxu0
        %v1217 = vadd.f32 %v1030, %v1216
        %v1218 = vpop.f32.mrf.mxu0
        %1219 = vmatprep.mubr.f32.mxu0 0.0
        %1220 = vmatmul.mubr.f32.gmra.mxu0 %v1078
        %v1221 = vpop.f32.mrf.mxu0
        %v1222 = vadd.f32 %v1030, %v1221
        %v1223 = vpop.f32.mrf.mxu0
        %1224 = vdwg.mxu0
        %v1225 = vld [vmem:[%s8] sm:$0xff]
        %v1226 = vld [vmem:[%s8 + $0x8] sm:$0xff]
        %v1227 = vld [vmem:[%s8 + $0x10] sm:$0xff]
        %v1228 = vld [vmem:[%s8 + $0x18] sm:$0xff]
        %v1229 = vld [vmem:[%s9] sm:$0x1]
        %v1231 = vlaneseq
        %v1232 = vshrl.u32 %v1231, 7
        %v1233 = vsub.s32 0, %v1232
        %v1234 = vrot.slane %v1229, %v1233
        %v1237 = vsel %vm811, %v784, 0
        %v1240 = vsel %vm811, %v785, 0
        %v1243 = vsel %vm811, %v786, 0
        %v1246 = vsel %vm811, %v787, 0
        %v1249 = vsel %vm811, %v788, 0
        %v1252 = vsel %vm811, %v789, 0
        %v1255 = vsel %vm811, %v790, 0
        %v1258 = vsel %vm811, %v791, 0
        %v1261 = vsel %vm811, %v792, 0
        %v1264 = vsel %vm811, %v793, 0
        %v1267 = vsel %vm811, %v794, 0
        %v1270 = vsel %vm811, %v795, 0
        %v1273 = vsel %vm811, %v796, 0
        %v1276 = vsel %vm811, %v797, 0
        %v1279 = vsel %vm811, %v798, 0
        %v1282 = vsel %vm811, %v799, 0
        %1284 = vmatprep.subr.mxu0 0.0
        %1285 = vmatpush1.msra.mxu0 0.0
        %1286 = vmatprep.subr.mxu0 0.0
        %1287 = vmatpush1.msra.mxu0 0.0
        %1288 = vmatprep.subr.mxu0 0.0
        %1289 = vmatpush1.msra.mxu0 0.0
        %1290 = vmatprep.subr.mxu0 0.0
        %1291 = vmatpush1.msra.mxu0 0.0
        %1292 = vmatprep.subr.mxu0 0.0
        %1293 = vmatpush1.msra.mxu0 0.0
        %1294 = vmatprep.subr.mxu0 0.0
        %1295 = vmatpush1.msra.mxu0 0.0
        %1296 = vmatprep.subr.mxu0 0.0
        %1297 = vmatpush1.msra.mxu0 0.0
        %1298 = vmatprep.subr.mxu0 0.0
        %1299 = vmatpush1.msra.mxu0 0.0
        %1300 = vmatprep.subr.mxu0 0.0
        %1301 = vmatpush1.msra.mxu0 0.0
        %1302 = vmatprep.subr.mxu0 0.0
        %1303 = vmatpush1.msra.mxu0 0.0
        %1304 = vmatprep.subr.mxu0 0.0
        %1305 = vmatpush1.msra.mxu0 0.0
        %1306 = vmatprep.subr.mxu0 0.0
        %1307 = vmatpush1.msra.mxu0 0.0
        %1308 = vmatprep.subr.mxu0 0.0
        %1309 = vmatpush1.msra.mxu0 %v1228
        %1310 = vmatprep.subr.mxu0 0.0
        %1311 = vmatpush1.msra.mxu0 %v1227
        %1312 = vmatprep.subr.mxu0 0.0
        %1313 = vmatpush1.msra.mxu0 %v1226
        %1314 = vmatprep.subr.mxu0 0.0
        %1315 = vmatpush1.msra.mxu0 %v1225
        %1316 = vmatprep.subr.mxu0 0.0
        %1317 = vmatpush2.msra.mxu0 0.0
        %1318 = vmatprep.subr.mxu0 0.0
        %1319 = vmatpush2.msra.mxu0 0.0
        %1320 = vmatprep.subr.mxu0 0.0
        %1321 = vmatpush2.msra.mxu0 0.0
        %1322 = vmatprep.subr.mxu0 0.0
        %1323 = vmatpush2.msra.mxu0 0.0
        %1324 = vmatprep.subr.mxu0 0.0
        %1325 = vmatpush2.msra.mxu0 0.0
        %1326 = vmatprep.subr.mxu0 0.0
        %1327 = vmatpush2.msra.mxu0 0.0
        %1328 = vmatprep.subr.mxu0 0.0
        %1329 = vmatpush2.msra.mxu0 0.0
        %1330 = vmatprep.subr.mxu0 0.0
        %1331 = vmatpush2.msra.mxu0 0.0
        %1332 = vmatprep.subr.mxu0 0.0
        %1333 = vmatpush2.msra.mxu0 0.0
        %1334 = vmatprep.subr.mxu0 0.0
        %1335 = vmatpush2.msra.mxu0 0.0
        %1336 = vmatprep.subr.mxu0 0.0
        %1337 = vmatpush2.msra.mxu0 0.0
        %1338 = vmatprep.subr.mxu0 0.0
        %1339 = vmatpush2.msra.mxu0 0.0
        %1340 = vmatprep.subr.mxu0 0.0
        %1341 = vmatpush2.msra.mxu0 0.0
        %1342 = vmatprep.subr.mxu0 0.0
        %1343 = vmatpush2.msra.mxu0 0.0
        %1344 = vmatprep.subr.mxu0 0.0
        %1345 = vmatpush2.msra.mxu0 0.0
        %1346 = vmatprep.subr.mxu0 0.0
        %1347 = vmatpush2.msra.mxu0 0.0
        %1348 = vmatprep.mubr.f32.mxu0 0.0
        %1349 = vmatmul.mubr.f32.gmra.mxu0 %v1237
        %v1350 = vpop.f32.mrf.mxu0
        %v1351 = vadd.f32 %v1234, %v1350
        %v1352 = vpop.f32.mrf.mxu0
        %1353 = vmatprep.mubr.f32.mxu0 0.0
        %1354 = vmatmul.mubr.f32.gmra.mxu0 %v1240
        %v1355 = vpop.f32.mrf.mxu0
        %v1356 = vadd.f32 %v1234, %v1355
        %v1357 = vpop.f32.mrf.mxu0
        %1358 = vmatprep.mubr.f32.mxu0 0.0
        %1359 = vmatmul.mubr.f32.gmra.mxu0 %v1243
        %v1360 = vpop.f32.mrf.mxu0
        %v1361 = vadd.f32 %v1234, %v1360
        %v1362 = vpop.f32.mrf.mxu0
        %1363 = vmatprep.mubr.f32.mxu0 0.0
        %1364 = vmatmul.mubr.f32.gmra.mxu0 %v1246
        %v1365 = vpop.f32.mrf.mxu0
        %v1366 = vadd.f32 %v1234, %v1365
        %v1367 = vpop.f32.mrf.mxu0
        %1368 = vmatprep.mubr.f32.mxu0 0.0
        %1369 = vmatmul.mubr.f32.gmra.mxu0 %v1249
        %v1370 = vpop.f32.mrf.mxu0
        %v1371 = vadd.f32 %v1234, %v1370
        %v1372 = vpop.f32.mrf.mxu0
        %1373 = vmatprep.mubr.f32.mxu0 0.0
        %1374 = vmatmul.mubr.f32.gmra.mxu0 %v1252
        %v1375 = vpop.f32.mrf.mxu0
        %v1376 = vadd.f32 %v1234, %v1375
        %v1377 = vpop.f32.mrf.mxu0
        %1378 = vmatprep.mubr.f32.mxu0 0.0
        %1379 = vmatmul.mubr.f32.gmra.mxu0 %v1255
        %v1380 = vpop.f32.mrf.mxu0
        %v1381 = vadd.f32 %v1234, %v1380
        %v1382 = vpop.f32.mrf.mxu0
        %1383 = vmatprep.mubr.f32.mxu0 0.0
        %1384 = vmatmul.mubr.f32.gmra.mxu0 %v1258
        %v1385 = vpop.f32.mrf.mxu0
        %v1386 = vadd.f32 %v1234, %v1385
        %v1387 = vpop.f32.mrf.mxu0
        %1388 = vmatprep.mubr.f32.mxu0 0.0
        %1389 = vmatmul.mubr.f32.gmra.mxu0 %v1261
        %v1390 = vpop.f32.mrf.mxu0
        %v1391 = vadd.f32 %v1234, %v1390
        %v1392 = vpop.f32.mrf.mxu0
        %1393 = vmatprep.mubr.f32.mxu0 0.0
        %1394 = vmatmul.mubr.f32.gmra.mxu0 %v1264
        %v1395 = vpop.f32.mrf.mxu0
        %v1396 = vadd.f32 %v1234, %v1395
        %v1397 = vpop.f32.mrf.mxu0
        %1398 = vmatprep.mubr.f32.mxu0 0.0
        %1399 = vmatmul.mubr.f32.gmra.mxu0 %v1267
        %v1400 = vpop.f32.mrf.mxu0
        %v1401 = vadd.f32 %v1234, %v1400
        %v1402 = vpop.f32.mrf.mxu0
        %1403 = vmatprep.mubr.f32.mxu0 0.0
        %1404 = vmatmul.mubr.f32.gmra.mxu0 %v1270
        %v1405 = vpop.f32.mrf.mxu0
        %v1406 = vadd.f32 %v1234, %v1405
        %v1407 = vpop.f32.mrf.mxu0
        %1408 = vmatprep.mubr.f32.mxu0 0.0
        %1409 = vmatmul.mubr.f32.gmra.mxu0 %v1273
        %v1410 = vpop.f32.mrf.mxu0
        %v1411 = vadd.f32 %v1234, %v1410
        %v1412 = vpop.f32.mrf.mxu0
        %1413 = vmatprep.mubr.f32.mxu0 0.0
        %1414 = vmatmul.mubr.f32.gmra.mxu0 %v1276
        %v1415 = vpop.f32.mrf.mxu0
        %v1416 = vadd.f32 %v1234, %v1415
        %v1417 = vpop.f32.mrf.mxu0
        %1418 = vmatprep.mubr.f32.mxu0 0.0
        %1419 = vmatmul.mubr.f32.gmra.mxu0 %v1279
        %v1420 = vpop.f32.mrf.mxu0
        %v1421 = vadd.f32 %v1234, %v1420
        %v1422 = vpop.f32.mrf.mxu0
        %1423 = vmatprep.mubr.f32.mxu0 0.0
        %1424 = vmatmul.mubr.f32.gmra.mxu0 %v1282
        %v1425 = vpop.f32.mrf.mxu0
        %v1426 = vadd.f32 %v1234, %v1425
        %v1427 = vpop.f32.mrf.mxu0
        %1428 = vdwg.mxu0
        %v1429 = vadd.f32 %v1147, %v1351
        %v1430 = vadd.f32 %v1152, %v1356
        %v1431 = vadd.f32 %v1157, %v1361
        %v1432 = vadd.f32 %v1162, %v1366
        %v1433 = vadd.f32 %v1167, %v1371
        %v1434 = vadd.f32 %v1172, %v1376
        %v1435 = vadd.f32 %v1177, %v1381
        %v1436 = vadd.f32 %v1182, %v1386
        %v1437 = vadd.f32 %v1187, %v1391
        %v1438 = vadd.f32 %v1192, %v1396
        %v1439 = vadd.f32 %v1197, %v1401
        %v1440 = vadd.f32 %v1202, %v1406
        %v1441 = vadd.f32 %v1207, %v1411
        %v1442 = vadd.f32 %v1212, %v1416
        %v1443 = vadd.f32 %v1217, %v1421
        %v1444 = vadd.f32 %v1222, %v1426
        %v1445 = vxor.u32 %v1429, 2147483648
        %v1446 = vxor.u32 %v1430, 2147483648
        %v1447 = vxor.u32 %v1431, 2147483648
        %v1448 = vxor.u32 %v1432, 2147483648
        %v1449 = vxor.u32 %v1433, 2147483648
        %v1450 = vxor.u32 %v1434, 2147483648
        %v1451 = vxor.u32 %v1435, 2147483648
        %v1452 = vxor.u32 %v1436, 2147483648
        %v1453 = vxor.u32 %v1437, 2147483648
        %v1454 = vxor.u32 %v1438, 2147483648
        %v1455 = vxor.u32 %v1439, 2147483648
        %v1456 = vxor.u32 %v1440, 2147483648
        %v1457 = vxor.u32 %v1441, 2147483648
        %v1458 = vxor.u32 %v1442, 2147483648
        %v1459 = vxor.u32 %v1443, 2147483648
        %v1460 = vxor.u32 %v1444, 2147483648
        %v1461 = vmul.f32 %v1445, 1.442695
        %v1462 = vpow.pop %v1461
        %v1463 = vmul.f32 %v1446, 1.442695
        %v1464 = vpow.pop %v1463
        %v1465 = vmul.f32 %v1447, 1.442695
        %v1466 = vpow.pop %v1465
        %v1467 = vmul.f32 %v1448, 1.442695
        %v1468 = vpow.pop %v1467
        %v1469 = vmul.f32 %v1449, 1.442695
        %v1470 = vpow.pop %v1469
        %v1471 = vmul.f32 %v1450, 1.442695
        %v1472 = vpow.pop %v1471
        %v1473 = vmul.f32 %v1451, 1.442695
        %v1474 = vpow.pop %v1473
        %v1475 = vmul.f32 %v1452, 1.442695
        %v1476 = vpow.pop %v1475
        %v1477 = vmul.f32 %v1453, 1.442695
        %v1478 = vpow.pop %v1477
        %v1479 = vmul.f32 %v1454, 1.442695
        %v1480 = vpow.pop %v1479
        %v1481 = vmul.f32 %v1455, 1.442695
        %v1482 = vpow.pop %v1481
        %v1483 = vmul.f32 %v1456, 1.442695
        %v1484 = vpow.pop %v1483
        %v1485 = vmul.f32 %v1457, 1.442695
        %v1486 = vpow.pop %v1485
        %v1487 = vmul.f32 %v1458, 1.442695
        %v1488 = vpow.pop %v1487
        %v1489 = vmul.f32 %v1459, 1.442695
        %v1490 = vpow.pop %v1489
        %v1491 = vmul.f32 %v1460, 1.442695
        %v1492 = vpow.pop %v1491
        %v1493 = vadd.f32 %v1462, 1.0
        %v1494 = vadd.f32 %v1464, 1.0
        %v1495 = vadd.f32 %v1466, 1.0
        %v1496 = vadd.f32 %v1468, 1.0
        %v1497 = vadd.f32 %v1470, 1.0
        %v1498 = vadd.f32 %v1472, 1.0
        %v1499 = vadd.f32 %v1474, 1.0
        %v1500 = vadd.f32 %v1476, 1.0
        %v1501 = vadd.f32 %v1478, 1.0
        %v1502 = vadd.f32 %v1480, 1.0
        %v1503 = vadd.f32 %v1482, 1.0
        %v1504 = vadd.f32 %v1484, 1.0
        %v1505 = vadd.f32 %v1486, 1.0
        %v1506 = vadd.f32 %v1488, 1.0
        %v1507 = vadd.f32 %v1490, 1.0
        %v1508 = vadd.f32 %v1492, 1.0
        %v1509 = vrcp.pop %v1493
        %v1510 = vmul.f32 1.0, %v1509
        %v1511 = vrcp.pop %v1494
        %v1512 = vmul.f32 1.0, %v1511
        %v1513 = vrcp.pop %v1495
        %v1514 = vmul.f32 1.0, %v1513
        %v1515 = vrcp.pop %v1496
        %v1516 = vmul.f32 1.0, %v1515
        %v1517 = vrcp.pop %v1497
        %v1518 = vmul.f32 1.0, %v1517
        %v1519 = vrcp.pop %v1498
        %v1520 = vmul.f32 1.0, %v1519
        %v1521 = vrcp.pop %v1499
        %v1522 = vmul.f32 1.0, %v1521
        %v1523 = vrcp.pop %v1500
        %v1524 = vmul.f32 1.0, %v1523
        %v1525 = vrcp.pop %v1501
        %v1526 = vmul.f32 1.0, %v1525
        %v1527 = vrcp.pop %v1502
        %v1528 = vmul.f32 1.0, %v1527
        %v1529 = vrcp.pop %v1503
        %v1530 = vmul.f32 1.0, %v1529
        %v1531 = vrcp.pop %v1504
        %v1532 = vmul.f32 1.0, %v1531
        %v1533 = vrcp.pop %v1505
        %v1534 = vmul.f32 1.0, %v1533
        %v1535 = vrcp.pop %v1506
        %v1536 = vmul.f32 1.0, %v1535
        %v1537 = vrcp.pop %v1507
        %v1538 = vmul.f32 1.0, %v1537
        %v1539 = vrcp.pop %v1508
        %v1540 = vmul.f32 1.0, %v1539
        %1557 = vrot.lane.b32.xlu0 %v1351, 64
        %v1558 = vpop.permute.xlu0 %1557
        %1559 = vrot.lane.b32.xlu0 %v1356, 64
        %v1560 = vpop.permute.xlu0 %1559
        %1561 = vrot.lane.b32.xlu0 %v1361, 64
        %v1562 = vpop.permute.xlu0 %1561
        %1563 = vrot.lane.b32.xlu0 %v1366, 64
        %v1564 = vpop.permute.xlu0 %1563
        %1565 = vrot.lane.b32.xlu0 %v1371, 64
        %v1566 = vpop.permute.xlu0 %1565
        %1567 = vrot.lane.b32.xlu0 %v1376, 64
        %v1568 = vpop.permute.xlu0 %1567
        %1569 = vrot.lane.b32.xlu0 %v1381, 64
        %v1570 = vpop.permute.xlu0 %1569
        %1571 = vrot.lane.b32.xlu0 %v1386, 64
        %v1572 = vpop.permute.xlu0 %1571
        %1573 = vrot.lane.b32.xlu0 %v1391, 64
        %v1574 = vpop.permute.xlu0 %1573
        %1575 = vrot.lane.b32.xlu0 %v1396, 64
        %v1576 = vpop.permute.xlu0 %1575
        %1577 = vrot.lane.b32.xlu0 %v1401, 64
        %v1578 = vpop.permute.xlu0 %1577
        %1579 = vrot.lane.b32.xlu0 %v1406, 64
        %v1580 = vpop.permute.xlu0 %1579
        %1581 = vrot.lane.b32.xlu0 %v1411, 64
        %v1582 = vpop.permute.xlu0 %1581
        %1583 = vrot.lane.b32.xlu0 %v1416, 64
        %v1584 = vpop.permute.xlu0 %1583
        %1585 = vrot.lane.b32.xlu0 %v1421, 64
        %v1586 = vpop.permute.xlu0 %1585
        %1587 = vrot.lane.b32.xlu0 %v1426, 64
        %v1588 = vpop.permute.xlu0 %1587
        %v1605 = vmul.f32 %v1510, %v1558
        %v1606 = vmul.f32 %v1512, %v1560
        %v1607 = vmul.f32 %v1514, %v1562
        %v1608 = vmul.f32 %v1516, %v1564
        %v1609 = vmul.f32 %v1518, %v1566
        %v1610 = vmul.f32 %v1520, %v1568
        %v1611 = vmul.f32 %v1522, %v1570
        %v1612 = vmul.f32 %v1524, %v1572
        %v1613 = vmul.f32 %v1526, %v1574
        %v1614 = vmul.f32 %v1528, %v1576
        %v1615 = vmul.f32 %v1530, %v1578
        %v1616 = vmul.f32 %v1532, %v1580
        %v1617 = vmul.f32 %v1534, %v1582
        %v1618 = vmul.f32 %v1536, %v1584
        %v1619 = vmul.f32 %v1538, %v1586
        %v1620 = vmul.f32 %v1540, %v1588
        %1637 = vrot.lane.b32.xlu0 %v1605, 64
        %v1638 = vpop.permute.xlu0 %1637
        %1639 = vrot.lane.b32.xlu0 %v1606, 64
        %v1640 = vpop.permute.xlu0 %1639
        %1641 = vrot.lane.b32.xlu0 %v1607, 64
        %v1642 = vpop.permute.xlu0 %1641
        %1643 = vrot.lane.b32.xlu0 %v1608, 64
        %v1644 = vpop.permute.xlu0 %1643
        %1645 = vrot.lane.b32.xlu0 %v1609, 64
        %v1646 = vpop.permute.xlu0 %1645
        %1647 = vrot.lane.b32.xlu0 %v1610, 64
        %v1648 = vpop.permute.xlu0 %1647
        %1649 = vrot.lane.b32.xlu0 %v1611, 64
        %v1650 = vpop.permute.xlu0 %1649
        %1651 = vrot.lane.b32.xlu0 %v1612, 64
        %v1652 = vpop.permute.xlu0 %1651
        %1653 = vrot.lane.b32.xlu0 %v1613, 64
        %v1654 = vpop.permute.xlu0 %1653
        %1655 = vrot.lane.b32.xlu0 %v1614, 64
        %v1656 = vpop.permute.xlu0 %1655
        %1657 = vrot.lane.b32.xlu0 %v1615, 64
        %v1658 = vpop.permute.xlu0 %1657
        %1659 = vrot.lane.b32.xlu0 %v1616, 64
        %v1660 = vpop.permute.xlu0 %1659
        %1661 = vrot.lane.b32.xlu0 %v1617, 64
        %v1662 = vpop.permute.xlu0 %1661
        %1663 = vrot.lane.b32.xlu0 %v1618, 64
        %v1664 = vpop.permute.xlu0 %1663
        %1665 = vrot.lane.b32.xlu0 %v1619, 64
        %v1666 = vpop.permute.xlu0 %1665
        %1667 = vrot.lane.b32.xlu0 %v1620, 64
        %v1668 = vpop.permute.xlu0 %1667
        %v1685 = vadd.f32 %v1147, %v1638
        %v1686 = vadd.f32 %v1152, %v1640
        %v1687 = vadd.f32 %v1157, %v1642
        %v1688 = vadd.f32 %v1162, %v1644
        %v1689 = vadd.f32 %v1167, %v1646
        %v1690 = vadd.f32 %v1172, %v1648
        %v1691 = vadd.f32 %v1177, %v1650
        %v1692 = vadd.f32 %v1182, %v1652
        %v1693 = vadd.f32 %v1187, %v1654
        %v1694 = vadd.f32 %v1192, %v1656
        %v1695 = vadd.f32 %v1197, %v1658
        %v1696 = vadd.f32 %v1202, %v1660
        %v1697 = vadd.f32 %v1207, %v1662
        %v1698 = vadd.f32 %v1212, %v1664
        %v1699 = vadd.f32 %v1217, %v1666
        %v1700 = vadd.f32 %v1222, %v1668
        %v1701 = vtanh.pop %v1685
        %v1702 = vtanh.pop %v1686
        %v1703 = vtanh.pop %v1687
        %v1704 = vtanh.pop %v1688
        %v1705 = vtanh.pop %v1689
        %v1706 = vtanh.pop %v1690
        %v1707 = vtanh.pop %v1691
        %v1708 = vtanh.pop %v1692
        %v1709 = vtanh.pop %v1693
        %v1710 = vtanh.pop %v1694
        %v1711 = vtanh.pop %v1695
        %v1712 = vtanh.pop %v1696
        %v1713 = vtanh.pop %v1697
        %v1714 = vtanh.pop %v1698
        %v1715 = vtanh.pop %v1699
        %v1716 = vtanh.pop %v1700
        %v1717 = vsub.f32 1.0, %v1510
        %v1718 = vsub.f32 1.0, %v1512
        %v1719 = vsub.f32 1.0, %v1514
        %v1720 = vsub.f32 1.0, %v1516
        %v1721 = vsub.f32 1.0, %v1518
        %v1722 = vsub.f32 1.0, %v1520
        %v1723 = vsub.f32 1.0, %v1522
        %v1724 = vsub.f32 1.0, %v1524
        %v1725 = vsub.f32 1.0, %v1526
        %v1726 = vsub.f32 1.0, %v1528
        %v1727 = vsub.f32 1.0, %v1530
        %v1728 = vsub.f32 1.0, %v1532
        %v1729 = vsub.f32 1.0, %v1534
        %v1730 = vsub.f32 1.0, %v1536
        %v1731 = vsub.f32 1.0, %v1538
        %v1732 = vsub.f32 1.0, %v1540
        %1749 = vrot.lane.b32.xlu0 %v1701, 96
        %v1750 = vpop.permute.xlu0 %1749
        %1751 = vrot.lane.b32.xlu0 %v1702, 96
        %v1752 = vpop.permute.xlu0 %1751
        %1753 = vrot.lane.b32.xlu0 %v1703, 96
        %v1754 = vpop.permute.xlu0 %1753
        %1755 = vrot.lane.b32.xlu0 %v1704, 96
        %v1756 = vpop.permute.xlu0 %1755
        %1757 = vrot.lane.b32.xlu0 %v1705, 96
        %v1758 = vpop.permute.xlu0 %1757
        %1759 = vrot.lane.b32.xlu0 %v1706, 96
        %v1760 = vpop.permute.xlu0 %1759
        %1761 = vrot.lane.b32.xlu0 %v1707, 96
        %v1762 = vpop.permute.xlu0 %1761
        %1763 = vrot.lane.b32.xlu0 %v1708, 96
        %v1764 = vpop.permute.xlu0 %1763
        %1765 = vrot.lane.b32.xlu0 %v1709, 96
        %v1766 = vpop.permute.xlu0 %1765
        %1767 = vrot.lane.b32.xlu0 %v1710, 96
        %v1768 = vpop.permute.xlu0 %1767
        %1769 = vrot.lane.b32.xlu0 %v1711, 96
        %v1770 = vpop.permute.xlu0 %1769
        %1771 = vrot.lane.b32.xlu0 %v1712, 96
        %v1772 = vpop.permute.xlu0 %1771
        %1773 = vrot.lane.b32.xlu0 %v1713, 96
        %v1774 = vpop.permute.xlu0 %1773
        %1775 = vrot.lane.b32.xlu0 %v1714, 96
        %v1776 = vpop.permute.xlu0 %1775
        %1777 = vrot.lane.b32.xlu0 %v1715, 96
        %v1778 = vpop.permute.xlu0 %1777
        %1779 = vrot.lane.b32.xlu0 %v1716, 96
        %v1780 = vpop.permute.xlu0 %1779
        %v1797 = vmul.f32 %v1717, %v1750
        %v1798 = vmul.f32 %v1718, %v1752
        %v1799 = vmul.f32 %v1719, %v1754
        %v1800 = vmul.f32 %v1720, %v1756
        %v1801 = vmul.f32 %v1721, %v1758
        %v1802 = vmul.f32 %v1722, %v1760
        %v1803 = vmul.f32 %v1723, %v1762
        %v1804 = vmul.f32 %v1724, %v1764
        %v1805 = vmul.f32 %v1725, %v1766
        %v1806 = vmul.f32 %v1726, %v1768
        %v1807 = vmul.f32 %v1727, %v1770
        %v1808 = vmul.f32 %v1728, %v1772
        %v1809 = vmul.f32 %v1729, %v1774
        %v1810 = vmul.f32 %v1730, %v1776
        %v1811 = vmul.f32 %v1731, %v1778
        %v1812 = vmul.f32 %v1732, %v1780
        %1813 = vrot.lane.b32.xlu0 %v784, 32
        %v1814 = vpop.permute.xlu0 %1813
        %1815 = vrot.lane.b32.xlu0 %v785, 32
        %v1816 = vpop.permute.xlu0 %1815
        %1817 = vrot.lane.b32.xlu0 %v786, 32
        %v1818 = vpop.permute.xlu0 %1817
        %1819 = vrot.lane.b32.xlu0 %v787, 32
        %v1820 = vpop.permute.xlu0 %1819
        %1821 = vrot.lane.b32.xlu0 %v788, 32
        %v1822 = vpop.permute.xlu0 %1821
        %1823 = vrot.lane.b32.xlu0 %v789, 32
        %v1824 = vpop.permute.xlu0 %1823
        %1825 = vrot.lane.b32.xlu0 %v790, 32
        %v1826 = vpop.permute.xlu0 %1825
        %1827 = vrot.lane.b32.xlu0 %v791, 32
        %v1828 = vpop.permute.xlu0 %1827
        %1829 = vrot.lane.b32.xlu0 %v792, 32
        %v1830 = vpop.permute.xlu0 %1829
        %1831 = vrot.lane.b32.xlu0 %v793, 32
        %v1832 = vpop.permute.xlu0 %1831
        %1833 = vrot.lane.b32.xlu0 %v794, 32
        %v1834 = vpop.permute.xlu0 %1833
        %1835 = vrot.lane.b32.xlu0 %v795, 32
        %v1836 = vpop.permute.xlu0 %1835
        %1837 = vrot.lane.b32.xlu0 %v796, 32
        %v1838 = vpop.permute.xlu0 %1837
        %1839 = vrot.lane.b32.xlu0 %v797, 32
        %v1840 = vpop.permute.xlu0 %1839
        %1841 = vrot.lane.b32.xlu0 %v798, 32
        %v1842 = vpop.permute.xlu0 %1841
        %1843 = vrot.lane.b32.xlu0 %v799, 32
        %v1844 = vpop.permute.xlu0 %1843
        %v1861 = vmul.f32 %v1510, %v1814
        %v1862 = vmul.f32 %v1512, %v1816
        %v1863 = vmul.f32 %v1514, %v1818
        %v1864 = vmul.f32 %v1516, %v1820
        %v1865 = vmul.f32 %v1518, %v1822
        %v1866 = vmul.f32 %v1520, %v1824
        %v1867 = vmul.f32 %v1522, %v1826
        %v1868 = vmul.f32 %v1524, %v1828
        %v1869 = vmul.f32 %v1526, %v1830
        %v1870 = vmul.f32 %v1528, %v1832
        %v1871 = vmul.f32 %v1530, %v1834
        %v1872 = vmul.f32 %v1532, %v1836
        %v1873 = vmul.f32 %v1534, %v1838
        %v1874 = vmul.f32 %v1536, %v1840
        %v1875 = vmul.f32 %v1538, %v1842
        %v1876 = vmul.f32 %v1540, %v1844
        %v1877 = vadd.f32 %v1797, %v1861
        %v1878 = vadd.f32 %v1798, %v1862
        %v1879 = vadd.f32 %v1799, %v1863
        %v1880 = vadd.f32 %v1800, %v1864
        %v1881 = vadd.f32 %v1801, %v1865
        %v1882 = vadd.f32 %v1802, %v1866
        %v1883 = vadd.f32 %v1803, %v1867
        %v1884 = vadd.f32 %v1804, %v1868
        %v1885 = vadd.f32 %v1805, %v1869
        %v1886 = vadd.f32 %v1806, %v1870
        %v1887 = vadd.f32 %v1807, %v1871
        %v1888 = vadd.f32 %v1808, %v1872
        %v1889 = vadd.f32 %v1809, %v1873
        %v1890 = vadd.f32 %v1810, %v1874
        %v1891 = vadd.f32 %v1811, %v1875
        %v1892 = vadd.f32 %v1812, %v1876
        %v1893 = vld [vmem:[%s10] sm:$0xff]
        %v1894 = vld [vmem:[%s10 + $0x8] sm:$0xff]
        %v1895 = vld [vmem:[%s10 + $0x10] sm:$0xff]
        %v1896 = vld [vmem:[%s10 + $0x18] sm:$0xff]
        %1897 = vmatprep.subr.mxu0 0.0
        %1898 = vmatpush1.msra.mxu0 0.0
        %1899 = vmatprep.subr.mxu0 0.0
        %1900 = vmatpush1.msra.mxu0 0.0
        %1901 = vmatprep.subr.mxu0 0.0
        %1902 = vmatpush1.msra.mxu0 0.0
        %1903 = vmatprep.subr.mxu0 0.0
        %1904 = vmatpush1.msra.mxu0 0.0
        %1905 = vmatprep.subr.mxu0 0.0
        %1906 = vmatpush1.msra.mxu0 0.0
        %1907 = vmatprep.subr.mxu0 0.0
        %1908 = vmatpush1.msra.mxu0 0.0
        %1909 = vmatprep.subr.mxu0 0.0
        %1910 = vmatpush1.msra.mxu0 0.0
        %1911 = vmatprep.subr.mxu0 0.0
        %1912 = vmatpush1.msra.mxu0 0.0
        %1913 = vmatprep.subr.mxu0 0.0
        %1914 = vmatpush1.msra.mxu0 0.0
        %1915 = vmatprep.subr.mxu0 0.0
        %1916 = vmatpush1.msra.mxu0 0.0
        %1917 = vmatprep.subr.mxu0 0.0
        %1918 = vmatpush1.msra.mxu0 0.0
        %1919 = vmatprep.subr.mxu0 0.0
        %1920 = vmatpush1.msra.mxu0 0.0
        %1921 = vmatprep.subr.mxu0 0.0
        %1922 = vmatpush1.msra.mxu0 %v1896
        %1923 = vmatprep.subr.mxu0 0.0
        %1924 = vmatpush1.msra.mxu0 %v1895
        %1925 = vmatprep.subr.mxu0 0.0
        %1926 = vmatpush1.msra.mxu0 %v1894
        %1927 = vmatprep.subr.mxu0 0.0
        %1928 = vmatpush1.msra.mxu0 %v1893
        %1929 = vmatprep.subr.mxu0 0.0
        %1930 = vmatpush2.msra.mxu0 0.0
        %1931 = vmatprep.subr.mxu0 0.0
        %1932 = vmatpush2.msra.mxu0 0.0
        %1933 = vmatprep.subr.mxu0 0.0
        %1934 = vmatpush2.msra.mxu0 0.0
        %1935 = vmatprep.subr.mxu0 0.0
        %1936 = vmatpush2.msra.mxu0 0.0
        %1937 = vmatprep.subr.mxu0 0.0
        %1938 = vmatpush2.msra.mxu0 0.0
        %1939 = vmatprep.subr.mxu0 0.0
        %1940 = vmatpush2.msra.mxu0 0.0
        %1941 = vmatprep.subr.mxu0 0.0
        %1942 = vmatpush2.msra.mxu0 0.0
        %1943 = vmatprep.subr.mxu0 0.0
        %1944 = vmatpush2.msra.mxu0 0.0
        %1945 = vmatprep.subr.mxu0 0.0
        %1946 = vmatpush2.msra.mxu0 0.0
        %1947 = vmatprep.subr.mxu0 0.0
        %1948 = vmatpush2.msra.mxu0 0.0
        %1949 = vmatprep.subr.mxu0 0.0
        %1950 = vmatpush2.msra.mxu0 0.0
        %1951 = vmatprep.subr.mxu0 0.0
        %1952 = vmatpush2.msra.mxu0 0.0
        %1953 = vmatprep.subr.mxu0 0.0
        %1954 = vmatpush2.msra.mxu0 0.0
        %1955 = vmatprep.subr.mxu0 0.0
        %1956 = vmatpush2.msra.mxu0 0.0
        %1957 = vmatprep.subr.mxu0 0.0
        %1958 = vmatpush2.msra.mxu0 0.0
        %1959 = vmatprep.subr.mxu0 0.0
        %1960 = vmatpush2.msra.mxu0 0.0
        %1961 = vmatprep.mubr.f32.mxu0 0.0
        %1962 = vmatmul.mubr.f32.gmra.mxu0 %v813
        %v1963 = vpop.f32.mrf.mxu0
        %v1964 = vadd.f32 0.0, %v1963
        %v1965 = vpop.f32.mrf.mxu0
        %1966 = vmatprep.mubr.f32.mxu0 0.0
        %1967 = vmatmul.mubr.f32.gmra.mxu0 %v816
        %v1968 = vpop.f32.mrf.mxu0
        %v1969 = vadd.f32 0.0, %v1968
        %v1970 = vpop.f32.mrf.mxu0
        %1971 = vmatprep.mubr.f32.mxu0 0.0
        %1972 = vmatmul.mubr.f32.gmra.mxu0 %v819
        %v1973 = vpop.f32.mrf.mxu0
        %v1974 = vadd.f32 0.0, %v1973
        %v1975 = vpop.f32.mrf.mxu0
        %1976 = vmatprep.mubr.f32.mxu0 0.0
        %1977 = vmatmul.mubr.f32.gmra.mxu0 %v822
        %v1978 = vpop.f32.mrf.mxu0
        %v1979 = vadd.f32 0.0, %v1978
        %v1980 = vpop.f32.mrf.mxu0
        %1981 = vmatprep.mubr.f32.mxu0 0.0
        %1982 = vmatmul.mubr.f32.gmra.mxu0 %v825
        %v1983 = vpop.f32.mrf.mxu0
        %v1984 = vadd.f32 0.0, %v1983
        %v1985 = vpop.f32.mrf.mxu0
        %1986 = vmatprep.mubr.f32.mxu0 0.0
        %1987 = vmatmul.mubr.f32.gmra.mxu0 %v828
        %v1988 = vpop.f32.mrf.mxu0
        %v1989 = vadd.f32 0.0, %v1988
        %v1990 = vpop.f32.mrf.mxu0
        %1991 = vmatprep.mubr.f32.mxu0 0.0
        %1992 = vmatmul.mubr.f32.gmra.mxu0 %v831
        %v1993 = vpop.f32.mrf.mxu0
        %v1994 = vadd.f32 0.0, %v1993
        %v1995 = vpop.f32.mrf.mxu0
        %1996 = vmatprep.mubr.f32.mxu0 0.0
        %1997 = vmatmul.mubr.f32.gmra.mxu0 %v834
        %v1998 = vpop.f32.mrf.mxu0
        %v1999 = vadd.f32 0.0, %v1998
        %v2000 = vpop.f32.mrf.mxu0
        %2001 = vmatprep.mubr.f32.mxu0 0.0
        %2002 = vmatmul.mubr.f32.gmra.mxu0 %v837
        %v2003 = vpop.f32.mrf.mxu0
        %v2004 = vadd.f32 0.0, %v2003
        %v2005 = vpop.f32.mrf.mxu0
        %2006 = vmatprep.mubr.f32.mxu0 0.0
        %2007 = vmatmul.mubr.f32.gmra.mxu0 %v840
        %v2008 = vpop.f32.mrf.mxu0
        %v2009 = vadd.f32 0.0, %v2008
        %v2010 = vpop.f32.mrf.mxu0
        %2011 = vmatprep.mubr.f32.mxu0 0.0
        %2012 = vmatmul.mubr.f32.gmra.mxu0 %v843
        %v2013 = vpop.f32.mrf.mxu0
        %v2014 = vadd.f32 0.0, %v2013
        %v2015 = vpop.f32.mrf.mxu0
        %2016 = vmatprep.mubr.f32.mxu0 0.0
        %2017 = vmatmul.mubr.f32.gmra.mxu0 %v846
        %v2018 = vpop.f32.mrf.mxu0
        %v2019 = vadd.f32 0.0, %v2018
        %v2020 = vpop.f32.mrf.mxu0
        %2021 = vmatprep.mubr.f32.mxu0 0.0
        %2022 = vmatmul.mubr.f32.gmra.mxu0 %v849
        %v2023 = vpop.f32.mrf.mxu0
        %v2024 = vadd.f32 0.0, %v2023
        %v2025 = vpop.f32.mrf.mxu0
        %2026 = vmatprep.mubr.f32.mxu0 0.0
        %2027 = vmatmul.mubr.f32.gmra.mxu0 %v852
        %v2028 = vpop.f32.mrf.mxu0
        %v2029 = vadd.f32 0.0, %v2028
        %v2030 = vpop.f32.mrf.mxu0
        %2031 = vmatprep.mubr.f32.mxu0 0.0
        %2032 = vmatmul.mubr.f32.gmra.mxu0 %v855
        %v2033 = vpop.f32.mrf.mxu0
        %v2034 = vadd.f32 0.0, %v2033
        %v2035 = vpop.f32.mrf.mxu0
        %2036 = vmatprep.mubr.f32.mxu0 0.0
        %2037 = vmatmul.mubr.f32.gmra.mxu0 %v858
        %v2038 = vpop.f32.mrf.mxu0
        %v2039 = vadd.f32 0.0, %v2038
        %v2040 = vpop.f32.mrf.mxu0
        %2041 = vdwg.mxu0
        %v2042 = vld [vmem:[#allocation2] sm:$0xff]
        %v2043 = vld [vmem:[#allocation2 + $0x8] sm:$0xff]
        %v2044 = vld [vmem:[#allocation2 + $0x10] sm:$0xff]
        %v2045 = vld [vmem:[#allocation2 + $0x18] sm:$0xff]
        %v2046 = vld [vmem:[#allocation2 + $0x20] sm:$0xff]
        %v2047 = vld [vmem:[#allocation2 + $0x28] sm:$0xff]
        %v2048 = vld [vmem:[#allocation2 + $0x30] sm:$0xff]
        %v2049 = vld [vmem:[#allocation2 + $0x38] sm:$0xff]
        %v2050 = vld [vmem:[#allocation2 + $0x40] sm:$0xff]
        %v2051 = vld [vmem:[#allocation2 + $0x48] sm:$0xff]
        %v2052 = vld [vmem:[#allocation2 + $0x50] sm:$0xff]
        %v2053 = vld [vmem:[#allocation2 + $0x58] sm:$0xff]
        %v2054 = vld [vmem:[#allocation2 + $0x60] sm:$0xff]
        %v2055 = vld [vmem:[#allocation2 + $0x68] sm:$0xff]
        %v2056 = vld [vmem:[#allocation2 + $0x70] sm:$0xff]
        %v2057 = vld [vmem:[#allocation2 + $0x78] sm:$0xff]
        %v2058 = vld [vmem:[#allocation2 + $0x80] sm:$0xff]
        %v2059 = vld [vmem:[#allocation2 + $0x88] sm:$0xff]
        %v2060 = vld [vmem:[#allocation2 + $0x90] sm:$0xff]
        %v2061 = vld [vmem:[#allocation2 + $0x98] sm:$0xff]
        %v2062 = vld [vmem:[#allocation2 + $0xa0] sm:$0xff]
        %v2063 = vld [vmem:[#allocation2 + $0xa8] sm:$0xff]
        %v2064 = vld [vmem:[#allocation2 + $0xb0] sm:$0xff]
        %v2065 = vld [vmem:[#allocation2 + $0xb8] sm:$0xff]
        %v2066 = vld [vmem:[#allocation2 + $0xc0] sm:$0xff]
        %v2067 = vld [vmem:[#allocation2 + $0xc8] sm:$0xff]
        %v2068 = vld [vmem:[#allocation2 + $0xd0] sm:$0xff]
        %v2069 = vld [vmem:[#allocation2 + $0xd8] sm:$0xff]
        %v2070 = vld [vmem:[#allocation2 + $0xe0] sm:$0xff]
        %v2071 = vld [vmem:[#allocation2 + $0xe8] sm:$0xff]
        %v2072 = vld [vmem:[#allocation2 + $0xf0] sm:$0xff]
        %v2073 = vld [vmem:[#allocation2 + $0xf8] sm:$0xff]
        %v2074 = vmul.f32 %v1964, %v2042
        %v2075 = vmul.f32 %v1969, %v2043
        %v2076 = vmul.f32 %v1974, %v2044
        %v2077 = vmul.f32 %v1979, %v2045
        %v2078 = vmul.f32 %v1984, %v2046
        %v2079 = vmul.f32 %v1989, %v2047
        %v2080 = vmul.f32 %v1994, %v2048
        %v2081 = vmul.f32 %v1999, %v2049
        %v2082 = vmul.f32 %v2004, %v2050
        %v2083 = vmul.f32 %v2009, %v2051
        %v2084 = vmul.f32 %v2014, %v2052
        %v2085 = vmul.f32 %v2019, %v2053
        %v2086 = vmul.f32 %v2024, %v2054
        %v2087 = vmul.f32 %v2029, %v2055
        %v2088 = vmul.f32 %v2034, %v2056
        %v2089 = vmul.f32 %v2039, %v2057
        %v2090 = vmul.f32 %v1964, %v2058
        %v2091 = vmul.f32 %v1969, %v2059
        %v2092 = vmul.f32 %v1974, %v2060
        %v2093 = vmul.f32 %v1979, %v2061
        %v2094 = vmul.f32 %v1984, %v2062
        %v2095 = vmul.f32 %v1989, %v2063
        %v2096 = vmul.f32 %v1994, %v2064
        %v2097 = vmul.f32 %v1999, %v2065
        %v2098 = vmul.f32 %v2004, %v2066
        %v2099 = vmul.f32 %v2009, %v2067
        %v2100 = vmul.f32 %v2014, %v2068
        %v2101 = vmul.f32 %v2019, %v2069
        %v2102 = vmul.f32 %v2024, %v2070
        %v2103 = vmul.f32 %v2029, %v2071
        %v2104 = vmul.f32 %v2034, %v2072
        %v2105 = vmul.f32 %v2039, %v2073
        %v2106 = vld [vmem:[#allocation4] sm:$0xff]
        %v2107 = vld [vmem:[#allocation4 + $0x8] sm:$0xff]
        %v2108 = vld [vmem:[#allocation4 + $0x10] sm:$0xff]
        %v2109 = vld [vmem:[#allocation4 + $0x18] sm:$0xff]
        %v2110 = vld [vmem:[#allocation4 + $0x20] sm:$0xff]
        %v2111 = vld [vmem:[#allocation4 + $0x28] sm:$0xff]
        %v2112 = vld [vmem:[#allocation4 + $0x30] sm:$0xff]
        %v2113 = vld [vmem:[#allocation4 + $0x38] sm:$0xff]
        %v2114 = vld [vmem:[#allocation4 + $0x40] sm:$0xff]
        %v2115 = vld [vmem:[#allocation4 + $0x48] sm:$0xff]
        %v2116 = vld [vmem:[#allocation4 + $0x50] sm:$0xff]
        %v2117 = vld [vmem:[#allocation4 + $0x58] sm:$0xff]
        %v2118 = vld [vmem:[#allocation4 + $0x60] sm:$0xff]
        %v2119 = vld [vmem:[#allocation4 + $0x68] sm:$0xff]
        %v2120 = vld [vmem:[#allocation4 + $0x70] sm:$0xff]
        %v2121 = vld [vmem:[#allocation4 + $0x78] sm:$0xff]
        %v2122 = vld [vmem:[#allocation4 + $0x80] sm:$0xff]
        %v2123 = vld [vmem:[#allocation4 + $0x88] sm:$0xff]
        %v2124 = vld [vmem:[#allocation4 + $0x90] sm:$0xff]
        %v2125 = vld [vmem:[#allocation4 + $0x98] sm:$0xff]
        %v2126 = vld [vmem:[#allocation4 + $0xa0] sm:$0xff]
        %v2127 = vld [vmem:[#allocation4 + $0xa8] sm:$0xff]
        %v2128 = vld [vmem:[#allocation4 + $0xb0] sm:$0xff]
        %v2129 = vld [vmem:[#allocation4 + $0xb8] sm:$0xff]
        %v2130 = vld [vmem:[#allocation4 + $0xc0] sm:$0xff]
        %v2131 = vld [vmem:[#allocation4 + $0xc8] sm:$0xff]
        %v2132 = vld [vmem:[#allocation4 + $0xd0] sm:$0xff]
        %v2133 = vld [vmem:[#allocation4 + $0xd8] sm:$0xff]
        %v2134 = vld [vmem:[#allocation4 + $0xe0] sm:$0xff]
        %v2135 = vld [vmem:[#allocation4 + $0xe8] sm:$0xff]
        %v2136 = vld [vmem:[#allocation4 + $0xf0] sm:$0xff]
        %v2137 = vld [vmem:[#allocation4 + $0xf8] sm:$0xff]
        %2154 = vrot.lane.b32.xlu0 %v1964, 96
        %v2155 = vpop.permute.xlu0 %2154
        %2156 = vrot.lane.b32.xlu0 %v1969, 96
        %v2157 = vpop.permute.xlu0 %2156
        %2158 = vrot.lane.b32.xlu0 %v1974, 96
        %v2159 = vpop.permute.xlu0 %2158
        %2160 = vrot.lane.b32.xlu0 %v1979, 96
        %v2161 = vpop.permute.xlu0 %2160
        %2162 = vrot.lane.b32.xlu0 %v1984, 96
        %v2163 = vpop.permute.xlu0 %2162
        %2164 = vrot.lane.b32.xlu0 %v1989, 96
        %v2165 = vpop.permute.xlu0 %2164
        %2166 = vrot.lane.b32.xlu0 %v1994, 96
        %v2167 = vpop.permute.xlu0 %2166
        %2168 = vrot.lane.b32.xlu0 %v1999, 96
        %v2169 = vpop.permute.xlu0 %2168
        %2170 = vrot.lane.b32.xlu0 %v2004, 96
        %v2171 = vpop.permute.xlu0 %2170
        %2172 = vrot.lane.b32.xlu0 %v2009, 96
        %v2173 = vpop.permute.xlu0 %2172
        %2174 = vrot.lane.b32.xlu0 %v2014, 96
        %v2175 = vpop.permute.xlu0 %2174
        %2176 = vrot.lane.b32.xlu0 %v2019, 96
        %v2177 = vpop.permute.xlu0 %2176
        %2178 = vrot.lane.b32.xlu0 %v2024, 96
        %v2179 = vpop.permute.xlu0 %2178
        %2180 = vrot.lane.b32.xlu0 %v2029, 96
        %v2181 = vpop.permute.xlu0 %2180
        %2182 = vrot.lane.b32.xlu0 %v2034, 96
        %v2183 = vpop.permute.xlu0 %2182
        %2184 = vrot.lane.b32.xlu0 %v2039, 96
        %v2185 = vpop.permute.xlu0 %2184
        %v2187 = vsel %vm811, %v2074, 0
        %v2190 = vsel %vm811, %v2075, 0
        %v2193 = vsel %vm811, %v2076, 0
        %v2196 = vsel %vm811, %v2077, 0
        %v2199 = vsel %vm811, %v2078, 0
        %v2202 = vsel %vm811, %v2079, 0
        %v2205 = vsel %vm811, %v2080, 0
        %v2208 = vsel %vm811, %v2081, 0
        %v2211 = vsel %vm811, %v2082, 0
        %v2214 = vsel %vm811, %v2083, 0
        %v2217 = vsel %vm811, %v2084, 0
        %v2220 = vsel %vm811, %v2085, 0
        %v2223 = vsel %vm811, %v2086, 0
        %v2226 = vsel %vm811, %v2087, 0
        %v2229 = vsel %vm811, %v2088, 0
        %v2232 = vsel %vm811, %v2089, 0
        %v2235 = vsel %vm811, %v2090, 0
        %v2238 = vsel %vm811, %v2091, 0
        %v2241 = vsel %vm811, %v2092, 0
        %v2244 = vsel %vm811, %v2093, 0
        %v2247 = vsel %vm811, %v2094, 0
        %v2250 = vsel %vm811, %v2095, 0
        %v2253 = vsel %vm811, %v2096, 0
        %v2256 = vsel %vm811, %v2097, 0
        %v2259 = vsel %vm811, %v2098, 0
        %v2262 = vsel %vm811, %v2099, 0
        %v2265 = vsel %vm811, %v2100, 0
        %v2268 = vsel %vm811, %v2101, 0
        %v2271 = vsel %vm811, %v2102, 0
        %v2274 = vsel %vm811, %v2103, 0
        %v2277 = vsel %vm811, %v2104, 0
        %v2280 = vsel %vm811, %v2105, 0
        %v2282 = vsel %vm811, %v2155, 0
        %v2284 = vsel %vm811, %v2157, 0
        %v2286 = vsel %vm811, %v2159, 0
        %v2288 = vsel %vm811, %v2161, 0
        %v2290 = vsel %vm811, %v2163, 0
        %v2292 = vsel %vm811, %v2165, 0
        %v2294 = vsel %vm811, %v2167, 0
        %v2296 = vsel %vm811, %v2169, 0
        %v2298 = vsel %vm811, %v2171, 0
        %v2300 = vsel %vm811, %v2173, 0
        %v2302 = vsel %vm811, %v2175, 0
        %v2304 = vsel %vm811, %v2177, 0
        %v2306 = vsel %vm811, %v2179, 0
        %v2308 = vsel %vm811, %v2181, 0
        %v2310 = vsel %vm811, %v2183, 0
        %v2312 = vsel %vm811, %v2185, 0
        %2314 = vmatprep.subr.mxu0 0.0
        %2315 = vmatpush1.xpose.msra.mxu0 %v2312
        %2316 = vmatprep.subr.mxu0 0.0
        %2317 = vmatpush1.xpose.msra.mxu0 %v2310
        %2318 = vmatprep.subr.mxu0 0.0
        %2319 = vmatpush1.xpose.msra.mxu0 %v2308
        %2320 = vmatprep.subr.mxu0 0.0
        %2321 = vmatpush1.xpose.msra.mxu0 %v2306
        %2322 = vmatprep.subr.mxu0 0.0
        %2323 = vmatpush1.xpose.msra.mxu0 %v2304
        %2324 = vmatprep.subr.mxu0 0.0
        %2325 = vmatpush1.xpose.msra.mxu0 %v2302
        %2326 = vmatprep.subr.mxu0 0.0
        %2327 = vmatpush1.xpose.msra.mxu0 %v2300
        %2328 = vmatprep.subr.mxu0 0.0
        %2329 = vmatpush1.xpose.msra.mxu0 %v2298
        %2330 = vmatprep.subr.mxu0 0.0
        %2331 = vmatpush1.xpose.msra.mxu0 %v2296
        %2332 = vmatprep.subr.mxu0 0.0
        %2333 = vmatpush1.xpose.msra.mxu0 %v2294
        %2334 = vmatprep.subr.mxu0 0.0
        %2335 = vmatpush1.xpose.msra.mxu0 %v2292
        %2336 = vmatprep.subr.mxu0 0.0
        %2337 = vmatpush1.xpose.msra.mxu0 %v2290
        %2338 = vmatprep.subr.mxu0 0.0
        %2339 = vmatpush1.xpose.msra.mxu0 %v2288
        %2340 = vmatprep.subr.mxu0 0.0
        %2341 = vmatpush1.xpose.msra.mxu0 %v2286
        %2342 = vmatprep.subr.mxu0 0.0
        %2343 = vmatpush1.xpose.msra.mxu0 %v2284
        %2344 = vmatprep.subr.mxu0 0.0
        %2345 = vmatpush1.xpose.msra.mxu0 %v2282
        %2346 = vmatprep.subr.mxu0 0.0
        %2347 = vmatpush2.xpose.msra.mxu0 0.0
        %2348 = vmatprep.subr.mxu0 0.0
        %2349 = vmatpush2.xpose.msra.mxu0 0.0
        %2350 = vmatprep.subr.mxu0 0.0
        %2351 = vmatpush2.xpose.msra.mxu0 0.0
        %2352 = vmatprep.subr.mxu0 0.0
        %2353 = vmatpush2.xpose.msra.mxu0 0.0
        %2354 = vmatprep.subr.mxu0 0.0
        %2355 = vmatpush2.xpose.msra.mxu0 0.0
        %2356 = vmatprep.subr.mxu0 0.0
        %2357 = vmatpush2.xpose.msra.mxu0 0.0
        %2358 = vmatprep.subr.mxu0 0.0
        %2359 = vmatpush2.xpose.msra.mxu0 0.0
        %2360 = vmatprep.subr.mxu0 0.0
        %2361 = vmatpush2.xpose.msra.mxu0 0.0
        %2362 = vmatprep.subr.mxu0 0.0
        %2363 = vmatpush2.xpose.msra.mxu0 0.0
        %2364 = vmatprep.subr.mxu0 0.0
        %2365 = vmatpush2.xpose.msra.mxu0 0.0
        %2366 = vmatprep.subr.mxu0 0.0
        %2367 = vmatpush2.xpose.msra.mxu0 0.0
        %2368 = vmatprep.subr.mxu0 0.0
        %2369 = vmatpush2.xpose.msra.mxu0 0.0
        %2370 = vmatprep.subr.mxu0 0.0
        %2371 = vmatpush2.xpose.msra.mxu0 0.0
        %2372 = vmatprep.subr.mxu0 0.0
        %2373 = vmatpush2.xpose.msra.mxu0 0.0
        %2374 = vmatprep.subr.mxu0 0.0
        %2375 = vmatpush2.xpose.msra.mxu0 0.0
        %2376 = vmatprep.subr.mxu0 0.0
        %2377 = vmatpush2.xpose.msra.mxu0 0.0
        %2378 = vmatprep.mubr.f32.mxu0 0.0
        %2379 = vmatmul.mubr.f32.gmra.mxu0 %v2187
        %v2380 = vpop.f32.mrf.mxu0
        %v2381 = vadd.f32 %v2106, %v2380
        %v2382 = vpop.f32.mrf.mxu0
        %2383 = vmatprep.mubr.f32.mxu0 0.0
        %2384 = vmatmul.mubr.f32.gmra.mxu0 %v2190
        %v2385 = vpop.f32.mrf.mxu0
        %v2386 = vadd.f32 %v2107, %v2385
        %v2387 = vpop.f32.mrf.mxu0
        %2388 = vmatprep.mubr.f32.mxu0 0.0
        %2389 = vmatmul.mubr.f32.gmra.mxu0 %v2193
        %v2390 = vpop.f32.mrf.mxu0
        %v2391 = vadd.f32 %v2108, %v2390
        %v2392 = vpop.f32.mrf.mxu0
        %2393 = vmatprep.mubr.f32.mxu0 0.0
        %2394 = vmatmul.mubr.f32.gmra.mxu0 %v2196
        %v2395 = vpop.f32.mrf.mxu0
        %v2396 = vadd.f32 %v2109, %v2395
        %v2397 = vpop.f32.mrf.mxu0
        %2398 = vmatprep.mubr.f32.mxu0 0.0
        %2399 = vmatmul.mubr.f32.gmra.mxu0 %v2199
        %v2400 = vpop.f32.mrf.mxu0
        %v2401 = vadd.f32 %v2110, %v2400
        %v2402 = vpop.f32.mrf.mxu0
        %2403 = vmatprep.mubr.f32.mxu0 0.0
        %2404 = vmatmul.mubr.f32.gmra.mxu0 %v2202
        %v2405 = vpop.f32.mrf.mxu0
        %v2406 = vadd.f32 %v2111, %v2405
        %v2407 = vpop.f32.mrf.mxu0
        %2408 = vmatprep.mubr.f32.mxu0 0.0
        %2409 = vmatmul.mubr.f32.gmra.mxu0 %v2205
        %v2410 = vpop.f32.mrf.mxu0
        %v2411 = vadd.f32 %v2112, %v2410
        %v2412 = vpop.f32.mrf.mxu0
        %2413 = vmatprep.mubr.f32.mxu0 0.0
        %2414 = vmatmul.mubr.f32.gmra.mxu0 %v2208
        %v2415 = vpop.f32.mrf.mxu0
        %v2416 = vadd.f32 %v2113, %v2415
        %v2417 = vpop.f32.mrf.mxu0
        %2418 = vmatprep.mubr.f32.mxu0 0.0
        %2419 = vmatmul.mubr.f32.gmra.mxu0 %v2211
        %v2420 = vpop.f32.mrf.mxu0
        %v2421 = vadd.f32 %v2114, %v2420
        %v2422 = vpop.f32.mrf.mxu0
        %2423 = vmatprep.mubr.f32.mxu0 0.0
        %2424 = vmatmul.mubr.f32.gmra.mxu0 %v2214
        %v2425 = vpop.f32.mrf.mxu0
        %v2426 = vadd.f32 %v2115, %v2425
        %v2427 = vpop.f32.mrf.mxu0
        %2428 = vmatprep.mubr.f32.mxu0 0.0
        %2429 = vmatmul.mubr.f32.gmra.mxu0 %v2217
        %v2430 = vpop.f32.mrf.mxu0
        %v2431 = vadd.f32 %v2116, %v2430
        %v2432 = vpop.f32.mrf.mxu0
        %2433 = vmatprep.mubr.f32.mxu0 0.0
        %2434 = vmatmul.mubr.f32.gmra.mxu0 %v2220
        %v2435 = vpop.f32.mrf.mxu0
        %v2436 = vadd.f32 %v2117, %v2435
        %v2437 = vpop.f32.mrf.mxu0
        %2438 = vmatprep.mubr.f32.mxu0 0.0
        %2439 = vmatmul.mubr.f32.gmra.mxu0 %v2223
        %v2440 = vpop.f32.mrf.mxu0
        %v2441 = vadd.f32 %v2118, %v2440
        %v2442 = vpop.f32.mrf.mxu0
        %2443 = vmatprep.mubr.f32.mxu0 0.0
        %2444 = vmatmul.mubr.f32.gmra.mxu0 %v2226
        %v2445 = vpop.f32.mrf.mxu0
        %v2446 = vadd.f32 %v2119, %v2445
        %v2447 = vpop.f32.mrf.mxu0
        %2448 = vmatprep.mubr.f32.mxu0 0.0
        %2449 = vmatmul.mubr.f32.gmra.mxu0 %v2229
        %v2450 = vpop.f32.mrf.mxu0
        %v2451 = vadd.f32 %v2120, %v2450
        %v2452 = vpop.f32.mrf.mxu0
        %2453 = vmatprep.mubr.f32.mxu0 0.0
        %2454 = vmatmul.mubr.f32.gmra.mxu0 %v2232
        %v2455 = vpop.f32.mrf.mxu0
        %v2456 = vadd.f32 %v2121, %v2455
        %v2457 = vpop.f32.mrf.mxu0
        %2458 = vmatprep.mubr.f32.mxu0 0.0
        %2459 = vmatmul.mubr.f32.gmra.mxu0 %v2235
        %v2460 = vpop.f32.mrf.mxu0
        %v2461 = vadd.f32 %v2122, %v2460
        %v2462 = vpop.f32.mrf.mxu0
        %2463 = vmatprep.mubr.f32.mxu0 0.0
        %2464 = vmatmul.mubr.f32.gmra.mxu0 %v2238
        %v2465 = vpop.f32.mrf.mxu0
        %v2466 = vadd.f32 %v2123, %v2465
        %v2467 = vpop.f32.mrf.mxu0
        %2468 = vmatprep.mubr.f32.mxu0 0.0
        %2469 = vmatmul.mubr.f32.gmra.mxu0 %v2241
        %v2470 = vpop.f32.mrf.mxu0
        %v2471 = vadd.f32 %v2124, %v2470
        %v2472 = vpop.f32.mrf.mxu0
        %2473 = vmatprep.mubr.f32.mxu0 0.0
        %2474 = vmatmul.mubr.f32.gmra.mxu0 %v2244
        %v2475 = vpop.f32.mrf.mxu0
        %v2476 = vadd.f32 %v2125, %v2475
        %v2477 = vpop.f32.mrf.mxu0
        %2478 = vmatprep.mubr.f32.mxu0 0.0
        %2479 = vmatmul.mubr.f32.gmra.mxu0 %v2247
        %v2480 = vpop.f32.mrf.mxu0
        %v2481 = vadd.f32 %v2126, %v2480
        %v2482 = vpop.f32.mrf.mxu0
        %2483 = vmatprep.mubr.f32.mxu0 0.0
        %2484 = vmatmul.mubr.f32.gmra.mxu0 %v2250
        %v2485 = vpop.f32.mrf.mxu0
        %v2486 = vadd.f32 %v2127, %v2485
        %v2487 = vpop.f32.mrf.mxu0
        %2488 = vmatprep.mubr.f32.mxu0 0.0
        %2489 = vmatmul.mubr.f32.gmra.mxu0 %v2253
        %v2490 = vpop.f32.mrf.mxu0
        %v2491 = vadd.f32 %v2128, %v2490
        %v2492 = vpop.f32.mrf.mxu0
        %2493 = vmatprep.mubr.f32.mxu0 0.0
        %2494 = vmatmul.mubr.f32.gmra.mxu0 %v2256
        %v2495 = vpop.f32.mrf.mxu0
        %v2496 = vadd.f32 %v2129, %v2495
        %v2497 = vpop.f32.mrf.mxu0
        %2498 = vmatprep.mubr.f32.mxu0 0.0
        %2499 = vmatmul.mubr.f32.gmra.mxu0 %v2259
        %v2500 = vpop.f32.mrf.mxu0
        %v2501 = vadd.f32 %v2130, %v2500
        %v2502 = vpop.f32.mrf.mxu0
        %2503 = vmatprep.mubr.f32.mxu0 0.0
        %2504 = vmatmul.mubr.f32.gmra.mxu0 %v2262
        %v2505 = vpop.f32.mrf.mxu0
        %v2506 = vadd.f32 %v2131, %v2505
        %v2507 = vpop.f32.mrf.mxu0
        %2508 = vmatprep.mubr.f32.mxu0 0.0
        %2509 = vmatmul.mubr.f32.gmra.mxu0 %v2265
        %v2510 = vpop.f32.mrf.mxu0
        %v2511 = vadd.f32 %v2132, %v2510
        %v2512 = vpop.f32.mrf.mxu0
        %2513 = vmatprep.mubr.f32.mxu0 0.0
        %2514 = vmatmul.mubr.f32.gmra.mxu0 %v2268
        %v2515 = vpop.f32.mrf.mxu0
        %v2516 = vadd.f32 %v2133, %v2515
        %v2517 = vpop.f32.mrf.mxu0
        %2518 = vmatprep.mubr.f32.mxu0 0.0
        %2519 = vmatmul.mubr.f32.gmra.mxu0 %v2271
        %v2520 = vpop.f32.mrf.mxu0
        %v2521 = vadd.f32 %v2134, %v2520
        %v2522 = vpop.f32.mrf.mxu0
        %2523 = vmatprep.mubr.f32.mxu0 0.0
        %2524 = vmatmul.mubr.f32.gmra.mxu0 %v2274
        %v2525 = vpop.f32.mrf.mxu0
        %v2526 = vadd.f32 %v2135, %v2525
        %v2527 = vpop.f32.mrf.mxu0
        %2528 = vmatprep.mubr.f32.mxu0 0.0
        %2529 = vmatmul.mubr.f32.gmra.mxu0 %v2277
        %v2530 = vpop.f32.mrf.mxu0
        %v2531 = vadd.f32 %v2136, %v2530
        %v2532 = vpop.f32.mrf.mxu0
        %2533 = vmatprep.mubr.f32.mxu0 0.0
        %2534 = vmatmul.mubr.f32.gmra.mxu0 %v2280
        %v2535 = vpop.f32.mrf.mxu0
        %v2536 = vadd.f32 %v2137, %v2535
        %v2537 = vpop.f32.mrf.mxu0
        %2538 = vdwg.mxu0
        %2539 = vmax.xlane.f32.xlu0 %v2381
        %v2540 = vpop.xlane.xlu0 %2539
        %2541 = vmax.xlane.f32.xlu0 %v2386
        %v2542 = vpop.xlane.xlu0 %2541
        %2543 = vmax.xlane.f32.xlu0 %v2391
        %v2544 = vpop.xlane.xlu0 %2543
        %2545 = vmax.xlane.f32.xlu0 %v2396
        %v2546 = vpop.xlane.xlu0 %2545
        %2547 = vmax.xlane.f32.xlu0 %v2401
        %v2548 = vpop.xlane.xlu0 %2547
        %2549 = vmax.xlane.f32.xlu0 %v2406
        %v2550 = vpop.xlane.xlu0 %2549
        %2551 = vmax.xlane.f32.xlu0 %v2411
        %v2552 = vpop.xlane.xlu0 %2551
        %2553 = vmax.xlane.f32.xlu0 %v2416
        %v2554 = vpop.xlane.xlu0 %2553
        %2555 = vmax.xlane.f32.xlu0 %v2421
        %v2556 = vpop.xlane.xlu0 %2555
        %2557 = vmax.xlane.f32.xlu0 %v2426
        %v2558 = vpop.xlane.xlu0 %2557
        %2559 = vmax.xlane.f32.xlu0 %v2431
        %v2560 = vpop.xlane.xlu0 %2559
        %2561 = vmax.xlane.f32.xlu0 %v2436
        %v2562 = vpop.xlane.xlu0 %2561
        %2563 = vmax.xlane.f32.xlu0 %v2441
        %v2564 = vpop.xlane.xlu0 %2563
        %2565 = vmax.xlane.f32.xlu0 %v2446
        %v2566 = vpop.xlane.xlu0 %2565
        %2567 = vmax.xlane.f32.xlu0 %v2451
        %v2568 = vpop.xlane.xlu0 %2567
        %2569 = vmax.xlane.f32.xlu0 %v2456
        %v2570 = vpop.xlane.xlu0 %2569
        %2571 = vmax.xlane.f32.xlu0 %v2461
        %v2572 = vpop.xlane.xlu0 %2571
        %2573 = vmax.xlane.f32.xlu0 %v2466
        %v2574 = vpop.xlane.xlu0 %2573
        %2575 = vmax.xlane.f32.xlu0 %v2471
        %v2576 = vpop.xlane.xlu0 %2575
        %2577 = vmax.xlane.f32.xlu0 %v2476
        %v2578 = vpop.xlane.xlu0 %2577
        %2579 = vmax.xlane.f32.xlu0 %v2481
        %v2580 = vpop.xlane.xlu0 %2579
        %2581 = vmax.xlane.f32.xlu0 %v2486
        %v2582 = vpop.xlane.xlu0 %2581
        %2583 = vmax.xlane.f32.xlu0 %v2491
        %v2584 = vpop.xlane.xlu0 %2583
        %2585 = vmax.xlane.f32.xlu0 %v2496
        %v2586 = vpop.xlane.xlu0 %2585
        %2587 = vmax.xlane.f32.xlu0 %v2501
        %v2588 = vpop.xlane.xlu0 %2587
        %2589 = vmax.xlane.f32.xlu0 %v2506
        %v2590 = vpop.xlane.xlu0 %2589
        %2591 = vmax.xlane.f32.xlu0 %v2511
        %v2592 = vpop.xlane.xlu0 %2591
        %2593 = vmax.xlane.f32.xlu0 %v2516
        %v2594 = vpop.xlane.xlu0 %2593
        %2595 = vmax.xlane.f32.xlu0 %v2521
        %v2596 = vpop.xlane.xlu0 %2595
        %2597 = vmax.xlane.f32.xlu0 %v2526
        %v2598 = vpop.xlane.xlu0 %2597
        %2599 = vmax.xlane.f32.xlu0 %v2531
        %v2600 = vpop.xlane.xlu0 %2599
        %2601 = vmax.xlane.f32.xlu0 %v2536
        %v2602 = vpop.xlane.xlu0 %2601
        %v2603 = vsub.f32 %v2381, %v2540
        %v2604 = vsub.f32 %v2386, %v2542
        %v2605 = vsub.f32 %v2391, %v2544
        %v2606 = vsub.f32 %v2396, %v2546
        %v2607 = vsub.f32 %v2401, %v2548
        %v2608 = vsub.f32 %v2406, %v2550
        %v2609 = vsub.f32 %v2411, %v2552
        %v2610 = vsub.f32 %v2416, %v2554
        %v2611 = vsub.f32 %v2421, %v2556
        %v2612 = vsub.f32 %v2426, %v2558
        %v2613 = vsub.f32 %v2431, %v2560
        %v2614 = vsub.f32 %v2436, %v2562
        %v2615 = vsub.f32 %v2441, %v2564
        %v2616 = vsub.f32 %v2446, %v2566
        %v2617 = vsub.f32 %v2451, %v2568
        %v2618 = vsub.f32 %v2456, %v2570
        %v2619 = vsub.f32 %v2461, %v2572
        %v2620 = vsub.f32 %v2466, %v2574
        %v2621 = vsub.f32 %v2471, %v2576
        %v2622 = vsub.f32 %v2476, %v2578
        %v2623 = vsub.f32 %v2481, %v2580
        %v2624 = vsub.f32 %v2486, %v2582
        %v2625 = vsub.f32 %v2491, %v2584
        %v2626 = vsub.f32 %v2496, %v2586
        %v2627 = vsub.f32 %v2501, %v2588
        %v2628 = vsub.f32 %v2506, %v2590
        %v2629 = vsub.f32 %v2511, %v2592
        %v2630 = vsub.f32 %v2516, %v2594
        %v2631 = vsub.f32 %v2521, %v2596
        %v2632 = vsub.f32 %v2526, %v2598
        %v2633 = vsub.f32 %v2531, %v2600
        %v2634 = vsub.f32 %v2536, %v2602
        %v2635 = vmul.f32 %v2603, 1.442695
        %v2636 = vpow.pop %v2635
        %v2637 = vmul.f32 %v2604, 1.442695
        %v2638 = vpow.pop %v2637
        %v2639 = vmul.f32 %v2605, 1.442695
        %v2640 = vpow.pop %v2639
        %v2641 = vmul.f32 %v2606, 1.442695
        %v2642 = vpow.pop %v2641
        %v2643 = vmul.f32 %v2607, 1.442695
        %v2644 = vpow.pop %v2643
        %v2645 = vmul.f32 %v2608, 1.442695
        %v2646 = vpow.pop %v2645
        %v2647 = vmul.f32 %v2609, 1.442695
        %v2648 = vpow.pop %v2647
        %v2649 = vmul.f32 %v2610, 1.442695
        %v2650 = vpow.pop %v2649
        %v2651 = vmul.f32 %v2611, 1.442695
        %v2652 = vpow.pop %v2651
        %v2653 = vmul.f32 %v2612, 1.442695
        %v2654 = vpow.pop %v2653
        %v2655 = vmul.f32 %v2613, 1.442695
        %v2656 = vpow.pop %v2655
        %v2657 = vmul.f32 %v2614, 1.442695
        %v2658 = vpow.pop %v2657
        %v2659 = vmul.f32 %v2615, 1.442695
        %v2660 = vpow.pop %v2659
        %v2661 = vmul.f32 %v2616, 1.442695
        %v2662 = vpow.pop %v2661
        %v2663 = vmul.f32 %v2617, 1.442695
        %v2664 = vpow.pop %v2663
        %v2665 = vmul.f32 %v2618, 1.442695
        %v2666 = vpow.pop %v2665
        %v2667 = vmul.f32 %v2619, 1.442695
        %v2668 = vpow.pop %v2667
        %v2669 = vmul.f32 %v2620, 1.442695
        %v2670 = vpow.pop %v2669
        %v2671 = vmul.f32 %v2621, 1.442695
        %v2672 = vpow.pop %v2671
        %v2673 = vmul.f32 %v2622, 1.442695
        %v2674 = vpow.pop %v2673
        %v2675 = vmul.f32 %v2623, 1.442695
        %v2676 = vpow.pop %v2675
        %v2677 = vmul.f32 %v2624, 1.442695
        %v2678 = vpow.pop %v2677
        %v2679 = vmul.f32 %v2625, 1.442695
        %v2680 = vpow.pop %v2679
        %v2681 = vmul.f32 %v2626, 1.442695
        %v2682 = vpow.pop %v2681
        %v2683 = vmul.f32 %v2627, 1.442695
        %v2684 = vpow.pop %v2683
        %v2685 = vmul.f32 %v2628, 1.442695
        %v2686 = vpow.pop %v2685
        %v2687 = vmul.f32 %v2629, 1.442695
        %v2688 = vpow.pop %v2687
        %v2689 = vmul.f32 %v2630, 1.442695
        %v2690 = vpow.pop %v2689
        %v2691 = vmul.f32 %v2631, 1.442695
        %v2692 = vpow.pop %v2691
        %v2693 = vmul.f32 %v2632, 1.442695
        %v2694 = vpow.pop %v2693
        %v2695 = vmul.f32 %v2633, 1.442695
        %v2696 = vpow.pop %v2695
        %v2697 = vmul.f32 %v2634, 1.442695
        %v2698 = vpow.pop %v2697
        %2699 = vadd.xlane.f32.xlu0 %v2636
        %v2700 = vpop.xlane.xlu0 %2699
        %2701 = vadd.xlane.f32.xlu0 %v2638
        %v2702 = vpop.xlane.xlu0 %2701
        %2703 = vadd.xlane.f32.xlu0 %v2640
        %v2704 = vpop.xlane.xlu0 %2703
        %2705 = vadd.xlane.f32.xlu0 %v2642
        %v2706 = vpop.xlane.xlu0 %2705
        %2707 = vadd.xlane.f32.xlu0 %v2644
        %v2708 = vpop.xlane.xlu0 %2707
        %2709 = vadd.xlane.f32.xlu0 %v2646
        %v2710 = vpop.xlane.xlu0 %2709
        %2711 = vadd.xlane.f32.xlu0 %v2648
        %v2712 = vpop.xlane.xlu0 %2711
        %2713 = vadd.xlane.f32.xlu0 %v2650
        %v2714 = vpop.xlane.xlu0 %2713
        %2715 = vadd.xlane.f32.xlu0 %v2652
        %v2716 = vpop.xlane.xlu0 %2715
        %2717 = vadd.xlane.f32.xlu0 %v2654
        %v2718 = vpop.xlane.xlu0 %2717
        %2719 = vadd.xlane.f32.xlu0 %v2656
        %v2720 = vpop.xlane.xlu0 %2719
        %2721 = vadd.xlane.f32.xlu0 %v2658
        %v2722 = vpop.xlane.xlu0 %2721
        %2723 = vadd.xlane.f32.xlu0 %v2660
        %v2724 = vpop.xlane.xlu0 %2723
        %2725 = vadd.xlane.f32.xlu0 %v2662
        %v2726 = vpop.xlane.xlu0 %2725
        %2727 = vadd.xlane.f32.xlu0 %v2664
        %v2728 = vpop.xlane.xlu0 %2727
        %2729 = vadd.xlane.f32.xlu0 %v2666
        %v2730 = vpop.xlane.xlu0 %2729
        %2731 = vadd.xlane.f32.xlu0 %v2668
        %v2732 = vpop.xlane.xlu0 %2731
        %2733 = vadd.xlane.f32.xlu0 %v2670
        %v2734 = vpop.xlane.xlu0 %2733
        %2735 = vadd.xlane.f32.xlu0 %v2672
        %v2736 = vpop.xlane.xlu0 %2735
        %2737 = vadd.xlane.f32.xlu0 %v2674
        %v2738 = vpop.xlane.xlu0 %2737
        %2739 = vadd.xlane.f32.xlu0 %v2676
        %v2740 = vpop.xlane.xlu0 %2739
        %2741 = vadd.xlane.f32.xlu0 %v2678
        %v2742 = vpop.xlane.xlu0 %2741
        %2743 = vadd.xlane.f32.xlu0 %v2680
        %v2744 = vpop.xlane.xlu0 %2743
        %2745 = vadd.xlane.f32.xlu0 %v2682
        %v2746 = vpop.xlane.xlu0 %2745
        %2747 = vadd.xlane.f32.xlu0 %v2684
        %v2748 = vpop.xlane.xlu0 %2747
        %2749 = vadd.xlane.f32.xlu0 %v2686
        %v2750 = vpop.xlane.xlu0 %2749
        %2751 = vadd.xlane.f32.xlu0 %v2688
        %v2752 = vpop.xlane.xlu0 %2751
        %2753 = vadd.xlane.f32.xlu0 %v2690
        %v2754 = vpop.xlane.xlu0 %2753
        %2755 = vadd.xlane.f32.xlu0 %v2692
        %v2756 = vpop.xlane.xlu0 %2755
        %2757 = vadd.xlane.f32.xlu0 %v2694
        %v2758 = vpop.xlane.xlu0 %2757
        %2759 = vadd.xlane.f32.xlu0 %v2696
        %v2760 = vpop.xlane.xlu0 %2759
        %2761 = vadd.xlane.f32.xlu0 %v2698
        %v2762 = vpop.xlane.xlu0 %2761
        %v2763 = vrcp.pop %v2700
        %v2764 = vrcp.pop %v2702
        %v2765 = vrcp.pop %v2704
        %v2766 = vrcp.pop %v2706
        %v2767 = vrcp.pop %v2708
        %v2768 = vrcp.pop %v2710
        %v2769 = vrcp.pop %v2712
        %v2770 = vrcp.pop %v2714
        %v2771 = vrcp.pop %v2716
        %v2772 = vrcp.pop %v2718
        %v2773 = vrcp.pop %v2720
        %v2774 = vrcp.pop %v2722
        %v2775 = vrcp.pop %v2724
        %v2776 = vrcp.pop %v2726
        %v2777 = vrcp.pop %v2728
        %v2778 = vrcp.pop %v2730
        %v2779 = vrcp.pop %v2732
        %v2780 = vrcp.pop %v2734
        %v2781 = vrcp.pop %v2736
        %v2782 = vrcp.pop %v2738
        %v2783 = vrcp.pop %v2740
        %v2784 = vrcp.pop %v2742
        %v2785 = vrcp.pop %v2744
        %v2786 = vrcp.pop %v2746
        %v2787 = vrcp.pop %v2748
        %v2788 = vrcp.pop %v2750
        %v2789 = vrcp.pop %v2752
        %v2790 = vrcp.pop %v2754
        %v2791 = vrcp.pop %v2756
        %v2792 = vrcp.pop %v2758
        %v2793 = vrcp.pop %v2760
        %v2794 = vrcp.pop %v2762
        %v2795 = vmul.f32 %v2636, %v2763
        %v2796 = vmul.f32 %v2638, %v2764
        %v2797 = vmul.f32 %v2640, %v2765
        %v2798 = vmul.f32 %v2642, %v2766
        %v2799 = vmul.f32 %v2644, %v2767
        %v2800 = vmul.f32 %v2646, %v2768
        %v2801 = vmul.f32 %v2648, %v2769
        %v2802 = vmul.f32 %v2650, %v2770
        %v2803 = vmul.f32 %v2652, %v2771
        %v2804 = vmul.f32 %v2654, %v2772
        %v2805 = vmul.f32 %v2656, %v2773
        %v2806 = vmul.f32 %v2658, %v2774
        %v2807 = vmul.f32 %v2660, %v2775
        %v2808 = vmul.f32 %v2662, %v2776
        %v2809 = vmul.f32 %v2664, %v2777
        %v2810 = vmul.f32 %v2666, %v2778
        %v2811 = vmul.f32 %v2668, %v2779
        %v2812 = vmul.f32 %v2670, %v2780
        %v2813 = vmul.f32 %v2672, %v2781
        %v2814 = vmul.f32 %v2674, %v2782
        %v2815 = vmul.f32 %v2676, %v2783
        %v2816 = vmul.f32 %v2678, %v2784
        %v2817 = vmul.f32 %v2680, %v2785
        %v2818 = vmul.f32 %v2682, %v2786
        %v2819 = vmul.f32 %v2684, %v2787
        %v2820 = vmul.f32 %v2686, %v2788
        %v2821 = vmul.f32 %v2688, %v2789
        %v2822 = vmul.f32 %v2690, %v2790
        %v2823 = vmul.f32 %v2692, %v2791
        %v2824 = vmul.f32 %v2694, %v2792
        %v2825 = vmul.f32 %v2696, %v2793
        %v2826 = vmul.f32 %v2698, %v2794
        %2827 = vrot.lane.b32.xlu0 %v1964, 64
        %v2828 = vpop.permute.xlu0 %2827
        %2829 = vrot.lane.b32.xlu0 %v1969, 64
        %v2830 = vpop.permute.xlu0 %2829
        %2831 = vrot.lane.b32.xlu0 %v1974, 64
        %v2832 = vpop.permute.xlu0 %2831
        %2833 = vrot.lane.b32.xlu0 %v1979, 64
        %v2834 = vpop.permute.xlu0 %2833
        %2835 = vrot.lane.b32.xlu0 %v1984, 64
        %v2836 = vpop.permute.xlu0 %2835
        %2837 = vrot.lane.b32.xlu0 %v1989, 64
        %v2838 = vpop.permute.xlu0 %2837
        %2839 = vrot.lane.b32.xlu0 %v1994, 64
        %v2840 = vpop.permute.xlu0 %2839
        %2841 = vrot.lane.b32.xlu0 %v1999, 64
        %v2842 = vpop.permute.xlu0 %2841
        %2843 = vrot.lane.b32.xlu0 %v2004, 64
        %v2844 = vpop.permute.xlu0 %2843
        %2845 = vrot.lane.b32.xlu0 %v2009, 64
        %v2846 = vpop.permute.xlu0 %2845
        %2847 = vrot.lane.b32.xlu0 %v2014, 64
        %v2848 = vpop.permute.xlu0 %2847
        %2849 = vrot.lane.b32.xlu0 %v2019, 64
        %v2850 = vpop.permute.xlu0 %2849
        %2851 = vrot.lane.b32.xlu0 %v2024, 64
        %v2852 = vpop.permute.xlu0 %2851
        %2853 = vrot.lane.b32.xlu0 %v2029, 64
        %v2854 = vpop.permute.xlu0 %2853
        %2855 = vrot.lane.b32.xlu0 %v2034, 64
        %v2856 = vpop.permute.xlu0 %2855
        %2857 = vrot.lane.b32.xlu0 %v2039, 64
        %v2858 = vpop.permute.xlu0 %2857
        %2875 = vmatprep.subr.mxu0 0.0
        %2876 = vmatpush1.msra.mxu0 %v2858
        %2877 = vmatprep.subr.mxu0 0.0
        %2878 = vmatpush1.msra.mxu0 %v2856
        %2879 = vmatprep.subr.mxu0 0.0
        %2880 = vmatpush1.msra.mxu0 %v2854
        %2881 = vmatprep.subr.mxu0 0.0
        %2882 = vmatpush1.msra.mxu0 %v2852
        %2883 = vmatprep.subr.mxu0 0.0
        %2884 = vmatpush1.msra.mxu0 %v2850
        %2885 = vmatprep.subr.mxu0 0.0
        %2886 = vmatpush1.msra.mxu0 %v2848
        %2887 = vmatprep.subr.mxu0 0.0
        %2888 = vmatpush1.msra.mxu0 %v2846
        %2889 = vmatprep.subr.mxu0 0.0
        %2890 = vmatpush1.msra.mxu0 %v2844
        %2891 = vmatprep.subr.mxu0 0.0
        %2892 = vmatpush1.msra.mxu0 %v2842
        %2893 = vmatprep.subr.mxu0 0.0
        %2894 = vmatpush1.msra.mxu0 %v2840
        %2895 = vmatprep.subr.mxu0 0.0
        %2896 = vmatpush1.msra.mxu0 %v2838
        %2897 = vmatprep.subr.mxu0 0.0
        %2898 = vmatpush1.msra.mxu0 %v2836
        %2899 = vmatprep.subr.mxu0 0.0
        %2900 = vmatpush1.msra.mxu0 %v2834
        %2901 = vmatprep.subr.mxu0 0.0
        %2902 = vmatpush1.msra.mxu0 %v2832
        %2903 = vmatprep.subr.mxu0 0.0
        %2904 = vmatpush1.msra.mxu0 %v2830
        %2905 = vmatprep.subr.mxu0 0.0
        %2906 = vmatpush1.msra.mxu0 %v2828
        %2907 = vmatprep.subr.mxu0 0.0
        %2908 = vmatpush2.msra.mxu0 0.0
        %2909 = vmatprep.subr.mxu0 0.0
        %2910 = vmatpush2.msra.mxu0 0.0
        %2911 = vmatprep.subr.mxu0 0.0
        %2912 = vmatpush2.msra.mxu0 0.0
        %2913 = vmatprep.subr.mxu0 0.0
        %2914 = vmatpush2.msra.mxu0 0.0
        %2915 = vmatprep.subr.mxu0 0.0
        %2916 = vmatpush2.msra.mxu0 0.0
        %2917 = vmatprep.subr.mxu0 0.0
        %2918 = vmatpush2.msra.mxu0 0.0
        %2919 = vmatprep.subr.mxu0 0.0
        %2920 = vmatpush2.msra.mxu0 0.0
        %2921 = vmatprep.subr.mxu0 0.0
        %2922 = vmatpush2.msra.mxu0 0.0
        %2923 = vmatprep.subr.mxu0 0.0
        %2924 = vmatpush2.msra.mxu0 0.0
        %2925 = vmatprep.subr.mxu0 0.0
        %2926 = vmatpush2.msra.mxu0 0.0
        %2927 = vmatprep.subr.mxu0 0.0
        %2928 = vmatpush2.msra.mxu0 0.0
        %2929 = vmatprep.subr.mxu0 0.0
        %2930 = vmatpush2.msra.mxu0 0.0
        %2931 = vmatprep.subr.mxu0 0.0
        %2932 = vmatpush2.msra.mxu0 0.0
        %2933 = vmatprep.subr.mxu0 0.0
        %2934 = vmatpush2.msra.mxu0 0.0
        %2935 = vmatprep.subr.mxu0 0.0
        %2936 = vmatpush2.msra.mxu0 0.0
        %2937 = vmatprep.subr.mxu0 0.0
        %2938 = vmatpush2.msra.mxu0 0.0
        %2939 = vmatprep.mubr.f32.mxu0 0.0
        %2940 = vmatmul.mubr.f32.gmra.mxu0 %v2795
        %v2941 = vpop.f32.mrf.mxu0
        %v2942 = vadd.f32 0.0, %v2941
        %v2943 = vpop.f32.mrf.mxu0
        %2944 = vmatprep.mubr.f32.mxu0 0.0
        %2945 = vmatmul.mubr.f32.gmra.mxu0 %v2796
        %v2946 = vpop.f32.mrf.mxu0
        %v2947 = vadd.f32 0.0, %v2946
        %v2948 = vpop.f32.mrf.mxu0
        %2949 = vmatprep.mubr.f32.mxu0 0.0
        %2950 = vmatmul.mubr.f32.gmra.mxu0 %v2797
        %v2951 = vpop.f32.mrf.mxu0
        %v2952 = vadd.f32 0.0, %v2951
        %v2953 = vpop.f32.mrf.mxu0
        %2954 = vmatprep.mubr.f32.mxu0 0.0
        %2955 = vmatmul.mubr.f32.gmra.mxu0 %v2798
        %v2956 = vpop.f32.mrf.mxu0
        %v2957 = vadd.f32 0.0, %v2956
        %v2958 = vpop.f32.mrf.mxu0
        %2959 = vmatprep.mubr.f32.mxu0 0.0
        %2960 = vmatmul.mubr.f32.gmra.mxu0 %v2799
        %v2961 = vpop.f32.mrf.mxu0
        %v2962 = vadd.f32 0.0, %v2961
        %v2963 = vpop.f32.mrf.mxu0
        %2964 = vmatprep.mubr.f32.mxu0 0.0
        %2965 = vmatmul.mubr.f32.gmra.mxu0 %v2800
        %v2966 = vpop.f32.mrf.mxu0
        %v2967 = vadd.f32 0.0, %v2966
        %v2968 = vpop.f32.mrf.mxu0
        %2969 = vmatprep.mubr.f32.mxu0 0.0
        %2970 = vmatmul.mubr.f32.gmra.mxu0 %v2801
        %v2971 = vpop.f32.mrf.mxu0
        %v2972 = vadd.f32 0.0, %v2971
        %v2973 = vpop.f32.mrf.mxu0
        %2974 = vmatprep.mubr.f32.mxu0 0.0
        %2975 = vmatmul.mubr.f32.gmra.mxu0 %v2802
        %v2976 = vpop.f32.mrf.mxu0
        %v2977 = vadd.f32 0.0, %v2976
        %v2978 = vpop.f32.mrf.mxu0
        %2979 = vmatprep.mubr.f32.mxu0 0.0
        %2980 = vmatmul.mubr.f32.gmra.mxu0 %v2803
        %v2981 = vpop.f32.mrf.mxu0
        %v2982 = vadd.f32 0.0, %v2981
        %v2983 = vpop.f32.mrf.mxu0
        %2984 = vmatprep.mubr.f32.mxu0 0.0
        %2985 = vmatmul.mubr.f32.gmra.mxu0 %v2804
        %v2986 = vpop.f32.mrf.mxu0
        %v2987 = vadd.f32 0.0, %v2986
        %v2988 = vpop.f32.mrf.mxu0
        %2989 = vmatprep.mubr.f32.mxu0 0.0
        %2990 = vmatmul.mubr.f32.gmra.mxu0 %v2805
        %v2991 = vpop.f32.mrf.mxu0
        %v2992 = vadd.f32 0.0, %v2991
        %v2993 = vpop.f32.mrf.mxu0
        %2994 = vmatprep.mubr.f32.mxu0 0.0
        %2995 = vmatmul.mubr.f32.gmra.mxu0 %v2806
        %v2996 = vpop.f32.mrf.mxu0
        %v2997 = vadd.f32 0.0, %v2996
        %v2998 = vpop.f32.mrf.mxu0
        %2999 = vmatprep.mubr.f32.mxu0 0.0
        %3000 = vmatmul.mubr.f32.gmra.mxu0 %v2807
        %v3001 = vpop.f32.mrf.mxu0
        %v3002 = vadd.f32 0.0, %v3001
        %v3003 = vpop.f32.mrf.mxu0
        %3004 = vmatprep.mubr.f32.mxu0 0.0
        %3005 = vmatmul.mubr.f32.gmra.mxu0 %v2808
        %v3006 = vpop.f32.mrf.mxu0
        %v3007 = vadd.f32 0.0, %v3006
        %v3008 = vpop.f32.mrf.mxu0
        %3009 = vmatprep.mubr.f32.mxu0 0.0
        %3010 = vmatmul.mubr.f32.gmra.mxu0 %v2809
        %v3011 = vpop.f32.mrf.mxu0
        %v3012 = vadd.f32 0.0, %v3011
        %v3013 = vpop.f32.mrf.mxu0
        %3014 = vmatprep.mubr.f32.mxu0 0.0
        %3015 = vmatmul.mubr.f32.gmra.mxu0 %v2810
        %v3016 = vpop.f32.mrf.mxu0
        %v3017 = vadd.f32 0.0, %v3016
        %v3018 = vpop.f32.mrf.mxu0
        %3019 = vmatprep.mubr.f32.mxu0 0.0
        %3020 = vmatmul.mubr.f32.gmra.mxu0 %v2811
        %v3021 = vpop.f32.mrf.mxu0
        %v3022 = vadd.f32 0.0, %v3021
        %v3023 = vpop.f32.mrf.mxu0
        %3024 = vmatprep.mubr.f32.mxu0 0.0
        %3025 = vmatmul.mubr.f32.gmra.mxu0 %v2812
        %v3026 = vpop.f32.mrf.mxu0
        %v3027 = vadd.f32 0.0, %v3026
        %v3028 = vpop.f32.mrf.mxu0
        %3029 = vmatprep.mubr.f32.mxu0 0.0
        %3030 = vmatmul.mubr.f32.gmra.mxu0 %v2813
        %v3031 = vpop.f32.mrf.mxu0
        %v3032 = vadd.f32 0.0, %v3031
        %v3033 = vpop.f32.mrf.mxu0
        %3034 = vmatprep.mubr.f32.mxu0 0.0
        %3035 = vmatmul.mubr.f32.gmra.mxu0 %v2814
        %v3036 = vpop.f32.mrf.mxu0
        %v3037 = vadd.f32 0.0, %v3036
        %v3038 = vpop.f32.mrf.mxu0
        %3039 = vmatprep.mubr.f32.mxu0 0.0
        %3040 = vmatmul.mubr.f32.gmra.mxu0 %v2815
        %v3041 = vpop.f32.mrf.mxu0
        %v3042 = vadd.f32 0.0, %v3041
        %v3043 = vpop.f32.mrf.mxu0
        %3044 = vmatprep.mubr.f32.mxu0 0.0
        %3045 = vmatmul.mubr.f32.gmra.mxu0 %v2816
        %v3046 = vpop.f32.mrf.mxu0
        %v3047 = vadd.f32 0.0, %v3046
        %v3048 = vpop.f32.mrf.mxu0
        %3049 = vmatprep.mubr.f32.mxu0 0.0
        %3050 = vmatmul.mubr.f32.gmra.mxu0 %v2817
        %v3051 = vpop.f32.mrf.mxu0
        %v3052 = vadd.f32 0.0, %v3051
        %v3053 = vpop.f32.mrf.mxu0
        %3054 = vmatprep.mubr.f32.mxu0 0.0
        %3055 = vmatmul.mubr.f32.gmra.mxu0 %v2818
        %v3056 = vpop.f32.mrf.mxu0
        %v3057 = vadd.f32 0.0, %v3056
        %v3058 = vpop.f32.mrf.mxu0
        %3059 = vmatprep.mubr.f32.mxu0 0.0
        %3060 = vmatmul.mubr.f32.gmra.mxu0 %v2819
        %v3061 = vpop.f32.mrf.mxu0
        %v3062 = vadd.f32 0.0, %v3061
        %v3063 = vpop.f32.mrf.mxu0
        %3064 = vmatprep.mubr.f32.mxu0 0.0
        %3065 = vmatmul.mubr.f32.gmra.mxu0 %v2820
        %v3066 = vpop.f32.mrf.mxu0
        %v3067 = vadd.f32 0.0, %v3066
        %v3068 = vpop.f32.mrf.mxu0
        %3069 = vmatprep.mubr.f32.mxu0 0.0
        %3070 = vmatmul.mubr.f32.gmra.mxu0 %v2821
        %v3071 = vpop.f32.mrf.mxu0
        %v3072 = vadd.f32 0.0, %v3071
        %v3073 = vpop.f32.mrf.mxu0
        %3074 = vmatprep.mubr.f32.mxu0 0.0
        %3075 = vmatmul.mubr.f32.gmra.mxu0 %v2822
        %v3076 = vpop.f32.mrf.mxu0
        %v3077 = vadd.f32 0.0, %v3076
        %v3078 = vpop.f32.mrf.mxu0
        %3079 = vmatprep.mubr.f32.mxu0 0.0
        %3080 = vmatmul.mubr.f32.gmra.mxu0 %v2823
        %v3081 = vpop.f32.mrf.mxu0
        %v3082 = vadd.f32 0.0, %v3081
        %v3083 = vpop.f32.mrf.mxu0
        %3084 = vmatprep.mubr.f32.mxu0 0.0
        %3085 = vmatmul.mubr.f32.gmra.mxu0 %v2824
        %v3086 = vpop.f32.mrf.mxu0
        %v3087 = vadd.f32 0.0, %v3086
        %v3088 = vpop.f32.mrf.mxu0
        %3089 = vmatprep.mubr.f32.mxu0 0.0
        %3090 = vmatmul.mubr.f32.gmra.mxu0 %v2825
        %v3091 = vpop.f32.mrf.mxu0
        %v3092 = vadd.f32 0.0, %v3091
        %v3093 = vpop.f32.mrf.mxu0
        %3094 = vmatprep.mubr.f32.mxu0 0.0
        %3095 = vmatmul.mubr.f32.gmra.mxu0 %v2826
        %v3096 = vpop.f32.mrf.mxu0
        %v3097 = vadd.f32 0.0, %v3096
        %v3098 = vpop.f32.mrf.mxu0
        %3099 = vdwg.mxu0
        %v3100 = vmul.f32 %v2942, %v2042
        %v3101 = vmul.f32 %v2947, %v2043
        %v3102 = vmul.f32 %v2952, %v2044
        %v3103 = vmul.f32 %v2957, %v2045
        %v3104 = vmul.f32 %v2962, %v2046
        %v3105 = vmul.f32 %v2967, %v2047
        %v3106 = vmul.f32 %v2972, %v2048
        %v3107 = vmul.f32 %v2977, %v2049
        %v3108 = vmul.f32 %v2982, %v2050
        %v3109 = vmul.f32 %v2987, %v2051
        %v3110 = vmul.f32 %v2992, %v2052
        %v3111 = vmul.f32 %v2997, %v2053
        %v3112 = vmul.f32 %v3002, %v2054
        %v3113 = vmul.f32 %v3007, %v2055
        %v3114 = vmul.f32 %v3012, %v2056
        %v3115 = vmul.f32 %v3017, %v2057
        %v3116 = vmul.f32 %v3022, %v2058
        %v3117 = vmul.f32 %v3027, %v2059
        %v3118 = vmul.f32 %v3032, %v2060
        %v3119 = vmul.f32 %v3037, %v2061
        %v3120 = vmul.f32 %v3042, %v2062
        %v3121 = vmul.f32 %v3047, %v2063
        %v3122 = vmul.f32 %v3052, %v2064
        %v3123 = vmul.f32 %v3057, %v2065
        %v3124 = vmul.f32 %v3062, %v2066
        %v3125 = vmul.f32 %v3067, %v2067
        %v3126 = vmul.f32 %v3072, %v2068
        %v3127 = vmul.f32 %v3077, %v2069
        %v3128 = vmul.f32 %v3082, %v2070
        %v3129 = vmul.f32 %v3087, %v2071
        %v3130 = vmul.f32 %v3092, %v2072
        %v3131 = vmul.f32 %v3097, %v2073
        %v3132 = vadd.f32 %v3100, %v3116
        %v3133 = vadd.f32 %v3101, %v3117
        %v3134 = vadd.f32 %v3102, %v3118
        %v3135 = vadd.f32 %v3103, %v3119
        %v3136 = vadd.f32 %v3104, %v3120
        %v3137 = vadd.f32 %v3105, %v3121
        %v3138 = vadd.f32 %v3106, %v3122
        %v3139 = vadd.f32 %v3107, %v3123
        %v3140 = vadd.f32 %v3108, %v3124
        %v3141 = vadd.f32 %v3109, %v3125
        %v3142 = vadd.f32 %v3110, %v3126
        %v3143 = vadd.f32 %v3111, %v3127
        %v3144 = vadd.f32 %v3112, %v3128
        %v3145 = vadd.f32 %v3113, %v3129
        %v3146 = vadd.f32 %v3114, %v3130
        %v3147 = vadd.f32 %v3115, %v3131
        %v3148 = vld [vmem:[#allocation6] sm:$0xff]
        %v3149 = vld [vmem:[#allocation6 + $0x8] sm:$0xff]
        %v3150 = vld [vmem:[#allocation6 + $0x10] sm:$0xff]
        %v3151 = vld [vmem:[#allocation6 + $0x18] sm:$0xff]
        %v3152 = vld [vmem:[%s12] sm:$0x1]
        %v3154 = vlaneseq
        %v3155 = vshrl.u32 %v3154, 7
        %v3156 = vsub.s32 0, %v3155
        %v3157 = vrot.slane %v3152, %v3156
        %v3160 = vsel %vm811, %v3132, 0
        %v3163 = vsel %vm811, %v3133, 0
        %v3166 = vsel %vm811, %v3134, 0
        %v3169 = vsel %vm811, %v3135, 0
        %v3172 = vsel %vm811, %v3136, 0
        %v3175 = vsel %vm811, %v3137, 0
        %v3178 = vsel %vm811, %v3138, 0
        %v3181 = vsel %vm811, %v3139, 0
        %v3184 = vsel %vm811, %v3140, 0
        %v3187 = vsel %vm811, %v3141, 0
        %v3190 = vsel %vm811, %v3142, 0
        %v3193 = vsel %vm811, %v3143, 0
        %v3196 = vsel %vm811, %v3144, 0
        %v3199 = vsel %vm811, %v3145, 0
        %v3202 = vsel %vm811, %v3146, 0
        %v3205 = vsel %vm811, %v3147, 0
        %v3207 = vsel %vm811, %v2828, 0
        %v3209 = vsel %vm811, %v2830, 0
        %v3211 = vsel %vm811, %v2832, 0
        %v3213 = vsel %vm811, %v2834, 0
        %v3215 = vsel %vm811, %v2836, 0
        %v3217 = vsel %vm811, %v2838, 0
        %v3219 = vsel %vm811, %v2840, 0
        %v3221 = vsel %vm811, %v2842, 0
        %v3223 = vsel %vm811, %v2844, 0
        %v3225 = vsel %vm811, %v2846, 0
        %v3227 = vsel %vm811, %v2848, 0
        %v3229 = vsel %vm811, %v2850, 0
        %v3231 = vsel %vm811, %v2852, 0
        %v3233 = vsel %vm811, %v2854, 0
        %v3235 = vsel %vm811, %v2856, 0
        %v3237 = vsel %vm811, %v2858, 0
        %3239 = vmatprep.subr.mxu0 0.0
        %3240 = vmatpush1.msra.mxu0 0.0
        %3241 = vmatprep.subr.mxu0 0.0
        %3242 = vmatpush1.msra.mxu0 0.0
        %3243 = vmatprep.subr.mxu0 0.0
        %3244 = vmatpush1.msra.mxu0 0.0
        %3245 = vmatprep.subr.mxu0 0.0
        %3246 = vmatpush1.msra.mxu0 0.0
        %3247 = vmatprep.subr.mxu0 0.0
        %3248 = vmatpush1.msra.mxu0 0.0
        %3249 = vmatprep.subr.mxu0 0.0
        %3250 = vmatpush1.msra.mxu0 0.0
        %3251 = vmatprep.subr.mxu0 0.0
        %3252 = vmatpush1.msra.mxu0 0.0
        %3253 = vmatprep.subr.mxu0 0.0
        %3254 = vmatpush1.msra.mxu0 0.0
        %3255 = vmatprep.subr.mxu0 0.0
        %3256 = vmatpush1.msra.mxu0 0.0
        %3257 = vmatprep.subr.mxu0 0.0
        %3258 = vmatpush1.msra.mxu0 0.0
        %3259 = vmatprep.subr.mxu0 0.0
        %3260 = vmatpush1.msra.mxu0 0.0
        %3261 = vmatprep.subr.mxu0 0.0
        %3262 = vmatpush1.msra.mxu0 0.0
        %3263 = vmatprep.subr.mxu0 0.0
        %3264 = vmatpush1.msra.mxu0 %v3151
        %3265 = vmatprep.subr.mxu0 0.0
        %3266 = vmatpush1.msra.mxu0 %v3150
        %3267 = vmatprep.subr.mxu0 0.0
        %3268 = vmatpush1.msra.mxu0 %v3149
        %3269 = vmatprep.subr.mxu0 0.0
        %3270 = vmatpush1.msra.mxu0 %v3148
        %3271 = vmatprep.subr.mxu0 0.0
        %3272 = vmatpush2.msra.mxu0 0.0
        %3273 = vmatprep.subr.mxu0 0.0
        %3274 = vmatpush2.msra.mxu0 0.0
        %3275 = vmatprep.subr.mxu0 0.0
        %3276 = vmatpush2.msra.mxu0 0.0
        %3277 = vmatprep.subr.mxu0 0.0
        %3278 = vmatpush2.msra.mxu0 0.0
        %3279 = vmatprep.subr.mxu0 0.0
        %3280 = vmatpush2.msra.mxu0 0.0
        %3281 = vmatprep.subr.mxu0 0.0
        %3282 = vmatpush2.msra.mxu0 0.0
        %3283 = vmatprep.subr.mxu0 0.0
        %3284 = vmatpush2.msra.mxu0 0.0
        %3285 = vmatprep.subr.mxu0 0.0
        %3286 = vmatpush2.msra.mxu0 0.0
        %3287 = vmatprep.subr.mxu0 0.0
        %3288 = vmatpush2.msra.mxu0 0.0
        %3289 = vmatprep.subr.mxu0 0.0
        %3290 = vmatpush2.msra.mxu0 0.0
        %3291 = vmatprep.subr.mxu0 0.0
        %3292 = vmatpush2.msra.mxu0 0.0
        %3293 = vmatprep.subr.mxu0 0.0
        %3294 = vmatpush2.msra.mxu0 0.0
        %3295 = vmatprep.subr.mxu0 0.0
        %3296 = vmatpush2.msra.mxu0 0.0
        %3297 = vmatprep.subr.mxu0 0.0
        %3298 = vmatpush2.msra.mxu0 0.0
        %3299 = vmatprep.subr.mxu0 0.0
        %3300 = vmatpush2.msra.mxu0 0.0
        %3301 = vmatprep.subr.mxu0 0.0
        %3302 = vmatpush2.msra.mxu0 0.0
        %3303 = vmatprep.mubr.f32.mxu0 0.0
        %3304 = vmatmul.mubr.f32.gmra.mxu0 %v3160
        %v3305 = vpop.f32.mrf.mxu0
        %v3306 = vadd.f32 %v3157, %v3305
        %v3307 = vpop.f32.mrf.mxu0
        %3308 = vmatprep.mubr.f32.mxu0 0.0
        %3309 = vmatmul.mubr.f32.gmra.mxu0 %v3163
        %v3310 = vpop.f32.mrf.mxu0
        %v3311 = vadd.f32 %v3157, %v3310
        %v3312 = vpop.f32.mrf.mxu0
        %3313 = vmatprep.mubr.f32.mxu0 0.0
        %3314 = vmatmul.mubr.f32.gmra.mxu0 %v3166
        %v3315 = vpop.f32.mrf.mxu0
        %v3316 = vadd.f32 %v3157, %v3315
        %v3317 = vpop.f32.mrf.mxu0
        %3318 = vmatprep.mubr.f32.mxu0 0.0
        %3319 = vmatmul.mubr.f32.gmra.mxu0 %v3169
        %v3320 = vpop.f32.mrf.mxu0
        %v3321 = vadd.f32 %v3157, %v3320
        %v3322 = vpop.f32.mrf.mxu0
        %3323 = vmatprep.mubr.f32.mxu0 0.0
        %3324 = vmatmul.mubr.f32.gmra.mxu0 %v3172
        %v3325 = vpop.f32.mrf.mxu0
        %v3326 = vadd.f32 %v3157, %v3325
        %v3327 = vpop.f32.mrf.mxu0
        %3328 = vmatprep.mubr.f32.mxu0 0.0
        %3329 = vmatmul.mubr.f32.gmra.mxu0 %v3175
        %v3330 = vpop.f32.mrf.mxu0
        %v3331 = vadd.f32 %v3157, %v3330
        %v3332 = vpop.f32.mrf.mxu0
        %3333 = vmatprep.mubr.f32.mxu0 0.0
        %3334 = vmatmul.mubr.f32.gmra.mxu0 %v3178
        %v3335 = vpop.f32.mrf.mxu0
        %v3336 = vadd.f32 %v3157, %v3335
        %v3337 = vpop.f32.mrf.mxu0
        %3338 = vmatprep.mubr.f32.mxu0 0.0
        %3339 = vmatmul.mubr.f32.gmra.mxu0 %v3181
        %v3340 = vpop.f32.mrf.mxu0
        %v3341 = vadd.f32 %v3157, %v3340
        %v3342 = vpop.f32.mrf.mxu0
        %3343 = vmatprep.mubr.f32.mxu0 0.0
        %3344 = vmatmul.mubr.f32.gmra.mxu0 %v3184
        %v3345 = vpop.f32.mrf.mxu0
        %v3346 = vadd.f32 %v3157, %v3345
        %v3347 = vpop.f32.mrf.mxu0
        %3348 = vmatprep.mubr.f32.mxu0 0.0
        %3349 = vmatmul.mubr.f32.gmra.mxu0 %v3187
        %v3350 = vpop.f32.mrf.mxu0
        %v3351 = vadd.f32 %v3157, %v3350
        %v3352 = vpop.f32.mrf.mxu0
        %3353 = vmatprep.mubr.f32.mxu0 0.0
        %3354 = vmatmul.mubr.f32.gmra.mxu0 %v3190
        %v3355 = vpop.f32.mrf.mxu0
        %v3356 = vadd.f32 %v3157, %v3355
        %v3357 = vpop.f32.mrf.mxu0
        %3358 = vmatprep.mubr.f32.mxu0 0.0
        %3359 = vmatmul.mubr.f32.gmra.mxu0 %v3193
        %v3360 = vpop.f32.mrf.mxu0
        %v3361 = vadd.f32 %v3157, %v3360
        %v3362 = vpop.f32.mrf.mxu0
        %3363 = vmatprep.mubr.f32.mxu0 0.0
        %3364 = vmatmul.mubr.f32.gmra.mxu0 %v3196
        %v3365 = vpop.f32.mrf.mxu0
        %v3366 = vadd.f32 %v3157, %v3365
        %v3367 = vpop.f32.mrf.mxu0
        %3368 = vmatprep.mubr.f32.mxu0 0.0
        %3369 = vmatmul.mubr.f32.gmra.mxu0 %v3199
        %v3370 = vpop.f32.mrf.mxu0
        %v3371 = vadd.f32 %v3157, %v3370
        %v3372 = vpop.f32.mrf.mxu0
        %3373 = vmatprep.mubr.f32.mxu0 0.0
        %3374 = vmatmul.mubr.f32.gmra.mxu0 %v3202
        %v3375 = vpop.f32.mrf.mxu0
        %v3376 = vadd.f32 %v3157, %v3375
        %v3377 = vpop.f32.mrf.mxu0
        %3378 = vmatprep.mubr.f32.mxu0 0.0
        %3379 = vmatmul.mubr.f32.gmra.mxu0 %v3205
        %v3380 = vpop.f32.mrf.mxu0
        %v3381 = vadd.f32 %v3157, %v3380
        %v3382 = vpop.f32.mrf.mxu0
        %3383 = vmatprep.mubr.f32.mxu0 0.0
        %3384 = vmatmul.mubr.f32.gmra.mxu0 %v3207
        %v3385 = vpop.f32.mrf.mxu0
        %v3386 = vadd.f32 %v3157, %v3385
        %v3387 = vpop.f32.mrf.mxu0
        %3388 = vmatprep.mubr.f32.mxu0 0.0
        %3389 = vmatmul.mubr.f32.gmra.mxu0 %v3209
        %v3390 = vpop.f32.mrf.mxu0
        %v3391 = vadd.f32 %v3157, %v3390
        %v3392 = vpop.f32.mrf.mxu0
        %3393 = vmatprep.mubr.f32.mxu0 0.0
        %3394 = vmatmul.mubr.f32.gmra.mxu0 %v3211
        %v3395 = vpop.f32.mrf.mxu0
        %v3396 = vadd.f32 %v3157, %v3395
        %v3397 = vpop.f32.mrf.mxu0
        %3398 = vmatprep.mubr.f32.mxu0 0.0
        %3399 = vmatmul.mubr.f32.gmra.mxu0 %v3213
        %v3400 = vpop.f32.mrf.mxu0
        %v3401 = vadd.f32 %v3157, %v3400
        %v3402 = vpop.f32.mrf.mxu0
        %3403 = vmatprep.mubr.f32.mxu0 0.0
        %3404 = vmatmul.mubr.f32.gmra.mxu0 %v3215
        %v3405 = vpop.f32.mrf.mxu0
        %v3406 = vadd.f32 %v3157, %v3405
        %v3407 = vpop.f32.mrf.mxu0
        %3408 = vmatprep.mubr.f32.mxu0 0.0
        %3409 = vmatmul.mubr.f32.gmra.mxu0 %v3217
        %v3410 = vpop.f32.mrf.mxu0
        %v3411 = vadd.f32 %v3157, %v3410
        %v3412 = vpop.f32.mrf.mxu0
        %3413 = vmatprep.mubr.f32.mxu0 0.0
        %3414 = vmatmul.mubr.f32.gmra.mxu0 %v3219
        %v3415 = vpop.f32.mrf.mxu0
        %v3416 = vadd.f32 %v3157, %v3415
        %v3417 = vpop.f32.mrf.mxu0
        %3418 = vmatprep.mubr.f32.mxu0 0.0
        %3419 = vmatmul.mubr.f32.gmra.mxu0 %v3221
        %v3420 = vpop.f32.mrf.mxu0
        %v3421 = vadd.f32 %v3157, %v3420
        %v3422 = vpop.f32.mrf.mxu0
        %3423 = vmatprep.mubr.f32.mxu0 0.0
        %3424 = vmatmul.mubr.f32.gmra.mxu0 %v3223
        %v3425 = vpop.f32.mrf.mxu0
        %v3426 = vadd.f32 %v3157, %v3425
        %v3427 = vpop.f32.mrf.mxu0
        %3428 = vmatprep.mubr.f32.mxu0 0.0
        %3429 = vmatmul.mubr.f32.gmra.mxu0 %v3225
        %v3430 = vpop.f32.mrf.mxu0
        %v3431 = vadd.f32 %v3157, %v3430
        %v3432 = vpop.f32.mrf.mxu0
        %3433 = vmatprep.mubr.f32.mxu0 0.0
        %3434 = vmatmul.mubr.f32.gmra.mxu0 %v3227
        %v3435 = vpop.f32.mrf.mxu0
        %v3436 = vadd.f32 %v3157, %v3435
        %v3437 = vpop.f32.mrf.mxu0
        %3438 = vmatprep.mubr.f32.mxu0 0.0
        %3439 = vmatmul.mubr.f32.gmra.mxu0 %v3229
        %v3440 = vpop.f32.mrf.mxu0
        %v3441 = vadd.f32 %v3157, %v3440
        %v3442 = vpop.f32.mrf.mxu0
        %3443 = vmatprep.mubr.f32.mxu0 0.0
        %3444 = vmatmul.mubr.f32.gmra.mxu0 %v3231
        %v3445 = vpop.f32.mrf.mxu0
        %v3446 = vadd.f32 %v3157, %v3445
        %v3447 = vpop.f32.mrf.mxu0
        %3448 = vmatprep.mubr.f32.mxu0 0.0
        %3449 = vmatmul.mubr.f32.gmra.mxu0 %v3233
        %v3450 = vpop.f32.mrf.mxu0
        %v3451 = vadd.f32 %v3157, %v3450
        %v3452 = vpop.f32.mrf.mxu0
        %3453 = vmatprep.mubr.f32.mxu0 0.0
        %3454 = vmatmul.mubr.f32.gmra.mxu0 %v3235
        %v3455 = vpop.f32.mrf.mxu0
        %v3456 = vadd.f32 %v3157, %v3455
        %v3457 = vpop.f32.mrf.mxu0
        %3458 = vmatprep.mubr.f32.mxu0 0.0
        %3459 = vmatmul.mubr.f32.gmra.mxu0 %v3237
        %v3460 = vpop.f32.mrf.mxu0
        %v3461 = vadd.f32 %v3157, %v3460
        %v3462 = vpop.f32.mrf.mxu0
        %3463 = vdwg.mxu0
        %v3464 = vmax.f32 %v3306, 0.0
        %v3465 = vmax.f32 %v3311, 0.0
        %v3466 = vmax.f32 %v3316, 0.0
        %v3467 = vmax.f32 %v3321, 0.0
        %v3468 = vmax.f32 %v3326, 0.0
        %v3469 = vmax.f32 %v3331, 0.0
        %v3470 = vmax.f32 %v3336, 0.0
        %v3471 = vmax.f32 %v3341, 0.0
        %v3472 = vmax.f32 %v3346, 0.0
        %v3473 = vmax.f32 %v3351, 0.0
        %v3474 = vmax.f32 %v3356, 0.0
        %v3475 = vmax.f32 %v3361, 0.0
        %v3476 = vmax.f32 %v3366, 0.0
        %v3477 = vmax.f32 %v3371, 0.0
        %v3478 = vmax.f32 %v3376, 0.0
        %v3479 = vmax.f32 %v3381, 0.0
        %v3480 = vmax.f32 %v3386, 0.0
        %v3481 = vmax.f32 %v3391, 0.0
        %v3482 = vmax.f32 %v3396, 0.0
        %v3483 = vmax.f32 %v3401, 0.0
        %v3484 = vmax.f32 %v3406, 0.0
        %v3485 = vmax.f32 %v3411, 0.0
        %v3486 = vmax.f32 %v3416, 0.0
        %v3487 = vmax.f32 %v3421, 0.0
        %v3488 = vmax.f32 %v3426, 0.0
        %v3489 = vmax.f32 %v3431, 0.0
        %v3490 = vmax.f32 %v3436, 0.0
        %v3491 = vmax.f32 %v3441, 0.0
        %v3492 = vmax.f32 %v3446, 0.0
        %v3493 = vmax.f32 %v3451, 0.0
        %v3494 = vmax.f32 %v3456, 0.0
        %v3495 = vmax.f32 %v3461, 0.0
        %v3496 = vld [vmem:[#allocation7] sm:$0xff]
        %v3497 = vld [vmem:[#allocation7 + $0x8] sm:$0xff]
        %v3498 = vld [vmem:[#allocation7 + $0x10] sm:$0xff]
        %v3499 = vld [vmem:[#allocation7 + $0x18] sm:$0xff]
        %v3500 = vld [vmem:[%s15] sm:$0x1]
        %v3502 = vlaneseq
        %v3503 = vshrl.u32 %v3502, 7
        %v3504 = vsub.s32 0, %v3503
        %v3505 = vrot.slane %v3500, %v3504
        %3523 = vrot.lane.b32.xlu0 %v1877, 96
        %v3524 = vpop.permute.xlu0 %3523
        %3525 = vrot.lane.b32.xlu0 %v1878, 96
        %v3526 = vpop.permute.xlu0 %3525
        %3527 = vrot.lane.b32.xlu0 %v1879, 96
        %v3528 = vpop.permute.xlu0 %3527
        %3529 = vrot.lane.b32.xlu0 %v1880, 96
        %v3530 = vpop.permute.xlu0 %3529
        %3531 = vrot.lane.b32.xlu0 %v1881, 96
        %v3532 = vpop.permute.xlu0 %3531
        %3533 = vrot.lane.b32.xlu0 %v1882, 96
        %v3534 = vpop.permute.xlu0 %3533
        %3535 = vrot.lane.b32.xlu0 %v1883, 96
        %v3536 = vpop.permute.xlu0 %3535
        %3537 = vrot.lane.b32.xlu0 %v1884, 96
        %v3538 = vpop.permute.xlu0 %3537
        %3539 = vrot.lane.b32.xlu0 %v1885, 96
        %v3540 = vpop.permute.xlu0 %3539
        %3541 = vrot.lane.b32.xlu0 %v1886, 96
        %v3542 = vpop.permute.xlu0 %3541
        %3543 = vrot.lane.b32.xlu0 %v1887, 96
        %v3544 = vpop.permute.xlu0 %3543
        %3545 = vrot.lane.b32.xlu0 %v1888, 96
        %v3546 = vpop.permute.xlu0 %3545
        %3547 = vrot.lane.b32.xlu0 %v1889, 96
        %v3548 = vpop.permute.xlu0 %3547
        %3549 = vrot.lane.b32.xlu0 %v1890, 96
        %v3550 = vpop.permute.xlu0 %3549
        %3551 = vrot.lane.b32.xlu0 %v1891, 96
        %v3552 = vpop.permute.xlu0 %3551
        %3553 = vrot.lane.b32.xlu0 %v1892, 96
        %v3554 = vpop.permute.xlu0 %3553
        %v3555 = vsel %vm811, %v3524, 0
        %v3557 = vsel %vm811, %v3526, 0
        %v3559 = vsel %vm811, %v3528, 0
        %v3561 = vsel %vm811, %v3530, 0
        %v3563 = vsel %vm811, %v3532, 0
        %v3565 = vsel %vm811, %v3534, 0
        %v3567 = vsel %vm811, %v3536, 0
        %v3569 = vsel %vm811, %v3538, 0
        %v3571 = vsel %vm811, %v3540, 0
        %v3573 = vsel %vm811, %v3542, 0
        %v3575 = vsel %vm811, %v3544, 0
        %v3577 = vsel %vm811, %v3546, 0
        %v3579 = vsel %vm811, %v3548, 0
        %v3581 = vsel %vm811, %v3550, 0
        %v3583 = vsel %vm811, %v3552, 0
        %v3585 = vsel %vm811, %v3554, 0
        %3587 = vmatprep.subr.mxu0 0.0
        %3588 = vmatpush1.msra.mxu0 0.0
        %3589 = vmatprep.subr.mxu0 0.0
        %3590 = vmatpush1.msra.mxu0 0.0
        %3591 = vmatprep.subr.mxu0 0.0
        %3592 = vmatpush1.msra.mxu0 0.0
        %3593 = vmatprep.subr.mxu0 0.0
        %3594 = vmatpush1.msra.mxu0 0.0
        %3595 = vmatprep.subr.mxu0 0.0
        %3596 = vmatpush1.msra.mxu0 0.0
        %3597 = vmatprep.subr.mxu0 0.0
        %3598 = vmatpush1.msra.mxu0 0.0
        %3599 = vmatprep.subr.mxu0 0.0
        %3600 = vmatpush1.msra.mxu0 0.0
        %3601 = vmatprep.subr.mxu0 0.0
        %3602 = vmatpush1.msra.mxu0 0.0
        %3603 = vmatprep.subr.mxu0 0.0
        %3604 = vmatpush1.msra.mxu0 0.0
        %3605 = vmatprep.subr.mxu0 0.0
        %3606 = vmatpush1.msra.mxu0 0.0
        %3607 = vmatprep.subr.mxu0 0.0
        %3608 = vmatpush1.msra.mxu0 0.0
        %3609 = vmatprep.subr.mxu0 0.0
        %3610 = vmatpush1.msra.mxu0 0.0
        %3611 = vmatprep.subr.mxu0 0.0
        %3612 = vmatpush1.msra.mxu0 %v3499
        %3613 = vmatprep.subr.mxu0 0.0
        %3614 = vmatpush1.msra.mxu0 %v3498
        %3615 = vmatprep.subr.mxu0 0.0
        %3616 = vmatpush1.msra.mxu0 %v3497
        %3617 = vmatprep.subr.mxu0 0.0
        %3618 = vmatpush1.msra.mxu0 %v3496
        %3619 = vmatprep.subr.mxu0 0.0
        %3620 = vmatpush2.msra.mxu0 0.0
        %3621 = vmatprep.subr.mxu0 0.0
        %3622 = vmatpush2.msra.mxu0 0.0
        %3623 = vmatprep.subr.mxu0 0.0
        %3624 = vmatpush2.msra.mxu0 0.0
        %3625 = vmatprep.subr.mxu0 0.0
        %3626 = vmatpush2.msra.mxu0 0.0
        %3627 = vmatprep.subr.mxu0 0.0
        %3628 = vmatpush2.msra.mxu0 0.0
        %3629 = vmatprep.subr.mxu0 0.0
        %3630 = vmatpush2.msra.mxu0 0.0
        %3631 = vmatprep.subr.mxu0 0.0
        %3632 = vmatpush2.msra.mxu0 0.0
        %3633 = vmatprep.subr.mxu0 0.0
        %3634 = vmatpush2.msra.mxu0 0.0
        %3635 = vmatprep.subr.mxu0 0.0
        %3636 = vmatpush2.msra.mxu0 0.0
        %3637 = vmatprep.subr.mxu0 0.0
        %3638 = vmatpush2.msra.mxu0 0.0
        %3639 = vmatprep.subr.mxu0 0.0
        %3640 = vmatpush2.msra.mxu0 0.0
        %3641 = vmatprep.subr.mxu0 0.0
        %3642 = vmatpush2.msra.mxu0 0.0
        %3643 = vmatprep.subr.mxu0 0.0
        %3644 = vmatpush2.msra.mxu0 0.0
        %3645 = vmatprep.subr.mxu0 0.0
        %3646 = vmatpush2.msra.mxu0 0.0
        %3647 = vmatprep.subr.mxu0 0.0
        %3648 = vmatpush2.msra.mxu0 0.0
        %3649 = vmatprep.subr.mxu0 0.0
        %3650 = vmatpush2.msra.mxu0 0.0
        %3651 = vmatprep.mubr.f32.mxu0 0.0
        %3652 = vmatmul.mubr.f32.gmra.mxu0 %v3555
        %v3653 = vpop.f32.mrf.mxu0
        %v3654 = vadd.f32 %v3505, %v3653
        %v3655 = vpop.f32.mrf.mxu0
        %3656 = vmatprep.mubr.f32.mxu0 0.0
        %3657 = vmatmul.mubr.f32.gmra.mxu0 %v3557
        %v3658 = vpop.f32.mrf.mxu0
        %v3659 = vadd.f32 %v3505, %v3658
        %v3660 = vpop.f32.mrf.mxu0
        %3661 = vmatprep.mubr.f32.mxu0 0.0
        %3662 = vmatmul.mubr.f32.gmra.mxu0 %v3559
        %v3663 = vpop.f32.mrf.mxu0
        %v3664 = vadd.f32 %v3505, %v3663
        %v3665 = vpop.f32.mrf.mxu0
        %3666 = vmatprep.mubr.f32.mxu0 0.0
        %3667 = vmatmul.mubr.f32.gmra.mxu0 %v3561
        %v3668 = vpop.f32.mrf.mxu0
        %v3669 = vadd.f32 %v3505, %v3668
        %v3670 = vpop.f32.mrf.mxu0
        %3671 = vmatprep.mubr.f32.mxu0 0.0
        %3672 = vmatmul.mubr.f32.gmra.mxu0 %v3563
        %v3673 = vpop.f32.mrf.mxu0
        %v3674 = vadd.f32 %v3505, %v3673
        %v3675 = vpop.f32.mrf.mxu0
        %3676 = vmatprep.mubr.f32.mxu0 0.0
        %3677 = vmatmul.mubr.f32.gmra.mxu0 %v3565
        %v3678 = vpop.f32.mrf.mxu0
        %v3679 = vadd.f32 %v3505, %v3678
        %v3680 = vpop.f32.mrf.mxu0
        %3681 = vmatprep.mubr.f32.mxu0 0.0
        %3682 = vmatmul.mubr.f32.gmra.mxu0 %v3567
        %v3683 = vpop.f32.mrf.mxu0
        %v3684 = vadd.f32 %v3505, %v3683
        %v3685 = vpop.f32.mrf.mxu0
        %3686 = vmatprep.mubr.f32.mxu0 0.0
        %3687 = vmatmul.mubr.f32.gmra.mxu0 %v3569
        %v3688 = vpop.f32.mrf.mxu0
        %v3689 = vadd.f32 %v3505, %v3688
        %v3690 = vpop.f32.mrf.mxu0
        %3691 = vmatprep.mubr.f32.mxu0 0.0
        %3692 = vmatmul.mubr.f32.gmra.mxu0 %v3571
        %v3693 = vpop.f32.mrf.mxu0
        %v3694 = vadd.f32 %v3505, %v3693
        %v3695 = vpop.f32.mrf.mxu0
        %3696 = vmatprep.mubr.f32.mxu0 0.0
        %3697 = vmatmul.mubr.f32.gmra.mxu0 %v3573
        %v3698 = vpop.f32.mrf.mxu0
        %v3699 = vadd.f32 %v3505, %v3698
        %v3700 = vpop.f32.mrf.mxu0
        %3701 = vmatprep.mubr.f32.mxu0 0.0
        %3702 = vmatmul.mubr.f32.gmra.mxu0 %v3575
        %v3703 = vpop.f32.mrf.mxu0
        %v3704 = vadd.f32 %v3505, %v3703
        %v3705 = vpop.f32.mrf.mxu0
        %3706 = vmatprep.mubr.f32.mxu0 0.0
        %3707 = vmatmul.mubr.f32.gmra.mxu0 %v3577
        %v3708 = vpop.f32.mrf.mxu0
        %v3709 = vadd.f32 %v3505, %v3708
        %v3710 = vpop.f32.mrf.mxu0
        %3711 = vmatprep.mubr.f32.mxu0 0.0
        %3712 = vmatmul.mubr.f32.gmra.mxu0 %v3579
        %v3713 = vpop.f32.mrf.mxu0
        %v3714 = vadd.f32 %v3505, %v3713
        %v3715 = vpop.f32.mrf.mxu0
        %3716 = vmatprep.mubr.f32.mxu0 0.0
        %3717 = vmatmul.mubr.f32.gmra.mxu0 %v3581
        %v3718 = vpop.f32.mrf.mxu0
        %v3719 = vadd.f32 %v3505, %v3718
        %v3720 = vpop.f32.mrf.mxu0
        %3721 = vmatprep.mubr.f32.mxu0 0.0
        %3722 = vmatmul.mubr.f32.gmra.mxu0 %v3583
        %v3723 = vpop.f32.mrf.mxu0
        %v3724 = vadd.f32 %v3505, %v3723
        %v3725 = vpop.f32.mrf.mxu0
        %3726 = vmatprep.mubr.f32.mxu0 0.0
        %3727 = vmatmul.mubr.f32.gmra.mxu0 %v3585
        %v3728 = vpop.f32.mrf.mxu0
        %v3729 = vadd.f32 %v3505, %v3728
        %v3730 = vpop.f32.mrf.mxu0
        %3731 = vdwg.mxu0
        %v3732 = vld [vmem:[#allocation9] sm:$0xff]
        %v3733 = vld [vmem:[#allocation9 + $0x8] sm:$0xff]
        %v3734 = vld [vmem:[#allocation9 + $0x10] sm:$0xff]
        %v3735 = vld [vmem:[#allocation9 + $0x18] sm:$0xff]
        %v3737 = vsel %vm811, %v3464, 0
        %v3740 = vsel %vm811, %v3465, 0
        %v3743 = vsel %vm811, %v3466, 0
        %v3746 = vsel %vm811, %v3467, 0
        %v3749 = vsel %vm811, %v3468, 0
        %v3752 = vsel %vm811, %v3469, 0
        %v3755 = vsel %vm811, %v3470, 0
        %v3758 = vsel %vm811, %v3471, 0
        %v3761 = vsel %vm811, %v3472, 0
        %v3764 = vsel %vm811, %v3473, 0
        %v3767 = vsel %vm811, %v3474, 0
        %v3770 = vsel %vm811, %v3475, 0
        %v3773 = vsel %vm811, %v3476, 0
        %v3776 = vsel %vm811, %v3477, 0
        %v3779 = vsel %vm811, %v3478, 0
        %v3782 = vsel %vm811, %v3479, 0
        %v3785 = vsel %vm811, %v3480, 0
        %v3788 = vsel %vm811, %v3481, 0
        %v3791 = vsel %vm811, %v3482, 0
        %v3794 = vsel %vm811, %v3483, 0
        %v3797 = vsel %vm811, %v3484, 0
        %v3800 = vsel %vm811, %v3485, 0
        %v3803 = vsel %vm811, %v3486, 0
        %v3806 = vsel %vm811, %v3487, 0
        %v3809 = vsel %vm811, %v3488, 0
        %v3812 = vsel %vm811, %v3489, 0
        %v3815 = vsel %vm811, %v3490, 0
        %v3818 = vsel %vm811, %v3491, 0
        %v3821 = vsel %vm811, %v3492, 0
        %v3824 = vsel %vm811, %v3493, 0
        %v3827 = vsel %vm811, %v3494, 0
        %v3830 = vsel %vm811, %v3495, 0
        %3832 = vmatprep.subr.mxu0 0.0
        %3833 = vmatpush1.msra.mxu0 0.0
        %3834 = vmatprep.subr.mxu0 0.0
        %3835 = vmatpush1.msra.mxu0 0.0
        %3836 = vmatprep.subr.mxu0 0.0
        %3837 = vmatpush1.msra.mxu0 0.0
        %3838 = vmatprep.subr.mxu0 0.0
        %3839 = vmatpush1.msra.mxu0 0.0
        %3840 = vmatprep.subr.mxu0 0.0
        %3841 = vmatpush1.msra.mxu0 0.0
        %3842 = vmatprep.subr.mxu0 0.0
        %3843 = vmatpush1.msra.mxu0 0.0
        %3844 = vmatprep.subr.mxu0 0.0
        %3845 = vmatpush1.msra.mxu0 0.0
        %3846 = vmatprep.subr.mxu0 0.0
        %3847 = vmatpush1.msra.mxu0 0.0
        %3848 = vmatprep.subr.mxu0 0.0
        %3849 = vmatpush1.msra.mxu0 0.0
        %3850 = vmatprep.subr.mxu0 0.0
        %3851 = vmatpush1.msra.mxu0 0.0
        %3852 = vmatprep.subr.mxu0 0.0
        %3853 = vmatpush1.msra.mxu0 0.0
        %3854 = vmatprep.subr.mxu0 0.0
        %3855 = vmatpush1.msra.mxu0 0.0
        %3856 = vmatprep.subr.mxu0 0.0
        %3857 = vmatpush1.msra.mxu0 %v3735
        %3858 = vmatprep.subr.mxu0 0.0
        %3859 = vmatpush1.msra.mxu0 %v3734
        %3860 = vmatprep.subr.mxu0 0.0
        %3861 = vmatpush1.msra.mxu0 %v3733
        %3862 = vmatprep.subr.mxu0 0.0
        %3863 = vmatpush1.msra.mxu0 %v3732
        %3864 = vmatprep.subr.mxu0 0.0
        %3865 = vmatpush2.msra.mxu0 0.0
        %3866 = vmatprep.subr.mxu0 0.0
        %3867 = vmatpush2.msra.mxu0 0.0
        %3868 = vmatprep.subr.mxu0 0.0
        %3869 = vmatpush2.msra.mxu0 0.0
        %3870 = vmatprep.subr.mxu0 0.0
        %3871 = vmatpush2.msra.mxu0 0.0
        %3872 = vmatprep.subr.mxu0 0.0
        %3873 = vmatpush2.msra.mxu0 0.0
        %3874 = vmatprep.subr.mxu0 0.0
        %3875 = vmatpush2.msra.mxu0 0.0
        %3876 = vmatprep.subr.mxu0 0.0
        %3877 = vmatpush2.msra.mxu0 0.0
        %3878 = vmatprep.subr.mxu0 0.0
        %3879 = vmatpush2.msra.mxu0 0.0
        %3880 = vmatprep.subr.mxu0 0.0
        %3881 = vmatpush2.msra.mxu0 0.0
        %3882 = vmatprep.subr.mxu0 0.0
        %3883 = vmatpush2.msra.mxu0 0.0
        %3884 = vmatprep.subr.mxu0 0.0
        %3885 = vmatpush2.msra.mxu0 0.0
        %3886 = vmatprep.subr.mxu0 0.0
        %3887 = vmatpush2.msra.mxu0 0.0
        %3888 = vmatprep.subr.mxu0 0.0
        %3889 = vmatpush2.msra.mxu0 0.0
        %3890 = vmatprep.subr.mxu0 0.0
        %3891 = vmatpush2.msra.mxu0 0.0
        %3892 = vmatprep.subr.mxu0 0.0
        %3893 = vmatpush2.msra.mxu0 0.0
        %3894 = vmatprep.subr.mxu0 0.0
        %3895 = vmatpush2.msra.mxu0 0.0
        %3896 = vmatprep.mubr.f32.mxu0 0.0
        %3897 = vmatmul.mubr.f32.gmra.mxu0 %v3737
        %v3898 = vpop.f32.mrf.mxu0
        %v3899 = vadd.f32 0.0, %v3898
        %v3900 = vpop.f32.mrf.mxu0
        %3901 = vmatprep.mubr.f32.mxu0 0.0
        %3902 = vmatmul.mubr.f32.gmra.mxu0 %v3740
        %v3903 = vpop.f32.mrf.mxu0
        %v3904 = vadd.f32 0.0, %v3903
        %v3905 = vpop.f32.mrf.mxu0
        %3906 = vmatprep.mubr.f32.mxu0 0.0
        %3907 = vmatmul.mubr.f32.gmra.mxu0 %v3743
        %v3908 = vpop.f32.mrf.mxu0
        %v3909 = vadd.f32 0.0, %v3908
        %v3910 = vpop.f32.mrf.mxu0
        %3911 = vmatprep.mubr.f32.mxu0 0.0
        %3912 = vmatmul.mubr.f32.gmra.mxu0 %v3746
        %v3913 = vpop.f32.mrf.mxu0
        %v3914 = vadd.f32 0.0, %v3913
        %v3915 = vpop.f32.mrf.mxu0
        %3916 = vmatprep.mubr.f32.mxu0 0.0
        %3917 = vmatmul.mubr.f32.gmra.mxu0 %v3749
        %v3918 = vpop.f32.mrf.mxu0
        %v3919 = vadd.f32 0.0, %v3918
        %v3920 = vpop.f32.mrf.mxu0
        %3921 = vmatprep.mubr.f32.mxu0 0.0
        %3922 = vmatmul.mubr.f32.gmra.mxu0 %v3752
        %v3923 = vpop.f32.mrf.mxu0
        %v3924 = vadd.f32 0.0, %v3923
        %v3925 = vpop.f32.mrf.mxu0
        %3926 = vmatprep.mubr.f32.mxu0 0.0
        %3927 = vmatmul.mubr.f32.gmra.mxu0 %v3755
        %v3928 = vpop.f32.mrf.mxu0
        %v3929 = vadd.f32 0.0, %v3928
        %v3930 = vpop.f32.mrf.mxu0
        %3931 = vmatprep.mubr.f32.mxu0 0.0
        %3932 = vmatmul.mubr.f32.gmra.mxu0 %v3758
        %v3933 = vpop.f32.mrf.mxu0
        %v3934 = vadd.f32 0.0, %v3933
        %v3935 = vpop.f32.mrf.mxu0
        %3936 = vmatprep.mubr.f32.mxu0 0.0
        %3937 = vmatmul.mubr.f32.gmra.mxu0 %v3761
        %v3938 = vpop.f32.mrf.mxu0
        %v3939 = vadd.f32 0.0, %v3938
        %v3940 = vpop.f32.mrf.mxu0
        %3941 = vmatprep.mubr.f32.mxu0 0.0
        %3942 = vmatmul.mubr.f32.gmra.mxu0 %v3764
        %v3943 = vpop.f32.mrf.mxu0
        %v3944 = vadd.f32 0.0, %v3943
        %v3945 = vpop.f32.mrf.mxu0
        %3946 = vmatprep.mubr.f32.mxu0 0.0
        %3947 = vmatmul.mubr.f32.gmra.mxu0 %v3767
        %v3948 = vpop.f32.mrf.mxu0
        %v3949 = vadd.f32 0.0, %v3948
        %v3950 = vpop.f32.mrf.mxu0
        %3951 = vmatprep.mubr.f32.mxu0 0.0
        %3952 = vmatmul.mubr.f32.gmra.mxu0 %v3770
        %v3953 = vpop.f32.mrf.mxu0
        %v3954 = vadd.f32 0.0, %v3953
        %v3955 = vpop.f32.mrf.mxu0
        %3956 = vmatprep.mubr.f32.mxu0 0.0
        %3957 = vmatmul.mubr.f32.gmra.mxu0 %v3773
        %v3958 = vpop.f32.mrf.mxu0
        %v3959 = vadd.f32 0.0, %v3958
        %v3960 = vpop.f32.mrf.mxu0
        %3961 = vmatprep.mubr.f32.mxu0 0.0
        %3962 = vmatmul.mubr.f32.gmra.mxu0 %v3776
        %v3963 = vpop.f32.mrf.mxu0
        %v3964 = vadd.f32 0.0, %v3963
        %v3965 = vpop.f32.mrf.mxu0
        %3966 = vmatprep.mubr.f32.mxu0 0.0
        %3967 = vmatmul.mubr.f32.gmra.mxu0 %v3779
        %v3968 = vpop.f32.mrf.mxu0
        %v3969 = vadd.f32 0.0, %v3968
        %v3970 = vpop.f32.mrf.mxu0
        %3971 = vmatprep.mubr.f32.mxu0 0.0
        %3972 = vmatmul.mubr.f32.gmra.mxu0 %v3782
        %v3973 = vpop.f32.mrf.mxu0
        %v3974 = vadd.f32 0.0, %v3973
        %v3975 = vpop.f32.mrf.mxu0
        %3976 = vmatprep.mubr.f32.mxu0 0.0
        %3977 = vmatmul.mubr.f32.gmra.mxu0 %v3785
        %v3978 = vpop.f32.mrf.mxu0
        %v3979 = vadd.f32 0.0, %v3978
        %v3980 = vpop.f32.mrf.mxu0
        %3981 = vmatprep.mubr.f32.mxu0 0.0
        %3982 = vmatmul.mubr.f32.gmra.mxu0 %v3788
        %v3983 = vpop.f32.mrf.mxu0
        %v3984 = vadd.f32 0.0, %v3983
        %v3985 = vpop.f32.mrf.mxu0
        %3986 = vmatprep.mubr.f32.mxu0 0.0
        %3987 = vmatmul.mubr.f32.gmra.mxu0 %v3791
        %v3988 = vpop.f32.mrf.mxu0
        %v3989 = vadd.f32 0.0, %v3988
        %v3990 = vpop.f32.mrf.mxu0
        %3991 = vmatprep.mubr.f32.mxu0 0.0
        %3992 = vmatmul.mubr.f32.gmra.mxu0 %v3794
        %v3993 = vpop.f32.mrf.mxu0
        %v3994 = vadd.f32 0.0, %v3993
        %v3995 = vpop.f32.mrf.mxu0
        %3996 = vmatprep.mubr.f32.mxu0 0.0
        %3997 = vmatmul.mubr.f32.gmra.mxu0 %v3797
        %v3998 = vpop.f32.mrf.mxu0
        %v3999 = vadd.f32 0.0, %v3998
        %v4000 = vpop.f32.mrf.mxu0
        %4001 = vmatprep.mubr.f32.mxu0 0.0
        %4002 = vmatmul.mubr.f32.gmra.mxu0 %v3800
        %v4003 = vpop.f32.mrf.mxu0
        %v4004 = vadd.f32 0.0, %v4003
        %v4005 = vpop.f32.mrf.mxu0
        %4006 = vmatprep.mubr.f32.mxu0 0.0
        %4007 = vmatmul.mubr.f32.gmra.mxu0 %v3803
        %v4008 = vpop.f32.mrf.mxu0
        %v4009 = vadd.f32 0.0, %v4008
        %v4010 = vpop.f32.mrf.mxu0
        %4011 = vmatprep.mubr.f32.mxu0 0.0
        %4012 = vmatmul.mubr.f32.gmra.mxu0 %v3806
        %v4013 = vpop.f32.mrf.mxu0
        %v4014 = vadd.f32 0.0, %v4013
        %v4015 = vpop.f32.mrf.mxu0
        %4016 = vmatprep.mubr.f32.mxu0 0.0
        %4017 = vmatmul.mubr.f32.gmra.mxu0 %v3809
        %v4018 = vpop.f32.mrf.mxu0
        %v4019 = vadd.f32 0.0, %v4018
        %v4020 = vpop.f32.mrf.mxu0
        %4021 = vmatprep.mubr.f32.mxu0 0.0
        %4022 = vmatmul.mubr.f32.gmra.mxu0 %v3812
        %v4023 = vpop.f32.mrf.mxu0
        %v4024 = vadd.f32 0.0, %v4023
        %v4025 = vpop.f32.mrf.mxu0
        %4026 = vmatprep.mubr.f32.mxu0 0.0
        %4027 = vmatmul.mubr.f32.gmra.mxu0 %v3815
        %v4028 = vpop.f32.mrf.mxu0
        %v4029 = vadd.f32 0.0, %v4028
        %v4030 = vpop.f32.mrf.mxu0
        %4031 = vmatprep.mubr.f32.mxu0 0.0
        %4032 = vmatmul.mubr.f32.gmra.mxu0 %v3818
        %v4033 = vpop.f32.mrf.mxu0
        %v4034 = vadd.f32 0.0, %v4033
        %v4035 = vpop.f32.mrf.mxu0
        %4036 = vmatprep.mubr.f32.mxu0 0.0
        %4037 = vmatmul.mubr.f32.gmra.mxu0 %v3821
        %v4038 = vpop.f32.mrf.mxu0
        %v4039 = vadd.f32 0.0, %v4038
        %v4040 = vpop.f32.mrf.mxu0
        %4041 = vmatprep.mubr.f32.mxu0 0.0
        %4042 = vmatmul.mubr.f32.gmra.mxu0 %v3824
        %v4043 = vpop.f32.mrf.mxu0
        %v4044 = vadd.f32 0.0, %v4043
        %v4045 = vpop.f32.mrf.mxu0
        %4046 = vmatprep.mubr.f32.mxu0 0.0
        %4047 = vmatmul.mubr.f32.gmra.mxu0 %v3827
        %v4048 = vpop.f32.mrf.mxu0
        %v4049 = vadd.f32 0.0, %v4048
        %v4050 = vpop.f32.mrf.mxu0
        %4051 = vmatprep.mubr.f32.mxu0 0.0
        %4052 = vmatmul.mubr.f32.gmra.mxu0 %v3830
        %v4053 = vpop.f32.mrf.mxu0
        %v4054 = vadd.f32 0.0, %v4053
        %v4055 = vpop.f32.mrf.mxu0
        %4056 = vdwg.mxu0
        %v4057 = vadd.f32 %v3654, %v3899
        %v4058 = vadd.f32 %v3659, %v3904
        %v4059 = vadd.f32 %v3664, %v3909
        %v4060 = vadd.f32 %v3669, %v3914
        %v4061 = vadd.f32 %v3674, %v3919
        %v4062 = vadd.f32 %v3679, %v3924
        %v4063 = vadd.f32 %v3684, %v3929
        %v4064 = vadd.f32 %v3689, %v3934
        %v4065 = vadd.f32 %v3694, %v3939
        %v4066 = vadd.f32 %v3699, %v3944
        %v4067 = vadd.f32 %v3704, %v3949
        %v4068 = vadd.f32 %v3709, %v3954
        %v4069 = vadd.f32 %v3714, %v3959
        %v4070 = vadd.f32 %v3719, %v3964
        %v4071 = vadd.f32 %v3724, %v3969
        %v4072 = vadd.f32 %v3729, %v3974
        %v4073 = vadd.f32 %v3654, %v3979
        %v4074 = vadd.f32 %v3659, %v3984
        %v4075 = vadd.f32 %v3664, %v3989
        %v4076 = vadd.f32 %v3669, %v3994
        %v4077 = vadd.f32 %v3674, %v3999
        %v4078 = vadd.f32 %v3679, %v4004
        %v4079 = vadd.f32 %v3684, %v4009
        %v4080 = vadd.f32 %v3689, %v4014
        %v4081 = vadd.f32 %v3694, %v4019
        %v4082 = vadd.f32 %v3699, %v4024
        %v4083 = vadd.f32 %v3704, %v4029
        %v4084 = vadd.f32 %v3709, %v4034
        %v4085 = vadd.f32 %v3714, %v4039
        %v4086 = vadd.f32 %v3719, %v4044
        %v4087 = vadd.f32 %v3724, %v4049
        %v4088 = vadd.f32 %v3729, %v4054
        %v4089 = vmax.f32 %v4057, 0.0
        %v4090 = vmax.f32 %v4058, 0.0
        %v4091 = vmax.f32 %v4059, 0.0
        %v4092 = vmax.f32 %v4060, 0.0
        %v4093 = vmax.f32 %v4061, 0.0
        %v4094 = vmax.f32 %v4062, 0.0
        %v4095 = vmax.f32 %v4063, 0.0
        %v4096 = vmax.f32 %v4064, 0.0
        %v4097 = vmax.f32 %v4065, 0.0
        %v4098 = vmax.f32 %v4066, 0.0
        %v4099 = vmax.f32 %v4067, 0.0
        %v4100 = vmax.f32 %v4068, 0.0
        %v4101 = vmax.f32 %v4069, 0.0
        %v4102 = vmax.f32 %v4070, 0.0
        %v4103 = vmax.f32 %v4071, 0.0
        %v4104 = vmax.f32 %v4072, 0.0
        %v4105 = vmax.f32 %v4073, 0.0
        %v4106 = vmax.f32 %v4074, 0.0
        %v4107 = vmax.f32 %v4075, 0.0
        %v4108 = vmax.f32 %v4076, 0.0
        %v4109 = vmax.f32 %v4077, 0.0
        %v4110 = vmax.f32 %v4078, 0.0
        %v4111 = vmax.f32 %v4079, 0.0
        %v4112 = vmax.f32 %v4080, 0.0
        %v4113 = vmax.f32 %v4081, 0.0
        %v4114 = vmax.f32 %v4082, 0.0
        %v4115 = vmax.f32 %v4083, 0.0
        %v4116 = vmax.f32 %v4084, 0.0
        %v4117 = vmax.f32 %v4085, 0.0
        %v4118 = vmax.f32 %v4086, 0.0
        %v4119 = vmax.f32 %v4087, 0.0
        %v4120 = vmax.f32 %v4088, 0.0
        %v4121 = vld [vmem:[#allocation10] sm:$0xff]
        %v4122 = vld [vmem:[#allocation10 + $0x8] sm:$0xff]
        %v4123 = vld [vmem:[#allocation10 + $0x10] sm:$0xff]
        %v4124 = vld [vmem:[#allocation10 + $0x18] sm:$0xff]
        %v4125 = vld [vmem:[#allocation12] sm:$0x1]
        %v4127 = vlaneseq
        %v4128 = vshrl.u32 %v4127, 7
        %v4129 = vsub.s32 0, %v4128
        %v4130 = vrot.slane %v4125, %v4129
        %v4133 = vsel %vm811, %v4089, 0
        %v4136 = vsel %vm811, %v4090, 0
        %v4139 = vsel %vm811, %v4091, 0
        %v4142 = vsel %vm811, %v4092, 0
        %v4145 = vsel %vm811, %v4093, 0
        %v4148 = vsel %vm811, %v4094, 0
        %v4151 = vsel %vm811, %v4095, 0
        %v4154 = vsel %vm811, %v4096, 0
        %v4157 = vsel %vm811, %v4097, 0
        %v4160 = vsel %vm811, %v4098, 0
        %v4163 = vsel %vm811, %v4099, 0
        %v4166 = vsel %vm811, %v4100, 0
        %v4169 = vsel %vm811, %v4101, 0
        %v4172 = vsel %vm811, %v4102, 0
        %v4175 = vsel %vm811, %v4103, 0
        %v4178 = vsel %vm811, %v4104, 0
        %v4181 = vsel %vm811, %v4105, 0
        %v4184 = vsel %vm811, %v4106, 0
        %v4187 = vsel %vm811, %v4107, 0
        %v4190 = vsel %vm811, %v4108, 0
        %v4193 = vsel %vm811, %v4109, 0
        %v4196 = vsel %vm811, %v4110, 0
        %v4199 = vsel %vm811, %v4111, 0
        %v4202 = vsel %vm811, %v4112, 0
        %v4205 = vsel %vm811, %v4113, 0
        %v4208 = vsel %vm811, %v4114, 0
        %v4211 = vsel %vm811, %v4115, 0
        %v4214 = vsel %vm811, %v4116, 0
        %v4217 = vsel %vm811, %v4117, 0
        %v4220 = vsel %vm811, %v4118, 0
        %v4223 = vsel %vm811, %v4119, 0
        %v4226 = vsel %vm811, %v4120, 0
        %4228 = vmatprep.subr.mxu0 0.0
        %4229 = vmatpush1.msra.mxu0 0.0
        %4230 = vmatprep.subr.mxu0 0.0
        %4231 = vmatpush1.msra.mxu0 0.0
        %4232 = vmatprep.subr.mxu0 0.0
        %4233 = vmatpush1.msra.mxu0 0.0
        %4234 = vmatprep.subr.mxu0 0.0
        %4235 = vmatpush1.msra.mxu0 0.0
        %4236 = vmatprep.subr.mxu0 0.0
        %4237 = vmatpush1.msra.mxu0 0.0
        %4238 = vmatprep.subr.mxu0 0.0
        %4239 = vmatpush1.msra.mxu0 0.0
        %4240 = vmatprep.subr.mxu0 0.0
        %4241 = vmatpush1.msra.mxu0 0.0
        %4242 = vmatprep.subr.mxu0 0.0
        %4243 = vmatpush1.msra.mxu0 0.0
        %4244 = vmatprep.subr.mxu0 0.0
        %4245 = vmatpush1.msra.mxu0 0.0
        %4246 = vmatprep.subr.mxu0 0.0
        %4247 = vmatpush1.msra.mxu0 0.0
        %4248 = vmatprep.subr.mxu0 0.0
        %4249 = vmatpush1.msra.mxu0 0.0
        %4250 = vmatprep.subr.mxu0 0.0
        %4251 = vmatpush1.msra.mxu0 0.0
        %4252 = vmatprep.subr.mxu0 0.0
        %4253 = vmatpush1.msra.mxu0 %v4124
        %4254 = vmatprep.subr.mxu0 0.0
        %4255 = vmatpush1.msra.mxu0 %v4123
        %4256 = vmatprep.subr.mxu0 0.0
        %4257 = vmatpush1.msra.mxu0 %v4122
        %4258 = vmatprep.subr.mxu0 0.0
        %4259 = vmatpush1.msra.mxu0 %v4121
        %4260 = vmatprep.subr.mxu0 0.0
        %4261 = vmatpush2.msra.mxu0 0.0
        %4262 = vmatprep.subr.mxu0 0.0
        %4263 = vmatpush2.msra.mxu0 0.0
        %4264 = vmatprep.subr.mxu0 0.0
        %4265 = vmatpush2.msra.mxu0 0.0
        %4266 = vmatprep.subr.mxu0 0.0
        %4267 = vmatpush2.msra.mxu0 0.0
        %4268 = vmatprep.subr.mxu0 0.0
        %4269 = vmatpush2.msra.mxu0 0.0
        %4270 = vmatprep.subr.mxu0 0.0
        %4271 = vmatpush2.msra.mxu0 0.0
        %4272 = vmatprep.subr.mxu0 0.0
        %4273 = vmatpush2.msra.mxu0 0.0
        %4274 = vmatprep.subr.mxu0 0.0
        %4275 = vmatpush2.msra.mxu0 0.0
        %4276 = vmatprep.subr.mxu0 0.0
        %4277 = vmatpush2.msra.mxu0 0.0
        %4278 = vmatprep.subr.mxu0 0.0
        %4279 = vmatpush2.msra.mxu0 0.0
        %4280 = vmatprep.subr.mxu0 0.0
        %4281 = vmatpush2.msra.mxu0 0.0
        %4282 = vmatprep.subr.mxu0 0.0
        %4283 = vmatpush2.msra.mxu0 0.0
        %4284 = vmatprep.subr.mxu0 0.0
        %4285 = vmatpush2.msra.mxu0 0.0
        %4286 = vmatprep.subr.mxu0 0.0
        %4287 = vmatpush2.msra.mxu0 0.0
        %4288 = vmatprep.subr.mxu0 0.0
        %4289 = vmatpush2.msra.mxu0 0.0
        %4290 = vmatprep.subr.mxu0 0.0
        %4291 = vmatpush2.msra.mxu0 0.0
        %4292 = vmatprep.mubr.f32.mxu0 0.0
        %4293 = vmatmul.mubr.f32.gmra.mxu0 %v4133
        %v4294 = vpop.f32.mrf.mxu0
        %v4295 = vadd.f32 %v4130, %v4294
        %v4296 = vpop.f32.mrf.mxu0
        %4297 = vmatprep.mubr.f32.mxu0 0.0
        %4298 = vmatmul.mubr.f32.gmra.mxu0 %v4136
        %v4299 = vpop.f32.mrf.mxu0
        %v4300 = vadd.f32 %v4130, %v4299
        %v4301 = vpop.f32.mrf.mxu0
        %4302 = vmatprep.mubr.f32.mxu0 0.0
        %4303 = vmatmul.mubr.f32.gmra.mxu0 %v4139
        %v4304 = vpop.f32.mrf.mxu0
        %v4305 = vadd.f32 %v4130, %v4304
        %v4306 = vpop.f32.mrf.mxu0
        %4307 = vmatprep.mubr.f32.mxu0 0.0
        %4308 = vmatmul.mubr.f32.gmra.mxu0 %v4142
        %v4309 = vpop.f32.mrf.mxu0
        %v4310 = vadd.f32 %v4130, %v4309
        %v4311 = vpop.f32.mrf.mxu0
        %4312 = vmatprep.mubr.f32.mxu0 0.0
        %4313 = vmatmul.mubr.f32.gmra.mxu0 %v4145
        %v4314 = vpop.f32.mrf.mxu0
        %v4315 = vadd.f32 %v4130, %v4314
        %v4316 = vpop.f32.mrf.mxu0
        %4317 = vmatprep.mubr.f32.mxu0 0.0
        %4318 = vmatmul.mubr.f32.gmra.mxu0 %v4148
        %v4319 = vpop.f32.mrf.mxu0
        %v4320 = vadd.f32 %v4130, %v4319
        %v4321 = vpop.f32.mrf.mxu0
        %4322 = vmatprep.mubr.f32.mxu0 0.0
        %4323 = vmatmul.mubr.f32.gmra.mxu0 %v4151
        %v4324 = vpop.f32.mrf.mxu0
        %v4325 = vadd.f32 %v4130, %v4324
        %v4326 = vpop.f32.mrf.mxu0
        %4327 = vmatprep.mubr.f32.mxu0 0.0
        %4328 = vmatmul.mubr.f32.gmra.mxu0 %v4154
        %v4329 = vpop.f32.mrf.mxu0
        %v4330 = vadd.f32 %v4130, %v4329
        %v4331 = vpop.f32.mrf.mxu0
        %4332 = vmatprep.mubr.f32.mxu0 0.0
        %4333 = vmatmul.mubr.f32.gmra.mxu0 %v4157
        %v4334 = vpop.f32.mrf.mxu0
        %v4335 = vadd.f32 %v4130, %v4334
        %v4336 = vpop.f32.mrf.mxu0
        %4337 = vmatprep.mubr.f32.mxu0 0.0
        %4338 = vmatmul.mubr.f32.gmra.mxu0 %v4160
        %v4339 = vpop.f32.mrf.mxu0
        %v4340 = vadd.f32 %v4130, %v4339
        %v4341 = vpop.f32.mrf.mxu0
        %4342 = vmatprep.mubr.f32.mxu0 0.0
        %4343 = vmatmul.mubr.f32.gmra.mxu0 %v4163
        %v4344 = vpop.f32.mrf.mxu0
        %v4345 = vadd.f32 %v4130, %v4344
        %v4346 = vpop.f32.mrf.mxu0
        %4347 = vmatprep.mubr.f32.mxu0 0.0
        %4348 = vmatmul.mubr.f32.gmra.mxu0 %v4166
        %v4349 = vpop.f32.mrf.mxu0
        %v4350 = vadd.f32 %v4130, %v4349
        %v4351 = vpop.f32.mrf.mxu0
        %4352 = vmatprep.mubr.f32.mxu0 0.0
        %4353 = vmatmul.mubr.f32.gmra.mxu0 %v4169
        %v4354 = vpop.f32.mrf.mxu0
        %v4355 = vadd.f32 %v4130, %v4354
        %v4356 = vpop.f32.mrf.mxu0
        %4357 = vmatprep.mubr.f32.mxu0 0.0
        %4358 = vmatmul.mubr.f32.gmra.mxu0 %v4172
        %v4359 = vpop.f32.mrf.mxu0
        %v4360 = vadd.f32 %v4130, %v4359
        %v4361 = vpop.f32.mrf.mxu0
        %4362 = vmatprep.mubr.f32.mxu0 0.0
        %4363 = vmatmul.mubr.f32.gmra.mxu0 %v4175
        %v4364 = vpop.f32.mrf.mxu0
        %v4365 = vadd.f32 %v4130, %v4364
        %v4366 = vpop.f32.mrf.mxu0
        %4367 = vmatprep.mubr.f32.mxu0 0.0
        %4368 = vmatmul.mubr.f32.gmra.mxu0 %v4178
        %v4369 = vpop.f32.mrf.mxu0
        %v4370 = vadd.f32 %v4130, %v4369
        %v4371 = vpop.f32.mrf.mxu0
        %4372 = vmatprep.mubr.f32.mxu0 0.0
        %4373 = vmatmul.mubr.f32.gmra.mxu0 %v4181
        %v4374 = vpop.f32.mrf.mxu0
        %v4375 = vadd.f32 %v4130, %v4374
        %v4376 = vpop.f32.mrf.mxu0
        %4377 = vmatprep.mubr.f32.mxu0 0.0
        %4378 = vmatmul.mubr.f32.gmra.mxu0 %v4184
        %v4379 = vpop.f32.mrf.mxu0
        %v4380 = vadd.f32 %v4130, %v4379
        %v4381 = vpop.f32.mrf.mxu0
        %4382 = vmatprep.mubr.f32.mxu0 0.0
        %4383 = vmatmul.mubr.f32.gmra.mxu0 %v4187
        %v4384 = vpop.f32.mrf.mxu0
        %v4385 = vadd.f32 %v4130, %v4384
        %v4386 = vpop.f32.mrf.mxu0
        %4387 = vmatprep.mubr.f32.mxu0 0.0
        %4388 = vmatmul.mubr.f32.gmra.mxu0 %v4190
        %v4389 = vpop.f32.mrf.mxu0
        %v4390 = vadd.f32 %v4130, %v4389
        %v4391 = vpop.f32.mrf.mxu0
        %4392 = vmatprep.mubr.f32.mxu0 0.0
        %4393 = vmatmul.mubr.f32.gmra.mxu0 %v4193
        %v4394 = vpop.f32.mrf.mxu0
        %v4395 = vadd.f32 %v4130, %v4394
        %v4396 = vpop.f32.mrf.mxu0
        %4397 = vmatprep.mubr.f32.mxu0 0.0
        %4398 = vmatmul.mubr.f32.gmra.mxu0 %v4196
        %v4399 = vpop.f32.mrf.mxu0
        %v4400 = vadd.f32 %v4130, %v4399
        %v4401 = vpop.f32.mrf.mxu0
        %4402 = vmatprep.mubr.f32.mxu0 0.0
        %4403 = vmatmul.mubr.f32.gmra.mxu0 %v4199
        %v4404 = vpop.f32.mrf.mxu0
        %v4405 = vadd.f32 %v4130, %v4404
        %v4406 = vpop.f32.mrf.mxu0
        %4407 = vmatprep.mubr.f32.mxu0 0.0
        %4408 = vmatmul.mubr.f32.gmra.mxu0 %v4202
        %v4409 = vpop.f32.mrf.mxu0
        %v4410 = vadd.f32 %v4130, %v4409
        %v4411 = vpop.f32.mrf.mxu0
        %4412 = vmatprep.mubr.f32.mxu0 0.0
        %4413 = vmatmul.mubr.f32.gmra.mxu0 %v4205
        %v4414 = vpop.f32.mrf.mxu0
        %v4415 = vadd.f32 %v4130, %v4414
        %v4416 = vpop.f32.mrf.mxu0
        %4417 = vmatprep.mubr.f32.mxu0 0.0
        %4418 = vmatmul.mubr.f32.gmra.mxu0 %v4208
        %v4419 = vpop.f32.mrf.mxu0
        %v4420 = vadd.f32 %v4130, %v4419
        %v4421 = vpop.f32.mrf.mxu0
        %4422 = vmatprep.mubr.f32.mxu0 0.0
        %4423 = vmatmul.mubr.f32.gmra.mxu0 %v4211
        %v4424 = vpop.f32.mrf.mxu0
        %v4425 = vadd.f32 %v4130, %v4424
        %v4426 = vpop.f32.mrf.mxu0
        %4427 = vmatprep.mubr.f32.mxu0 0.0
        %4428 = vmatmul.mubr.f32.gmra.mxu0 %v4214
        %v4429 = vpop.f32.mrf.mxu0
        %v4430 = vadd.f32 %v4130, %v4429
        %v4431 = vpop.f32.mrf.mxu0
        %4432 = vmatprep.mubr.f32.mxu0 0.0
        %4433 = vmatmul.mubr.f32.gmra.mxu0 %v4217
        %v4434 = vpop.f32.mrf.mxu0
        %v4435 = vadd.f32 %v4130, %v4434
        %v4436 = vpop.f32.mrf.mxu0
        %4437 = vmatprep.mubr.f32.mxu0 0.0
        %4438 = vmatmul.mubr.f32.gmra.mxu0 %v4220
        %v4439 = vpop.f32.mrf.mxu0
        %v4440 = vadd.f32 %v4130, %v4439
        %v4441 = vpop.f32.mrf.mxu0
        %4442 = vmatprep.mubr.f32.mxu0 0.0
        %4443 = vmatmul.mubr.f32.gmra.mxu0 %v4223
        %v4444 = vpop.f32.mrf.mxu0
        %v4445 = vadd.f32 %v4130, %v4444
        %v4446 = vpop.f32.mrf.mxu0
        %4447 = vmatprep.mubr.f32.mxu0 0.0
        %4448 = vmatmul.mubr.f32.gmra.mxu0 %v4226
        %v4449 = vpop.f32.mrf.mxu0
        %v4450 = vadd.f32 %v4130, %v4449
        %v4451 = vpop.f32.mrf.mxu0
        %4452 = vdwg.mxu0
        %v4453 = vmax.f32 %v4295, 0.0
        %v4454 = vmax.f32 %v4300, 0.0
        %v4455 = vmax.f32 %v4305, 0.0
        %v4456 = vmax.f32 %v4310, 0.0
        %v4457 = vmax.f32 %v4315, 0.0
        %v4458 = vmax.f32 %v4320, 0.0
        %v4459 = vmax.f32 %v4325, 0.0
        %v4460 = vmax.f32 %v4330, 0.0
        %v4461 = vmax.f32 %v4335, 0.0
        %v4462 = vmax.f32 %v4340, 0.0
        %v4463 = vmax.f32 %v4345, 0.0
        %v4464 = vmax.f32 %v4350, 0.0
        %v4465 = vmax.f32 %v4355, 0.0
        %v4466 = vmax.f32 %v4360, 0.0
        %v4467 = vmax.f32 %v4365, 0.0
        %v4468 = vmax.f32 %v4370, 0.0
        %v4469 = vmax.f32 %v4375, 0.0
        %v4470 = vmax.f32 %v4380, 0.0
        %v4471 = vmax.f32 %v4385, 0.0
        %v4472 = vmax.f32 %v4390, 0.0
        %v4473 = vmax.f32 %v4395, 0.0
        %v4474 = vmax.f32 %v4400, 0.0
        %v4475 = vmax.f32 %v4405, 0.0
        %v4476 = vmax.f32 %v4410, 0.0
        %v4477 = vmax.f32 %v4415, 0.0
        %v4478 = vmax.f32 %v4420, 0.0
        %v4479 = vmax.f32 %v4425, 0.0
        %v4480 = vmax.f32 %v4430, 0.0
        %v4481 = vmax.f32 %v4435, 0.0
        %v4482 = vmax.f32 %v4440, 0.0
        %v4483 = vmax.f32 %v4445, 0.0
        %v4484 = vmax.f32 %v4450, 0.0
        %v4485 = vld [vmem:[%s18] sm:$0xff]
        %v4486 = vld [vmem:[%s18 + $0x8] sm:$0xff]
        %v4487 = vld [vmem:[%s18 + $0x10] sm:$0xff]
        %v4488 = vld [vmem:[%s18 + $0x18] sm:$0xff]
        %v4489 = vld [vmem:[#allocation13] sm:$0x1]
        %v4491 = vlaneseq
        %v4492 = vshrl.u32 %v4491, 7
        %v4493 = vsub.s32 0, %v4492
        %v4494 = vrot.slane %v4489, %v4493
        %v4497 = vsel %vm811, %v4453, 0
        %v4500 = vsel %vm811, %v4454, 0
        %v4503 = vsel %vm811, %v4455, 0
        %v4506 = vsel %vm811, %v4456, 0
        %v4509 = vsel %vm811, %v4457, 0
        %v4512 = vsel %vm811, %v4458, 0
        %v4515 = vsel %vm811, %v4459, 0
        %v4518 = vsel %vm811, %v4460, 0
        %v4521 = vsel %vm811, %v4461, 0
        %v4524 = vsel %vm811, %v4462, 0
        %v4527 = vsel %vm811, %v4463, 0
        %v4530 = vsel %vm811, %v4464, 0
        %v4533 = vsel %vm811, %v4465, 0
        %v4536 = vsel %vm811, %v4466, 0
        %v4539 = vsel %vm811, %v4467, 0
        %v4542 = vsel %vm811, %v4468, 0
        %v4545 = vsel %vm811, %v4469, 0
        %v4548 = vsel %vm811, %v4470, 0
        %v4551 = vsel %vm811, %v4471, 0
        %v4554 = vsel %vm811, %v4472, 0
        %v4557 = vsel %vm811, %v4473, 0
        %v4560 = vsel %vm811, %v4474, 0
        %v4563 = vsel %vm811, %v4475, 0
        %v4566 = vsel %vm811, %v4476, 0
        %v4569 = vsel %vm811, %v4477, 0
        %v4572 = vsel %vm811, %v4478, 0
        %v4575 = vsel %vm811, %v4479, 0
        %v4578 = vsel %vm811, %v4480, 0
        %v4581 = vsel %vm811, %v4481, 0
        %v4584 = vsel %vm811, %v4482, 0
        %v4587 = vsel %vm811, %v4483, 0
        %v4590 = vsel %vm811, %v4484, 0
        %4592 = vmatprep.subr.mxu0 0.0
        %4593 = vmatpush1.msra.mxu0 0.0
        %4594 = vmatprep.subr.mxu0 0.0
        %4595 = vmatpush1.msra.mxu0 0.0
        %4596 = vmatprep.subr.mxu0 0.0
        %4597 = vmatpush1.msra.mxu0 0.0
        %4598 = vmatprep.subr.mxu0 0.0
        %4599 = vmatpush1.msra.mxu0 0.0
        %4600 = vmatprep.subr.mxu0 0.0
        %4601 = vmatpush1.msra.mxu0 0.0
        %4602 = vmatprep.subr.mxu0 0.0
        %4603 = vmatpush1.msra.mxu0 0.0
        %4604 = vmatprep.subr.mxu0 0.0
        %4605 = vmatpush1.msra.mxu0 0.0
        %4606 = vmatprep.subr.mxu0 0.0
        %4607 = vmatpush1.msra.mxu0 0.0
        %4608 = vmatprep.subr.mxu0 0.0
        %4609 = vmatpush1.msra.mxu0 0.0
        %4610 = vmatprep.subr.mxu0 0.0
        %4611 = vmatpush1.msra.mxu0 0.0
        %4612 = vmatprep.subr.mxu0 0.0
        %4613 = vmatpush1.msra.mxu0 0.0
        %4614 = vmatprep.subr.mxu0 0.0
        %4615 = vmatpush1.msra.mxu0 0.0
        %4616 = vmatprep.subr.mxu0 0.0
        %4617 = vmatpush1.msra.mxu0 %v4488
        %4618 = vmatprep.subr.mxu0 0.0
        %4619 = vmatpush1.msra.mxu0 %v4487
        %4620 = vmatprep.subr.mxu0 0.0
        %4621 = vmatpush1.msra.mxu0 %v4486
        %4622 = vmatprep.subr.mxu0 0.0
        %4623 = vmatpush1.msra.mxu0 %v4485
        %4624 = vmatprep.subr.mxu0 0.0
        %4625 = vmatpush2.msra.mxu0 0.0
        %4626 = vmatprep.subr.mxu0 0.0
        %4627 = vmatpush2.msra.mxu0 0.0
        %4628 = vmatprep.subr.mxu0 0.0
        %4629 = vmatpush2.msra.mxu0 0.0
        %4630 = vmatprep.subr.mxu0 0.0
        %4631 = vmatpush2.msra.mxu0 0.0
        %4632 = vmatprep.subr.mxu0 0.0
        %4633 = vmatpush2.msra.mxu0 0.0
        %4634 = vmatprep.subr.mxu0 0.0
        %4635 = vmatpush2.msra.mxu0 0.0
        %4636 = vmatprep.subr.mxu0 0.0
        %4637 = vmatpush2.msra.mxu0 0.0
        %4638 = vmatprep.subr.mxu0 0.0
        %4639 = vmatpush2.msra.mxu0 0.0
        %4640 = vmatprep.subr.mxu0 0.0
        %4641 = vmatpush2.msra.mxu0 0.0
        %4642 = vmatprep.subr.mxu0 0.0
        %4643 = vmatpush2.msra.mxu0 0.0
        %4644 = vmatprep.subr.mxu0 0.0
        %4645 = vmatpush2.msra.mxu0 0.0
        %4646 = vmatprep.subr.mxu0 0.0
        %4647 = vmatpush2.msra.mxu0 0.0
        %4648 = vmatprep.subr.mxu0 0.0
        %4649 = vmatpush2.msra.mxu0 0.0
        %4650 = vmatprep.subr.mxu0 0.0
        %4651 = vmatpush2.msra.mxu0 0.0
        %4652 = vmatprep.subr.mxu0 0.0
        %4653 = vmatpush2.msra.mxu0 0.0
        %4654 = vmatprep.subr.mxu0 0.0
        %4655 = vmatpush2.msra.mxu0 0.0
        %4656 = vmatprep.mubr.f32.mxu0 0.0
        %4657 = vmatmul.mubr.f32.gmra.mxu0 %v4497
        %v4658 = vpop.f32.mrf.mxu0
        %v4659 = vadd.f32 %v4494, %v4658
        %v4660 = vpop.f32.mrf.mxu0
        %4661 = vmatprep.mubr.f32.mxu0 0.0
        %4662 = vmatmul.mubr.f32.gmra.mxu0 %v4500
        %v4663 = vpop.f32.mrf.mxu0
        %v4664 = vadd.f32 %v4494, %v4663
        %v4665 = vpop.f32.mrf.mxu0
        %4666 = vmatprep.mubr.f32.mxu0 0.0
        %4667 = vmatmul.mubr.f32.gmra.mxu0 %v4503
        %v4668 = vpop.f32.mrf.mxu0
        %v4669 = vadd.f32 %v4494, %v4668
        %v4670 = vpop.f32.mrf.mxu0
        %4671 = vmatprep.mubr.f32.mxu0 0.0
        %4672 = vmatmul.mubr.f32.gmra.mxu0 %v4506
        %v4673 = vpop.f32.mrf.mxu0
        %v4674 = vadd.f32 %v4494, %v4673
        %v4675 = vpop.f32.mrf.mxu0
        %4676 = vmatprep.mubr.f32.mxu0 0.0
        %4677 = vmatmul.mubr.f32.gmra.mxu0 %v4509
        %v4678 = vpop.f32.mrf.mxu0
        %v4679 = vadd.f32 %v4494, %v4678
        %v4680 = vpop.f32.mrf.mxu0
        %4681 = vmatprep.mubr.f32.mxu0 0.0
        %4682 = vmatmul.mubr.f32.gmra.mxu0 %v4512
        %v4683 = vpop.f32.mrf.mxu0
        %v4684 = vadd.f32 %v4494, %v4683
        %v4685 = vpop.f32.mrf.mxu0
        %4686 = vmatprep.mubr.f32.mxu0 0.0
        %4687 = vmatmul.mubr.f32.gmra.mxu0 %v4515
        %v4688 = vpop.f32.mrf.mxu0
        %v4689 = vadd.f32 %v4494, %v4688
        %v4690 = vpop.f32.mrf.mxu0
        %4691 = vmatprep.mubr.f32.mxu0 0.0
        %4692 = vmatmul.mubr.f32.gmra.mxu0 %v4518
        %v4693 = vpop.f32.mrf.mxu0
        %v4694 = vadd.f32 %v4494, %v4693
        %v4695 = vpop.f32.mrf.mxu0
        %4696 = vmatprep.mubr.f32.mxu0 0.0
        %4697 = vmatmul.mubr.f32.gmra.mxu0 %v4521
        %v4698 = vpop.f32.mrf.mxu0
        %v4699 = vadd.f32 %v4494, %v4698
        %v4700 = vpop.f32.mrf.mxu0
        %4701 = vmatprep.mubr.f32.mxu0 0.0
        %4702 = vmatmul.mubr.f32.gmra.mxu0 %v4524
        %v4703 = vpop.f32.mrf.mxu0
        %v4704 = vadd.f32 %v4494, %v4703
        %v4705 = vpop.f32.mrf.mxu0
        %4706 = vmatprep.mubr.f32.mxu0 0.0
        %4707 = vmatmul.mubr.f32.gmra.mxu0 %v4527
        %v4708 = vpop.f32.mrf.mxu0
        %v4709 = vadd.f32 %v4494, %v4708
        %v4710 = vpop.f32.mrf.mxu0
        %4711 = vmatprep.mubr.f32.mxu0 0.0
        %4712 = vmatmul.mubr.f32.gmra.mxu0 %v4530
        %v4713 = vpop.f32.mrf.mxu0
        %v4714 = vadd.f32 %v4494, %v4713
        %v4715 = vpop.f32.mrf.mxu0
        %4716 = vmatprep.mubr.f32.mxu0 0.0
        %4717 = vmatmul.mubr.f32.gmra.mxu0 %v4533
        %v4718 = vpop.f32.mrf.mxu0
        %v4719 = vadd.f32 %v4494, %v4718
        %v4720 = vpop.f32.mrf.mxu0
        %4721 = vmatprep.mubr.f32.mxu0 0.0
        %4722 = vmatmul.mubr.f32.gmra.mxu0 %v4536
        %v4723 = vpop.f32.mrf.mxu0
        %v4724 = vadd.f32 %v4494, %v4723
        %v4725 = vpop.f32.mrf.mxu0
        %4726 = vmatprep.mubr.f32.mxu0 0.0
        %4727 = vmatmul.mubr.f32.gmra.mxu0 %v4539
        %v4728 = vpop.f32.mrf.mxu0
        %v4729 = vadd.f32 %v4494, %v4728
        %v4730 = vpop.f32.mrf.mxu0
        %4731 = vmatprep.mubr.f32.mxu0 0.0
        %4732 = vmatmul.mubr.f32.gmra.mxu0 %v4542
        %v4733 = vpop.f32.mrf.mxu0
        %v4734 = vadd.f32 %v4494, %v4733
        %v4735 = vpop.f32.mrf.mxu0
        %4736 = vmatprep.mubr.f32.mxu0 0.0
        %4737 = vmatmul.mubr.f32.gmra.mxu0 %v4545
        %v4738 = vpop.f32.mrf.mxu0
        %v4739 = vadd.f32 %v4494, %v4738
        %v4740 = vpop.f32.mrf.mxu0
        %4741 = vmatprep.mubr.f32.mxu0 0.0
        %4742 = vmatmul.mubr.f32.gmra.mxu0 %v4548
        %v4743 = vpop.f32.mrf.mxu0
        %v4744 = vadd.f32 %v4494, %v4743
        %v4745 = vpop.f32.mrf.mxu0
        %4746 = vmatprep.mubr.f32.mxu0 0.0
        %4747 = vmatmul.mubr.f32.gmra.mxu0 %v4551
        %v4748 = vpop.f32.mrf.mxu0
        %v4749 = vadd.f32 %v4494, %v4748
        %v4750 = vpop.f32.mrf.mxu0
        %4751 = vmatprep.mubr.f32.mxu0 0.0
        %4752 = vmatmul.mubr.f32.gmra.mxu0 %v4554
        %v4753 = vpop.f32.mrf.mxu0
        %v4754 = vadd.f32 %v4494, %v4753
        %v4755 = vpop.f32.mrf.mxu0
        %4756 = vmatprep.mubr.f32.mxu0 0.0
        %4757 = vmatmul.mubr.f32.gmra.mxu0 %v4557
        %v4758 = vpop.f32.mrf.mxu0
        %v4759 = vadd.f32 %v4494, %v4758
        %v4760 = vpop.f32.mrf.mxu0
        %4761 = vmatprep.mubr.f32.mxu0 0.0
        %4762 = vmatmul.mubr.f32.gmra.mxu0 %v4560
        %v4763 = vpop.f32.mrf.mxu0
        %v4764 = vadd.f32 %v4494, %v4763
        %v4765 = vpop.f32.mrf.mxu0
        %4766 = vmatprep.mubr.f32.mxu0 0.0
        %4767 = vmatmul.mubr.f32.gmra.mxu0 %v4563
        %v4768 = vpop.f32.mrf.mxu0
        %v4769 = vadd.f32 %v4494, %v4768
        %v4770 = vpop.f32.mrf.mxu0
        %4771 = vmatprep.mubr.f32.mxu0 0.0
        %4772 = vmatmul.mubr.f32.gmra.mxu0 %v4566
        %v4773 = vpop.f32.mrf.mxu0
        %v4774 = vadd.f32 %v4494, %v4773
        %v4775 = vpop.f32.mrf.mxu0
        %4776 = vmatprep.mubr.f32.mxu0 0.0
        %4777 = vmatmul.mubr.f32.gmra.mxu0 %v4569
        %v4778 = vpop.f32.mrf.mxu0
        %v4779 = vadd.f32 %v4494, %v4778
        %v4780 = vpop.f32.mrf.mxu0
        %4781 = vmatprep.mubr.f32.mxu0 0.0
        %4782 = vmatmul.mubr.f32.gmra.mxu0 %v4572
        %v4783 = vpop.f32.mrf.mxu0
        %v4784 = vadd.f32 %v4494, %v4783
        %v4785 = vpop.f32.mrf.mxu0
        %4786 = vmatprep.mubr.f32.mxu0 0.0
        %4787 = vmatmul.mubr.f32.gmra.mxu0 %v4575
        %v4788 = vpop.f32.mrf.mxu0
        %v4789 = vadd.f32 %v4494, %v4788
        %v4790 = vpop.f32.mrf.mxu0
        %4791 = vmatprep.mubr.f32.mxu0 0.0
        %4792 = vmatmul.mubr.f32.gmra.mxu0 %v4578
        %v4793 = vpop.f32.mrf.mxu0
        %v4794 = vadd.f32 %v4494, %v4793
        %v4795 = vpop.f32.mrf.mxu0
        %4796 = vmatprep.mubr.f32.mxu0 0.0
        %4797 = vmatmul.mubr.f32.gmra.mxu0 %v4581
        %v4798 = vpop.f32.mrf.mxu0
        %v4799 = vadd.f32 %v4494, %v4798
        %v4800 = vpop.f32.mrf.mxu0
        %4801 = vmatprep.mubr.f32.mxu0 0.0
        %4802 = vmatmul.mubr.f32.gmra.mxu0 %v4584
        %v4803 = vpop.f32.mrf.mxu0
        %v4804 = vadd.f32 %v4494, %v4803
        %v4805 = vpop.f32.mrf.mxu0
        %4806 = vmatprep.mubr.f32.mxu0 0.0
        %4807 = vmatmul.mubr.f32.gmra.mxu0 %v4587
        %v4808 = vpop.f32.mrf.mxu0
        %v4809 = vadd.f32 %v4494, %v4808
        %v4810 = vpop.f32.mrf.mxu0
        %4811 = vmatprep.mubr.f32.mxu0 0.0
        %4812 = vmatmul.mubr.f32.gmra.mxu0 %v4590
        %v4813 = vpop.f32.mrf.mxu0
        %v4814 = vadd.f32 %v4494, %v4813
        %v4815 = vpop.f32.mrf.mxu0
        %4816 = vdwg.mxu0
        %4817 = vrot.lane.b32.xlu0 %v4089, 8
        %v4818 = vpop.permute.xlu0 %4817
        %4819 = vrot.lane.b32.xlu0 %v4090, 8
        %v4820 = vpop.permute.xlu0 %4819
        %4821 = vrot.lane.b32.xlu0 %v4091, 8
        %v4822 = vpop.permute.xlu0 %4821
        %4823 = vrot.lane.b32.xlu0 %v4092, 8
        %v4824 = vpop.permute.xlu0 %4823
        %4825 = vrot.lane.b32.xlu0 %v4093, 8
        %v4826 = vpop.permute.xlu0 %4825
        %4827 = vrot.lane.b32.xlu0 %v4094, 8
        %v4828 = vpop.permute.xlu0 %4827
        %4829 = vrot.lane.b32.xlu0 %v4095, 8
        %v4830 = vpop.permute.xlu0 %4829
        %4831 = vrot.lane.b32.xlu0 %v4096, 8
        %v4832 = vpop.permute.xlu0 %4831
        %4833 = vrot.lane.b32.xlu0 %v4097, 8
        %v4834 = vpop.permute.xlu0 %4833
        %4835 = vrot.lane.b32.xlu0 %v4098, 8
        %v4836 = vpop.permute.xlu0 %4835
        %4837 = vrot.lane.b32.xlu0 %v4099, 8
        %v4838 = vpop.permute.xlu0 %4837
        %4839 = vrot.lane.b32.xlu0 %v4100, 8
        %v4840 = vpop.permute.xlu0 %4839
        %4841 = vrot.lane.b32.xlu0 %v4101, 8
        %v4842 = vpop.permute.xlu0 %4841
        %4843 = vrot.lane.b32.xlu0 %v4102, 8
        %v4844 = vpop.permute.xlu0 %4843
        %4845 = vrot.lane.b32.xlu0 %v4103, 8
        %v4846 = vpop.permute.xlu0 %4845
        %4847 = vrot.lane.b32.xlu0 %v4104, 8
        %v4848 = vpop.permute.xlu0 %4847
        %4865 = vrot.lane.b32.xlu0 %v1877, 8
        %v4866 = vpop.permute.xlu0 %4865
        %4867 = vrot.lane.b32.xlu0 %v1878, 8
        %v4868 = vpop.permute.xlu0 %4867
        %4869 = vrot.lane.b32.xlu0 %v1879, 8
        %v4870 = vpop.permute.xlu0 %4869
        %4871 = vrot.lane.b32.xlu0 %v1880, 8
        %v4872 = vpop.permute.xlu0 %4871
        %4873 = vrot.lane.b32.xlu0 %v1881, 8
        %v4874 = vpop.permute.xlu0 %4873
        %4875 = vrot.lane.b32.xlu0 %v1882, 8
        %v4876 = vpop.permute.xlu0 %4875
        %4877 = vrot.lane.b32.xlu0 %v1883, 8
        %v4878 = vpop.permute.xlu0 %4877
        %4879 = vrot.lane.b32.xlu0 %v1884, 8
        %v4880 = vpop.permute.xlu0 %4879
        %4881 = vrot.lane.b32.xlu0 %v1885, 8
        %v4882 = vpop.permute.xlu0 %4881
        %4883 = vrot.lane.b32.xlu0 %v1886, 8
        %v4884 = vpop.permute.xlu0 %4883
        %4885 = vrot.lane.b32.xlu0 %v1887, 8
        %v4886 = vpop.permute.xlu0 %4885
        %4887 = vrot.lane.b32.xlu0 %v1888, 8
        %v4888 = vpop.permute.xlu0 %4887
        %4889 = vrot.lane.b32.xlu0 %v1889, 8
        %v4890 = vpop.permute.xlu0 %4889
        %4891 = vrot.lane.b32.xlu0 %v1890, 8
        %v4892 = vpop.permute.xlu0 %4891
        %4893 = vrot.lane.b32.xlu0 %v1891, 8
        %v4894 = vpop.permute.xlu0 %4893
        %4895 = vrot.lane.b32.xlu0 %v1892, 8
        %v4896 = vpop.permute.xlu0 %4895
        %4929 = vrot.lane.b32.xlu0 %v4739, 72
        %v4930 = vpop.permute.xlu0 %4929
        %4931 = vrot.lane.b32.xlu0 %v4744, 72
        %v4932 = vpop.permute.xlu0 %4931
        %4933 = vrot.lane.b32.xlu0 %v4749, 72
        %v4934 = vpop.permute.xlu0 %4933
        %4935 = vrot.lane.b32.xlu0 %v4754, 72
        %v4936 = vpop.permute.xlu0 %4935
        %4937 = vrot.lane.b32.xlu0 %v4759, 72
        %v4938 = vpop.permute.xlu0 %4937
        %4939 = vrot.lane.b32.xlu0 %v4764, 72
        %v4940 = vpop.permute.xlu0 %4939
        %4941 = vrot.lane.b32.xlu0 %v4769, 72
        %v4942 = vpop.permute.xlu0 %4941
        %4943 = vrot.lane.b32.xlu0 %v4774, 72
        %v4944 = vpop.permute.xlu0 %4943
        %4945 = vrot.lane.b32.xlu0 %v4779, 72
        %v4946 = vpop.permute.xlu0 %4945
        %4947 = vrot.lane.b32.xlu0 %v4784, 72
        %v4948 = vpop.permute.xlu0 %4947
        %4949 = vrot.lane.b32.xlu0 %v4789, 72
        %v4950 = vpop.permute.xlu0 %4949
        %4951 = vrot.lane.b32.xlu0 %v4794, 72
        %v4952 = vpop.permute.xlu0 %4951
        %4953 = vrot.lane.b32.xlu0 %v4799, 72
        %v4954 = vpop.permute.xlu0 %4953
        %4955 = vrot.lane.b32.xlu0 %v4804, 72
        %v4956 = vpop.permute.xlu0 %4955
        %4957 = vrot.lane.b32.xlu0 %v4809, 72
        %v4958 = vpop.permute.xlu0 %4957
        %4959 = vrot.lane.b32.xlu0 %v4814, 72
        %v4960 = vpop.permute.xlu0 %4959
        %vm4977 = vcmask 64512
        %v4978 = vsel %vm4977, %v4659, %v4818
        %v4979 = vsel %vm4977, %v4664, %v4820
        %v4980 = vsel %vm4977, %v4669, %v4822
        %v4981 = vsel %vm4977, %v4674, %v4824
        %v4982 = vsel %vm4977, %v4679, %v4826
        %v4983 = vsel %vm4977, %v4684, %v4828
        %v4984 = vsel %vm4977, %v4689, %v4830
        %v4985 = vsel %vm4977, %v4694, %v4832
        %v4986 = vsel %vm4977, %v4699, %v4834
        %v4987 = vsel %vm4977, %v4704, %v4836
        %v4988 = vsel %vm4977, %v4709, %v4838
        %v4989 = vsel %vm4977, %v4714, %v4840
        %v4990 = vsel %vm4977, %v4719, %v4842
        %v4991 = vsel %vm4977, %v4724, %v4844
        %v4992 = vsel %vm4977, %v4729, %v4846
        %v4993 = vsel %vm4977, %v4734, %v4848
        %vm4994 = vcmask 326656
        %v4995 = vsel %vm4994, %v4978, %v4866
        %v4996 = vsel %vm4994, %v4979, %v4868
        %v4997 = vsel %vm4994, %v4980, %v4870
        %v4998 = vsel %vm4994, %v4981, %v4872
        %v4999 = vsel %vm4994, %v4982, %v4874
        %v5000 = vsel %vm4994, %v4983, %v4876
        %v5001 = vsel %vm4994, %v4984, %v4878
        %v5002 = vsel %vm4994, %v4985, %v4880
        %v5003 = vsel %vm4994, %v4986, %v4882
        %v5004 = vsel %vm4994, %v4987, %v4884
        %v5005 = vsel %vm4994, %v4988, %v4886
        %v5006 = vsel %vm4994, %v4989, %v4888
        %v5007 = vsel %vm4994, %v4990, %v4890
        %v5008 = vsel %vm4994, %v4991, %v4892
        %v5009 = vsel %vm4994, %v4992, %v4894
        %v5010 = vsel %vm4994, %v4993, %v4896
        %vm5011 = vcmask 588800
        %v5012 = vsel %vm5011, %v4995, %v4930
        %v5013 = vsel %vm5011, %v4996, %v4932
        %v5014 = vsel %vm5011, %v4997, %v4934
        %v5015 = vsel %vm5011, %v4998, %v4936
        %v5016 = vsel %vm5011, %v4999, %v4938
        %v5017 = vsel %vm5011, %v5000, %v4940
        %v5018 = vsel %vm5011, %v5001, %v4942
        %v5019 = vsel %vm5011, %v5002, %v4944
        %v5020 = vsel %vm5011, %v5003, %v4946
        %v5021 = vsel %vm5011, %v5004, %v4948
        %v5022 = vsel %vm5011, %v5005, %v4950
        %v5023 = vsel %vm5011, %v5006, %v4952
        %v5024 = vsel %vm5011, %v5007, %v4954
        %v5025 = vsel %vm5011, %v5008, %v4956
        %v5026 = vsel %vm5011, %v5009, %v4958
        %v5027 = vsel %vm5011, %v5010, %v4960
        %vm5028 = vcmask 654336
        %v5029 = vsel %vm5028, %v5012, 0.0
        %v5030 = vsel %vm5028, %v5013, 0.0
        %v5031 = vsel %vm5028, %v5014, 0.0
        %v5032 = vsel %vm5028, %v5015, 0.0
        %v5033 = vsel %vm5028, %v5016, 0.0
        %v5034 = vsel %vm5028, %v5017, 0.0
        %v5035 = vsel %vm5028, %v5018, 0.0
        %v5036 = vsel %vm5028, %v5019, 0.0
        %v5037 = vsel %vm5028, %v5020, 0.0
        %v5038 = vsel %vm5028, %v5021, 0.0
        %v5039 = vsel %vm5028, %v5022, 0.0
        %v5040 = vsel %vm5028, %v5023, 0.0
        %v5041 = vsel %vm5028, %v5024, 0.0
        %v5042 = vsel %vm5028, %v5025, 0.0
        %v5043 = vsel %vm5028, %v5026, 0.0
        %v5044 = vsel %vm5028, %v5027, 0.0
        %5045 = vst [vmem:[%s766] sm:$0xff] %v5029
        %5046 = vst [vmem:[%s766 + $0x8] sm:$0xff] %v5030
        %5047 = vst [vmem:[%s766 + $0x10] sm:$0xff] %v5031
        %5048 = vst [vmem:[%s766 + $0x18] sm:$0xff] %v5032
        %5049 = vst [vmem:[%s766 + $0x20] sm:$0xff] %v5033
        %5050 = vst [vmem:[%s766 + $0x28] sm:$0xff] %v5034
        %5051 = vst [vmem:[%s766 + $0x30] sm:$0xff] %v5035
        %5052 = vst [vmem:[%s766 + $0x38] sm:$0xff] %v5036
        %5053 = vst [vmem:[%s766 + $0x40] sm:$0xff] %v5037
        %5054 = vst [vmem:[%s766 + $0x48] sm:$0xff] %v5038
        %5055 = vst [vmem:[%s766 + $0x50] sm:$0xff] %v5039
        %5056 = vst [vmem:[%s766 + $0x58] sm:$0xff] %v5040
        %5057 = vst [vmem:[%s766 + $0x60] sm:$0xff] %v5041
        %5058 = vst [vmem:[%s766 + $0x68] sm:$0xff] %v5042
        %5059 = vst [vmem:[%s766 + $0x70] sm:$0xff] %v5043
        %5060 = vst [vmem:[%s766 + $0x78] sm:$0xff] %v5044
        %s5061 = smul.u32 16, %s36
        %p5062 = scmp.lt.s32.totalorder %s5061, 31
        %s5063 = scalar_select %p5062, %s5061, 31
        %s5064 = smul.addr %s5063, 8
        %s5065 = scalar_lea.vmem %s20, %s5064
        // Predicated region
        $region133: #{attrnn_forward.1} parent=99 // pred_check
          %p5066 = pneg %p484
        $region134: #{attrnn_forward.1} parent=99 // pred_check_branch
          %5068 = sbr.rel (%p5066) target = $region136
        $region135: #{attrnn_forward.1} parent=99 // pred_region
          %s5069 = smul.u32 16, %s36
        $region136: #{attrnn_forward.1} parent=99 // pred_fallthru
          _
      $region100: #{attrnn_forward.1} parent=5 // pred_fallthru
        _
      %p5070 = scmp.le.s32.totalorder 2, %s31
      // Predicated region
      $region137: #{attrnn_forward.1} parent=5 // pred_check
        %p5071 = pneg %p5070
      $region138: #{attrnn_forward.1} parent=5 // pred_check_branch
        %5073 = sbr.rel (%p5071) target = $region140
      $region139: #{attrnn_forward.1} parent=5 // pred_region
        %s5074 = ssub.s32 %s31, 2
        // Predicated region
        $region141: #{attrnn_forward.1} parent=139 // pred_check
          %p5075 = pneg %p490
        $region142: #{attrnn_forward.1} parent=139 // pred_check_branch
          %5077 = sbr.rel (%p5075) target = $region144
        $region143: #{attrnn_forward.1} parent=139 // pred_region
          %s5078 = smul.u32 16, %s37
          %p5079 = scmp.lt.s32.totalorder %s5078, 31
          %s5080 = scalar_select %p5079, %s5078, 31
          %s5081 = smul.addr %s5080, 8
          %s5082 = scalar_lea.vmem %s20, %s5081
        $region144: #{attrnn_forward.1} parent=139 // pred_fallthru
          _
      $region140: #{attrnn_forward.1} parent=5 // pred_fallthru
        _
    $region6: #{attrnn_forward.1} parent=1 // loop_footer
      %s35 = sadd.s32 1, %s31
    $region7: #{attrnn_forward.1} parent=1 // loop_footer_branch
      %30 = sbr.rel target = $region3
    $region8: #{attrnn_forward.1} parent=1 // loop_exit
      _
    %5083 = vsyncpa [#allocation3], 1
    %s5084 = scalar_lea.sflag [#allocation3], 1
    %5085 = vsyncpa %s5084, 1
    %5086 = vsyncpa [#allocation5], 1
    %5087 = vsyncpa [#allocation8], 1
    %5088 = vsyncpa [#allocation11], 1
    %5089 = vsyncpa [#allocation14], 1

</llo_original>
